<compile_context>
chip_gen: v5e
topology: v5e:2x2
jax: 0.10.0
libtpu: 0.0.40
codegen_flags: <defaults>
</compile_context>

<pallas_src>
import functools

import jax
import jax.numpy as jnp
from jax.experimental import pallas as pl
from jax.experimental.pallas import tpu as pltpu


_PER_TAP_MIN_CIN = 128  # below this, a single concatenated-patch matmul wins


# -----------------------------------------------------------------------------
# In-kernel helpers (traced inside the kernel body)
# -----------------------------------------------------------------------------
def _group_norm_silu(x, gmat, gamma, beta, eps):
    """x: (HW, C) f32.  gmat: (C, C) group-averaging matrix with 1/(HW*Cg) entries."""
    # Spatial reduce first (XLU), then a tiny (1,C)x(C,C) group matmul.
    s = jnp.sum(x, axis=0, keepdims=True)                          # (1, C)
    mean = jnp.dot(s, gmat, preferred_element_type=jnp.float32)    # group mean / channel
    xc = x - mean
    ssq = jnp.sum(xc * xc, axis=0, keepdims=True)                  # (1, C)
    var = jnp.dot(ssq, gmat, preferred_element_type=jnp.float32)   # two-pass variance
    inv = jax.lax.rsqrt(jnp.maximum(var, 0.0) + eps)
    y = xc * inv * gamma + beta
    return y * jax.nn.sigmoid(y)                                   # SiLU (exp -> EUP)


def _taps_matmul(taps, w_ref, b_ref):
    """taps: 9 arrays (M, Cin).  w_ref: (9*Cin, Cout) packed.  b_ref: (1, Cout) f32."""
    cin = taps[0].shape[-1]
    if cin >= _PER_TAP_MIN_CIN:
        # Per-tap accumulated matmuls: K stays = Cin (MXU-efficient), 9x fewer live
        # vregs/VMEM intermediates; v7x MRB accumulates in place.
        acc = jnp.dot(taps[0], w_ref[0:cin, :], preferred_element_type=jnp.float32)
        for t in range(1, 9):
            acc = acc + jnp.dot(taps[t], w_ref[t * cin:(t + 1) * cin, :],
                                preferred_element_type=jnp.float32)
    else:
        # Tiny Cin: one (M, 9*Cin) @ (9*Cin, Cout) matmul beats nine K=Cin matmuls.
        patch = jnp.concatenate(taps, axis=-1)
        acc = jnp.dot(patch, w_ref[...], preferred_element_type=jnp.float32)
    return acc + b_ref[...]


def _conv3x3_s1(y, w_ref, b_ref):
    """3x3 / stride-1 / pad-1 conv on a (H, W, Cin) tile -> (H*W, Cout) f32.

    Zero halo is built in-register (concatenated zero rows / columns): no padded
    VMEM scratch, no zero-fill stores, no sublane-unaligned writes.
    """
    h, w, cin = y.shape
    zrow = jnp.zeros((1, w, cin), y.dtype)
    zcol = jnp.zeros((h, 1, cin), y.dtype)
    taps = []
    for ky in range(3):
        if ky == 0:
            rows = jnp.concatenate([zrow, y[:h - 1]], axis=0)       # in[i-1, :]
        elif ky == 1:
            rows = y                                                # in[i, :]
        else:
            rows = jnp.concatenate([y[1:], zrow], axis=0)           # in[i+1, :]
        for kx in range(3):
            if kx == 0:
                tap = jnp.concatenate([zcol, rows[:, :w - 1, :]], axis=1)
            elif kx == 1:
                tap = rows
            else:
                tap = jnp.concatenate([rows[:, 1:, :], zcol], axis=1)
            taps.append(tap.reshape(h * w, cin))
    return _taps_matmul(taps, w_ref, b_ref)


def _conv3x3_s2(y, w_ref, b_ref):
    """3x3 / stride-2 / pad-1 conv on a (H, W, C) tile (H, W even) -> (H/2*W/2, Cout).

    Strided taps via an even/odd row & column phase split (layout-free reshapes)."""
    h, w, c = y.shape
    ho, wo = h // 2, w // 2
    zrow = jnp.zeros((1, w, c), y.dtype)
    yp = jnp.concatenate([zrow, y, zrow], axis=0)             # rows zero-padded: (h+2, w, c)
    rows_split = yp.reshape((h + 2) // 2, 2, w, c)            # padded row r -> (r//2, r%2)
    zcol = jnp.zeros((ho, 1, c), y.dtype)
    taps = []
    for ky in range(3):
        rows = rows_split[ky // 2: ky // 2 + ho, ky % 2]      # (ho, w, c): row 2*oi+ky-1
        cols = rows.reshape(ho, wo, 2, c)                     # col q -> (q//2, q%2)
        even, odd = cols[:, :, 0, :], cols[:, :, 1, :]
        for kx in range(3):
            if kx == 0:    # input col 2*oj - 1: odd phase shifted right, zero at oj=0
                tap = jnp.concatenate([zcol, odd[:, :wo - 1, :]], axis=1)
            elif kx == 1:  # input col 2*oj: even phase
                tap = even
            else:          # input col 2*oj + 1: odd phase
                tap = odd
            taps.append(tap.reshape(ho * wo, c))
    return _taps_matmul(taps, w_ref, b_ref)


# -----------------------------------------------------------------------------
# The single fused kernel
# -----------------------------------------------------------------------------
def _down_block_kernel(*refs, eps, inv_scale, has_shortcut, compute_dtype):
    if has_shortcut:
        (x_ref, g1m_ref, g1w_ref, g1b_ref, w1_ref, b1_ref,
         g2m_ref, g2w_ref, g2b_ref, w2_ref, b2_ref,
         wsc_ref, bsc_ref, wd_ref, bd_ref, o_ref) = refs
    else:
        (x_ref, g1m_ref, g1w_ref, g1b_ref, w1_ref, b1_ref,
         g2m_ref, g2w_ref, g2b_ref, w2_ref, b2_ref,
         wd_ref, bd_ref, o_ref) = refs
        wsc_ref = bsc_ref = None

    _, h, w, cin = x_ref.shape
    cout = w1_ref.shape[-1]
    ho, wo = h // 2, w // 2

    x32 = x_ref[...].reshape(h * w, cin).astype(jnp.float32)

    # --- ResnetBlock2D: norm1 + SiLU + conv1 (3x3, s1) ---
    y1 = _group_norm_silu(x32, g1m_ref[...], g1w_ref[...], g1b_ref[...], eps)
    h1 = _conv3x3_s1(y1.astype(compute_dtype).reshape(h, w, cin), w1_ref, b1_ref)

    # --- norm2 + SiLU + dropout(p=0.0)==id + conv2 (3x3, s1) ---
    y2 = _group_norm_silu(h1, g2m_ref[...], g2w_ref[...], g2b_ref[...], eps)
    h2 = _conv3x3_s1(y2.astype(compute_dtype).reshape(h, w, cout), w2_ref, b2_ref)

    # --- shortcut + residual + 1/output_scale_factor ---
    if has_shortcut:
        sc = jnp.dot(x32.astype(compute_dtype), wsc_ref[...],
                     preferred_element_type=jnp.float32) + bsc_ref[...]
    else:
        sc = x32                                               # identity: no eye-matmul
    res = (sc + h2) * inv_scale                                # (h*w, cout) f32

    # --- Downsample2D: 3x3 conv, stride 2, pad 1 (fused; residual never hits HBM) ---
    out = _conv3x3_s2(res.astype(compute_dtype).reshape(h, w, cout), wd_ref, bd_ref)
    o_ref[...] = out.reshape(1, ho, wo, cout).astype(o_ref.dtype)


# -----------------------------------------------------------------------------
# Host-side packing + pallas_call wrapper
# -----------------------------------------------------------------------------
def _group_matrix(c, groups, hw):
    cg = c // groups
    gidx = jnp.arange(c) // cg
    return (gidx[:, None] == gidx[None, :]).astype(jnp.float32) / float(hw * cg)


def _pack_conv3x3(w_oihw, dtype):
    o, i, _, _ = w_oihw.shape
    # OIHW -> (ky, kx, i, o) -> (9*i, o): matches the in-kernel tap order (ky, kx).
    return jnp.transpose(w_oihw, (2, 3, 1, 0)).reshape(9 * i, o).astype(dtype)


def _compiler_params():
    # Generation-aware VMEM budget: ~75% of physical VMEM (v5e/v6e 128 MiB, v7x 64 MiB).
    try:
        cap = pltpu.get_tpu_info().vmem_capacity_bytes
    except Exception:
        cap = 64 * 1024 * 1024
    return pltpu.CompilerParams(
        dimension_semantics=("parallel",),
        vmem_limit_bytes=min((cap * 3) // 4, 100 * 1024 * 1024),
    )


def down_encoder_block2d(x_nchw, p, *, groups, eps, output_scale_factor,
                         compute_dtype=jnp.bfloat16):
    """Fused DownEncoderBlock2D forward (num_layers=1, spatial downsample)."""
    x = jnp.transpose(x_nchw, (0, 2, 3, 1))                   # NCHW -> NHWC
    b, h, w, cin = x.shape
    cout = p["conv1_w"].shape[0]
    assert h % 2 == 0 and w % 2 == 0, "stride-2 phase split assumes even spatial dims"
    assert cin % groups == 0 and cout % groups == 0
    ho, wo = h // 2, w // 2
    has_shortcut = (cin != cout)

    f32 = jnp.float32
    g1m = _group_matrix(cin, groups, h * w)
    g2m = _group_matrix(cout, groups, h * w)
    w1 = _pack_conv3x3(p["conv1_w"], compute_dtype)
    w2 = _pack_conv3x3(p["conv2_w"], compute_dtype)
    wd = _pack_conv3x3(p["down_w"], compute_dtype)

    const2 = lambda i: (0, 0)
    row = lambda c_: pl.BlockSpec((1, c_), const2)

    inputs = [x,
              g1m, p["gn1_w"].reshape(1, cin).astype(f32),
              p["gn1_b"].reshape(1, cin).astype(f32),
              w1, p["conv1_b"].reshape(1, cout).astype(f32),
              g2m, p["gn2_w"].reshape(1, cout).astype(f32),
              p["gn2_b"].reshape(1, cout).astype(f32),
              w2, p["conv2_b"].reshape(1, cout).astype(f32)]
    in_specs = [
        pl.BlockSpec((1, h, w, cin), lambda i: (i, 0, 0, 0)),      # x (per-batch block)
        pl.BlockSpec((cin, cin), const2), row(cin), row(cin),      # gn1
        pl.BlockSpec((9 * cin, cout), const2), row(cout),          # conv1 (packed, resident)
        pl.BlockSpec((cout, cout), const2), row(cout), row(cout),  # gn2
        pl.BlockSpec((9 * cout, cout), const2), row(cout),         # conv2
    ]
    if has_shortcut:
        wsc = jnp.transpose(p["sc_w"], (2, 3, 1, 0)).reshape(cin, cout).astype(compute_dtype)
        inputs += [wsc, p["sc_b"].reshape(1, cout).astype(f32)]
        in_specs += [pl.BlockSpec((cin, cout), const2), row(cout)]
    inputs += [wd, p["down_b"].reshape(1, cout).astype(f32)]
    in_specs += [pl.BlockSpec((9 * cout, cout), const2), row(cout)]

    kernel = functools.partial(_down_block_kernel, eps=eps,
                               inv_scale=1.0 / float(output_scale_factor),
                               has_shortcut=has_shortcut,
                               compute_dtype=compute_dtype)
    out = pl.pallas_call(
        kernel,
        out_shape=jax.ShapeDtypeStruct((b, ho, wo, cout), x.dtype),
        grid=(b,),
        in_specs=in_specs,
        out_specs=pl.BlockSpec((1, ho, wo, cout), lambda i: (i, 0, 0, 0)),
        compiler_params=_compiler_params(),
    )(*inputs)
    return jnp.transpose(out, (0, 3, 1, 2))                   # NHWC -> NCHW


def init_params(key, cin, cout):
    ks = jax.random.split(key, 12)
    n = lambda k, shape, s=0.1: s * jax.random.normal(k, shape, jnp.float32)
    return {
        "gn1_w": 1.0 + n(ks[0], (cin,)),
        "gn1_b": n(ks[1], (cin,)),
        "conv1_w": n(ks[2], (cout, cin, 3, 3)),     # OIHW like PyTorch
        "conv1_b": n(ks[3], (cout,)),
        "gn2_w": 1.0 + n(ks[4], (cout,)),
        "gn2_b": n(ks[5], (cout,)),
        "conv2_w": n(ks[6], (cout, cout, 3, 3)),
        "conv2_b": n(ks[7], (cout,)),
        "sc_w": n(ks[8], (cout, cin, 1, 1)),        # only used when cin != cout
        "sc_b": n(ks[9], (cout,)),
        "down_w": n(ks[10], (cout, cout, 3, 3)),
        "down_b": n(ks[11], (cout,)),
    }


# -----------------------------------------------------------------------------
# Pure-JAX reference (mirrors the PyTorch forward) for numerical verification
# -----------------------------------------------------------------------------
def reference_forward(x, p, *, groups, eps, output_scale_factor):
    prec = jax.lax.Precision.HIGHEST

    def gn(t, g, bta):
        b, c, h, w = t.shape
        tg = t.reshape(b, groups, c // groups, h, w)
        m = tg.mean(axis=(2, 3, 4), keepdims=True)
        v = tg.var(axis=(2, 3, 4), keepdims=True)
        tn = ((tg - m) * jax.lax.rsqrt(v + eps)).reshape(b, c, h, w)
        return tn * g[None, :, None, None] + bta[None, :, None, None]

    def silu(t):
        return t * jax.nn.sigmoid(t)

    def conv(t, w, bias, stride=1, pad=1):
        y = jax.lax.conv_general_dilated(
            t, w, (stride, stride), [(pad, pad), (pad, pad)],
            dimension_numbers=("NCHW", "OIHW", "NCHW"), precision=prec)
        return y + bias[None, :, None, None]

    cin, cout = x.shape[1], p["conv1_w"].shape[0]
    h = conv(silu(gn(x, p["gn1_w"], p["gn1_b"])), p["conv1_w"], p["conv1_b"])
    h = conv(silu(gn(h, p["gn2_w"], p["gn2_b"])), p["conv2_w"], p["conv2_b"])
    sc = conv(x, p["sc_w"], p["sc_b"], pad=0) if cin != cout else x
    h = (sc + h) / output_scale_factor
    return conv(h, p["down_w"], p["down_b"], stride=2, pad=1)


if __name__ == "__main__":
    GROUPS, EPS, SCALE = 4, 1e-6, 1.0
    key = jax.random.PRNGKey(0)
    kx, kp, kp2 = jax.random.split(key, 3)

    # ---- Case 1: cin != cout (1x1 conv shortcut path), f32 and bf16 MXU paths ----
    B, CIN, COUT, H, W = 2, 8, 16, 16, 16
    x = jax.random.normal(kx, (B, CIN, H, W), jnp.float32)     # NCHW, like PyTorch
    params = init_params(kp, CIN, COUT)
    ref = reference_forward(x, params, groups=GROUPS, eps=EPS, output_scale_factor=SCALE)

    fwd_f32 = jax.jit(functools.partial(down_encoder_block2d, groups=GROUPS, eps=EPS,
                                        output_scale_factor=SCALE,
                                        compute_dtype=jnp.float32))
    out_f32 = jax.block_until_ready(fwd_f32(x, params))
    assert out_f32.shape == (B, COUT, H // 2, W // 2), out_f32.shape
    err = float(jnp.max(jnp.abs(out_f32 - ref)))
    assert err < 2e-3, f"f32 path mismatch vs reference: max abs err = {err}"

    fwd_bf16 = jax.jit(functools.partial(down_encoder_block2d, groups=GROUPS, eps=EPS,
                                         output_scale_factor=SCALE,
                                         compute_dtype=jnp.bfloat16))
    out_bf16 = jax.block_until_ready(fwd_bf16(x, params))
    tol = 6e-2 * float(jnp.max(jnp.abs(ref))) + 1e-2
    errb = float(jnp.max(jnp.abs(out_bf16 - ref)))
    assert errb < tol, f"bf16 path mismatch vs reference: {errb} (tol {tol})"

    # ---- Case 2: cin == cout (identity shortcut: the 1x1 matmul is skipped) ----
    x2 = jax.random.normal(kx, (1, COUT, H, W), jnp.float32)
    params2 = init_params(kp2, COUT, COUT)
    ref2 = reference_forward(x2, params2, groups=GROUPS, eps=EPS, output_scale_factor=SCALE)
    out2 = jax.block_until_ready(fwd_f32(x2, params2))
    err2 = float(jnp.max(jnp.abs(out2 - ref2)))
    assert err2 < 2e-3, f"identity-shortcut path mismatch: max abs err = {err2}"

    print("KERNEL_OK")
</pallas_src>

<mosaic_0001>
module attributes {stable_mosaic.version = 11 : i64} {
  func.func @_down_block_kernel(%arg0: i32, %arg1: memref<1x16x16x8xf32, #tpu.memory_space<vmem>>, %arg2: memref<8x8xf32, #tpu.memory_space<vmem>>, %arg3: memref<1x8xf32, #tpu.memory_space<vmem>>, %arg4: memref<1x8xf32, #tpu.memory_space<vmem>>, %arg5: memref<72x16xf32, #tpu.memory_space<vmem>>, %arg6: memref<1x16xf32, #tpu.memory_space<vmem>>, %arg7: memref<16x16xf32, #tpu.memory_space<vmem>>, %arg8: memref<1x16xf32, #tpu.memory_space<vmem>>, %arg9: memref<1x16xf32, #tpu.memory_space<vmem>>, %arg10: memref<144x16xf32, #tpu.memory_space<vmem>>, %arg11: memref<1x16xf32, #tpu.memory_space<vmem>>, %arg12: memref<8x16xf32, #tpu.memory_space<vmem>>, %arg13: memref<1x16xf32, #tpu.memory_space<vmem>>, %arg14: memref<144x16xf32, #tpu.memory_space<vmem>>, %arg15: memref<1x16xf32, #tpu.memory_space<vmem>>, %arg16: memref<1x8x8x16xf32, #tpu.memory_space<vmem>>) attributes {dimension_semantics = [#tpu.dimension_semantics<parallel>], iteration_bounds = array<i64: 2>, scalar_prefetch = 0 : i64, scratch_operands = 0 : i64, tpu.core_type = #tpu.core_type<tc>, window_params = [{transform_indices = @transform_0, window_bounds = array<i64: 1, 16, 16, 8>}, {pipeline_mode = #tpu.pipeline_mode<synchronous>, transform_indices = @transform_1, window_bounds = array<i64: 8, 8>}, {pipeline_mode = #tpu.pipeline_mode<synchronous>, transform_indices = @transform_2, window_bounds = array<i64: 1, 8>}, {pipeline_mode = #tpu.pipeline_mode<synchronous>, transform_indices = @transform_3, window_bounds = array<i64: 1, 8>}, {pipeline_mode = #tpu.pipeline_mode<synchronous>, transform_indices = @transform_4, window_bounds = array<i64: 72, 16>}, {pipeline_mode = #tpu.pipeline_mode<synchronous>, transform_indices = @transform_5, window_bounds = array<i64: 1, 16>}, {pipeline_mode = #tpu.pipeline_mode<synchronous>, transform_indices = @transform_6, window_bounds = array<i64: 16, 16>}, {pipeline_mode = #tpu.pipeline_mode<synchronous>, transform_indices = @transform_7, window_bounds = array<i64: 1, 16>}, {pipeline_mode = #tpu.pipeline_mode<synchronous>, transform_indices = @transform_8, window_bounds = array<i64: 1, 16>}, {pipeline_mode = #tpu.pipeline_mode<synchronous>, transform_indices = @transform_9, window_bounds = array<i64: 144, 16>}, {pipeline_mode = #tpu.pipeline_mode<synchronous>, transform_indices = @transform_10, window_bounds = array<i64: 1, 16>}, {pipeline_mode = #tpu.pipeline_mode<synchronous>, transform_indices = @transform_11, window_bounds = array<i64: 8, 16>}, {pipeline_mode = #tpu.pipeline_mode<synchronous>, transform_indices = @transform_12, window_bounds = array<i64: 1, 16>}, {pipeline_mode = #tpu.pipeline_mode<synchronous>, transform_indices = @transform_13, window_bounds = array<i64: 144, 16>}, {pipeline_mode = #tpu.pipeline_mode<synchronous>, transform_indices = @transform_14, window_bounds = array<i64: 1, 16>}, {transform_indices = @transform_15, window_bounds = array<i64: 1, 8, 8, 16>}]} {
    %c0 = arith.constant 0 : index
    %c0_0 = arith.constant 0 : index
    %c0_1 = arith.constant 0 : index
    %c0_2 = arith.constant 0 : index
    %0 = vector.load %arg1[%c0, %c0_0, %c0_1, %c0_2] : memref<1x16x16x8xf32, #tpu.memory_space<vmem>>, vector<1x16x16x8xf32>
    %1 = vector.shape_cast %0 : vector<1x16x16x8xf32> to vector<256x8xf32>
    %c0_3 = arith.constant 0 : index
    %c0_4 = arith.constant 0 : index
    %2 = vector.load %arg2[%c0_3, %c0_4] : memref<8x8xf32, #tpu.memory_space<vmem>>, vector<8x8xf32>
    %c0_5 = arith.constant 0 : index
    %c0_6 = arith.constant 0 : index
    %3 = vector.load %arg3[%c0_5, %c0_6] : memref<1x8xf32, #tpu.memory_space<vmem>>, vector<1x8xf32>
    %c0_7 = arith.constant 0 : index
    %c0_8 = arith.constant 0 : index
    %4 = vector.load %arg4[%c0_7, %c0_8] : memref<1x8xf32, #tpu.memory_space<vmem>>, vector<1x8xf32>
    %cst = arith.constant dense<0.000000e+00> : vector<8xf32>
    %5 = vector.multi_reduction <add>, %1, %cst [0] : vector<256x8xf32> to vector<8xf32>
    %6 = vector.shape_cast %5 : vector<8xf32> to vector<1x8xf32>
    %cst_9 = arith.constant dense<0.000000e+00> : vector<1x8xf32>
    %7 = tpu.matmul %6, %2, %cst_9 {dimension_numbers = #tpu.dot_dimension_numbers<[1], [0], [0], [1], [0, 0, 1, 1], [], []>} : vector<1x8xf32>, vector<8x8xf32>, vector<1x8xf32> -> vector<1x8xf32>
    %8 = vector.broadcast %7 : vector<1x8xf32> to vector<256x8xf32>
    %9 = arith.subf %1, %8 : vector<256x8xf32>
    %10 = arith.mulf %9, %9 : vector<256x8xf32>
    %cst_10 = arith.constant dense<0.000000e+00> : vector<8xf32>
    %11 = vector.multi_reduction <add>, %10, %cst_10 [0] : vector<256x8xf32> to vector<8xf32>
    %12 = vector.shape_cast %11 : vector<8xf32> to vector<1x8xf32>
    %cst_11 = arith.constant dense<0.000000e+00> : vector<1x8xf32>
    %13 = tpu.matmul %12, %2, %cst_11 {dimension_numbers = #tpu.dot_dimension_numbers<[1], [0], [0], [1], [0, 0, 1, 1], [], []>} : vector<1x8xf32>, vector<8x8xf32>, vector<1x8xf32> -> vector<1x8xf32>
    %cst_12 = arith.constant 0.000000e+00 : f32
    %14 = vector.broadcast %cst_12 : f32 to vector<1x8xf32>
    %15 = arith.maximumf %13, %14 : vector<1x8xf32>
    %cst_13 = arith.constant 9.99999997E-7 : f32
    %16 = vector.broadcast %cst_13 : f32 to vector<1x8xf32>
    %17 = arith.addf %15, %16 : vector<1x8xf32>
    %18 = math.rsqrt %17 : vector<1x8xf32>
    %19 = vector.broadcast %18 : vector<1x8xf32> to vector<256x8xf32>
    %20 = arith.mulf %9, %19 : vector<256x8xf32>
    %21 = vector.broadcast %3 : vector<1x8xf32> to vector<256x8xf32>
    %22 = arith.mulf %20, %21 : vector<256x8xf32>
    %23 = vector.broadcast %4 : vector<1x8xf32> to vector<256x8xf32>
    %24 = arith.addf %22, %23 : vector<256x8xf32>
    %25 = arith.negf %24 : vector<256x8xf32>
    %26 = math.exp %25 : vector<256x8xf32>
    %cst_14 = arith.constant 1.000000e+00 : f32
    %27 = vector.broadcast %cst_14 : f32 to vector<256x8xf32>
    %28 = arith.addf %27, %26 : vector<256x8xf32>
    %29 = arith.divf %27, %28 : vector<256x8xf32>
    %30 = arith.mulf %24, %29 : vector<256x8xf32>
    %31 = vector.shape_cast %30 : vector<256x8xf32> to vector<16x16x8xf32>
    %cst_15 = arith.constant 0.000000e+00 : f32
    %32 = vector.broadcast %cst_15 : f32 to vector<1x16x8xf32>
    %cst_16 = arith.constant 0.000000e+00 : f32
    %33 = vector.broadcast %cst_16 : f32 to vector<16x1x8xf32>
    %34 = vector.extract_strided_slice %31 {offsets = [0, 0, 0], sizes = [15, 16, 8], strides = [1, 1, 1]} : vector<16x16x8xf32> to vector<15x16x8xf32>
    %35 = tpu.concatenate %32, %34 in 0 : vector<1x16x8xf32>, vector<15x16x8xf32> -> vector<16x16x8xf32>
    %36 = vector.extract_strided_slice %35 {offsets = [0, 0, 0], sizes = [16, 15, 8], strides = [1, 1, 1]} : vector<16x16x8xf32> to vector<16x15x8xf32>
    %37 = tpu.concatenate %33, %36 in 1 : vector<16x1x8xf32>, vector<16x15x8xf32> -> vector<16x16x8xf32>
    %38 = vector.shape_cast %37 : vector<16x16x8xf32> to vector<256x8xf32>
    %39 = vector.shape_cast %35 : vector<16x16x8xf32> to vector<256x8xf32>
    %40 = vector.extract_strided_slice %35 {offsets = [0, 1, 0], sizes = [16, 15, 8], strides = [1, 1, 1]} : vector<16x16x8xf32> to vector<16x15x8xf32>
    %41 = tpu.concatenate %40, %33 in 1 : vector<16x15x8xf32>, vector<16x1x8xf32> -> vector<16x16x8xf32>
    %42 = vector.shape_cast %41 : vector<16x16x8xf32> to vector<256x8xf32>
    %43 = vector.extract_strided_slice %31 {offsets = [0, 0, 0], sizes = [16, 15, 8], strides = [1, 1, 1]} : vector<16x16x8xf32> to vector<16x15x8xf32>
    %44 = tpu.concatenate %33, %43 in 1 : vector<16x1x8xf32>, vector<16x15x8xf32> -> vector<16x16x8xf32>
    %45 = vector.shape_cast %44 : vector<16x16x8xf32> to vector<256x8xf32>
    %46 = vector.shape_cast %31 : vector<16x16x8xf32> to vector<256x8xf32>
    %47 = vector.extract_strided_slice %31 {offsets = [0, 1, 0], sizes = [16, 15, 8], strides = [1, 1, 1]} : vector<16x16x8xf32> to vector<16x15x8xf32>
    %48 = tpu.concatenate %47, %33 in 1 : vector<16x15x8xf32>, vector<16x1x8xf32> -> vector<16x16x8xf32>
    %49 = vector.shape_cast %48 : vector<16x16x8xf32> to vector<256x8xf32>
    %50 = vector.extract_strided_slice %31 {offsets = [1, 0, 0], sizes = [15, 16, 8], strides = [1, 1, 1]} : vector<16x16x8xf32> to vector<15x16x8xf32>
    %51 = tpu.concatenate %50, %32 in 0 : vector<15x16x8xf32>, vector<1x16x8xf32> -> vector<16x16x8xf32>
    %52 = vector.extract_strided_slice %51 {offsets = [0, 0, 0], sizes = [16, 15, 8], strides = [1, 1, 1]} : vector<16x16x8xf32> to vector<16x15x8xf32>
    %53 = tpu.concatenate %33, %52 in 1 : vector<16x1x8xf32>, vector<16x15x8xf32> -> vector<16x16x8xf32>
    %54 = vector.shape_cast %53 : vector<16x16x8xf32> to vector<256x8xf32>
    %55 = vector.shape_cast %51 : vector<16x16x8xf32> to vector<256x8xf32>
    %56 = vector.extract_strided_slice %51 {offsets = [0, 1, 0], sizes = [16, 15, 8], strides = [1, 1, 1]} : vector<16x16x8xf32> to vector<16x15x8xf32>
    %57 = tpu.concatenate %56, %33 in 1 : vector<16x15x8xf32>, vector<16x1x8xf32> -> vector<16x16x8xf32>
    %58 = vector.shape_cast %57 : vector<16x16x8xf32> to vector<256x8xf32>
    %59 = tpu.concatenate %38, %39, %42, %45, %46, %49, %54, %55, %58 in 1 : vector<256x8xf32>, vector<256x8xf32>, vector<256x8xf32>, vector<256x8xf32>, vector<256x8xf32>, vector<256x8xf32>, vector<256x8xf32>, vector<256x8xf32>, vector<256x8xf32> -> vector<256x72xf32>
    %c0_17 = arith.constant 0 : index
    %c0_18 = arith.constant 0 : index
    %60 = vector.load %arg5[%c0_17, %c0_18] : memref<72x16xf32, #tpu.memory_space<vmem>>, vector<72x16xf32>
    %cst_19 = arith.constant dense<0.000000e+00> : vector<256x16xf32>
    %61 = tpu.matmul %59, %60, %cst_19 {dimension_numbers = #tpu.dot_dimension_numbers<[1], [0], [0], [1], [0, 0, 1, 1], [], []>} : vector<256x72xf32>, vector<72x16xf32>, vector<256x16xf32> -> vector<256x16xf32>
    %c0_20 = arith.constant 0 : index
    %c0_21 = arith.constant 0 : index
    %62 = vector.load %arg6[%c0_20, %c0_21] : memref<1x16xf32, #tpu.memory_space<vmem>>, vector<1x16xf32>
    %63 = vector.broadcast %62 : vector<1x16xf32> to vector<256x16xf32>
    %64 = arith.addf %61, %63 : vector<256x16xf32>
    %c0_22 = arith.constant 0 : index
    %c0_23 = arith.constant 0 : index
    %65 = vector.load %arg7[%c0_22, %c0_23] : memref<16x16xf32, #tpu.memory_space<vmem>>, vector<16x16xf32>
    %c0_24 = arith.constant 0 : index
    %c0_25 = arith.constant 0 : index
    %66 = vector.load %arg8[%c0_24, %c0_25] : memref<1x16xf32, #tpu.memory_space<vmem>>, vector<1x16xf32>
    %c0_26 = arith.constant 0 : index
    %c0_27 = arith.constant 0 : index
    %67 = vector.load %arg9[%c0_26, %c0_27] : memref<1x16xf32, #tpu.memory_space<vmem>>, vector<1x16xf32>
    %cst_28 = arith.constant dense<0.000000e+00> : vector<16xf32>
    %68 = vector.multi_reduction <add>, %64, %cst_28 [0] : vector<256x16xf32> to vector<16xf32>
    %69 = vector.shape_cast %68 : vector<16xf32> to vector<1x16xf32>
    %cst_29 = arith.constant dense<0.000000e+00> : vector<1x16xf32>
    %70 = tpu.matmul %69, %65, %cst_29 {dimension_numbers = #tpu.dot_dimension_numbers<[1], [0], [0], [1], [0, 0, 1, 1], [], []>} : vector<1x16xf32>, vector<16x16xf32>, vector<1x16xf32> -> vector<1x16xf32>
    %71 = vector.broadcast %70 : vector<1x16xf32> to vector<256x16xf32>
    %72 = arith.subf %64, %71 : vector<256x16xf32>
    %73 = arith.mulf %72, %72 : vector<256x16xf32>
    %cst_30 = arith.constant dense<0.000000e+00> : vector<16xf32>
    %74 = vector.multi_reduction <add>, %73, %cst_30 [0] : vector<256x16xf32> to vector<16xf32>
    %75 = vector.shape_cast %74 : vector<16xf32> to vector<1x16xf32>
    %cst_31 = arith.constant dense<0.000000e+00> : vector<1x16xf32>
    %76 = tpu.matmul %75, %65, %cst_31 {dimension_numbers = #tpu.dot_dimension_numbers<[1], [0], [0], [1], [0, 0, 1, 1], [], []>} : vector<1x16xf32>, vector<16x16xf32>, vector<1x16xf32> -> vector<1x16xf32>
    %cst_32 = arith.constant 0.000000e+00 : f32
    %77 = vector.broadcast %cst_32 : f32 to vector<1x16xf32>
    %78 = arith.maximumf %76, %77 : vector<1x16xf32>
    %cst_33 = arith.constant 9.99999997E-7 : f32
    %79 = vector.broadcast %cst_33 : f32 to vector<1x16xf32>
    %80 = arith.addf %78, %79 : vector<1x16xf32>
    %81 = math.rsqrt %80 : vector<1x16xf32>
    %82 = vector.broadcast %81 : vector<1x16xf32> to vector<256x16xf32>
    %83 = arith.mulf %72, %82 : vector<256x16xf32>
    %84 = vector.broadcast %66 : vector<1x16xf32> to vector<256x16xf32>
    %85 = arith.mulf %83, %84 : vector<256x16xf32>
    %86 = vector.broadcast %67 : vector<1x16xf32> to vector<256x16xf32>
    %87 = arith.addf %85, %86 : vector<256x16xf32>
    %88 = arith.negf %87 : vector<256x16xf32>
    %89 = math.exp %88 : vector<256x16xf32>
    %cst_34 = arith.constant 1.000000e+00 : f32
    %90 = vector.broadcast %cst_34 : f32 to vector<256x16xf32>
    %91 = arith.addf %90, %89 : vector<256x16xf32>
    %92 = arith.divf %90, %91 : vector<256x16xf32>
    %93 = arith.mulf %87, %92 : vector<256x16xf32>
    %94 = vector.shape_cast %93 : vector<256x16xf32> to vector<16x16x16xf32>
    %cst_35 = arith.constant 0.000000e+00 : f32
    %95 = vector.broadcast %cst_35 : f32 to vector<1x16x16xf32>
    %cst_36 = arith.constant 0.000000e+00 : f32
    %96 = vector.broadcast %cst_36 : f32 to vector<16x1x16xf32>
    %97 = vector.extract_strided_slice %94 {offsets = [0, 0, 0], sizes = [15, 16, 16], strides = [1, 1, 1]} : vector<16x16x16xf32> to vector<15x16x16xf32>
    %98 = tpu.concatenate %95, %97 in 0 : vector<1x16x16xf32>, vector<15x16x16xf32> -> vector<16x16x16xf32>
    %99 = vector.extract_strided_slice %98 {offsets = [0, 0, 0], sizes = [16, 15, 16], strides = [1, 1, 1]} : vector<16x16x16xf32> to vector<16x15x16xf32>
    %100 = tpu.concatenate %96, %99 in 1 : vector<16x1x16xf32>, vector<16x15x16xf32> -> vector<16x16x16xf32>
    %101 = vector.shape_cast %100 : vector<16x16x16xf32> to vector<256x16xf32>
    %102 = vector.shape_cast %98 : vector<16x16x16xf32> to vector<256x16xf32>
    %103 = vector.extract_strided_slice %98 {offsets = [0, 1, 0], sizes = [16, 15, 16], strides = [1, 1, 1]} : vector<16x16x16xf32> to vector<16x15x16xf32>
    %104 = tpu.concatenate %103, %96 in 1 : vector<16x15x16xf32>, vector<16x1x16xf32> -> vector<16x16x16xf32>
    %105 = vector.shape_cast %104 : vector<16x16x16xf32> to vector<256x16xf32>
    %106 = vector.extract_strided_slice %94 {offsets = [0, 0, 0], sizes = [16, 15, 16], strides = [1, 1, 1]} : vector<16x16x16xf32> to vector<16x15x16xf32>
    %107 = tpu.concatenate %96, %106 in 1 : vector<16x1x16xf32>, vector<16x15x16xf32> -> vector<16x16x16xf32>
    %108 = vector.shape_cast %107 : vector<16x16x16xf32> to vector<256x16xf32>
    %109 = vector.shape_cast %94 : vector<16x16x16xf32> to vector<256x16xf32>
    %110 = vector.extract_strided_slice %94 {offsets = [0, 1, 0], sizes = [16, 15, 16], strides = [1, 1, 1]} : vector<16x16x16xf32> to vector<16x15x16xf32>
    %111 = tpu.concatenate %110, %96 in 1 : vector<16x15x16xf32>, vector<16x1x16xf32> -> vector<16x16x16xf32>
    %112 = vector.shape_cast %111 : vector<16x16x16xf32> to vector<256x16xf32>
    %113 = vector.extract_strided_slice %94 {offsets = [1, 0, 0], sizes = [15, 16, 16], strides = [1, 1, 1]} : vector<16x16x16xf32> to vector<15x16x16xf32>
    %114 = tpu.concatenate %113, %95 in 0 : vector<15x16x16xf32>, vector<1x16x16xf32> -> vector<16x16x16xf32>
    %115 = vector.extract_strided_slice %114 {offsets = [0, 0, 0], sizes = [16, 15, 16], strides = [1, 1, 1]} : vector<16x16x16xf32> to vector<16x15x16xf32>
    %116 = tpu.concatenate %96, %115 in 1 : vector<16x1x16xf32>, vector<16x15x16xf32> -> vector<16x16x16xf32>
    %117 = vector.shape_cast %116 : vector<16x16x16xf32> to vector<256x16xf32>
    %118 = vector.shape_cast %114 : vector<16x16x16xf32> to vector<256x16xf32>
    %119 = vector.extract_strided_slice %114 {offsets = [0, 1, 0], sizes = [16, 15, 16], strides = [1, 1, 1]} : vector<16x16x16xf32> to vector<16x15x16xf32>
    %120 = tpu.concatenate %119, %96 in 1 : vector<16x15x16xf32>, vector<16x1x16xf32> -> vector<16x16x16xf32>
    %121 = vector.shape_cast %120 : vector<16x16x16xf32> to vector<256x16xf32>
    %122 = tpu.concatenate %101, %102, %105, %108, %109, %112, %117, %118, %121 in 1 : vector<256x16xf32>, vector<256x16xf32>, vector<256x16xf32>, vector<256x16xf32>, vector<256x16xf32>, vector<256x16xf32>, vector<256x16xf32>, vector<256x16xf32>, vector<256x16xf32> -> vector<256x144xf32>
    %c0_37 = arith.constant 0 : index
    %c0_38 = arith.constant 0 : index
    %123 = vector.load %arg10[%c0_37, %c0_38] : memref<144x16xf32, #tpu.memory_space<vmem>>, vector<144x16xf32>
    %cst_39 = arith.constant dense<0.000000e+00> : vector<256x16xf32>
    %124 = tpu.matmul %122, %123, %cst_39 {dimension_numbers = #tpu.dot_dimension_numbers<[1], [0], [0], [1], [0, 0, 1, 1], [], []>} : vector<256x144xf32>, vector<144x16xf32>, vector<256x16xf32> -> vector<256x16xf32>
    %c0_40 = arith.constant 0 : index
    %c0_41 = arith.constant 0 : index
    %125 = vector.load %arg11[%c0_40, %c0_41] : memref<1x16xf32, #tpu.memory_space<vmem>>, vector<1x16xf32>
    %126 = vector.broadcast %125 : vector<1x16xf32> to vector<256x16xf32>
    %127 = arith.addf %124, %126 : vector<256x16xf32>
    %c0_42 = arith.constant 0 : index
    %c0_43 = arith.constant 0 : index
    %128 = vector.load %arg12[%c0_42, %c0_43] : memref<8x16xf32, #tpu.memory_space<vmem>>, vector<8x16xf32>
    %cst_44 = arith.constant dense<0.000000e+00> : vector<256x16xf32>
    %129 = tpu.matmul %1, %128, %cst_44 {dimension_numbers = #tpu.dot_dimension_numbers<[1], [0], [0], [1], [0, 0, 1, 1], [], []>} : vector<256x8xf32>, vector<8x16xf32>, vector<256x16xf32> -> vector<256x16xf32>
    %c0_45 = arith.constant 0 : index
    %c0_46 = arith.constant 0 : index
    %130 = vector.load %arg13[%c0_45, %c0_46] : memref<1x16xf32, #tpu.memory_space<vmem>>, vector<1x16xf32>
    %131 = vector.broadcast %130 : vector<1x16xf32> to vector<256x16xf32>
    %132 = arith.addf %129, %131 : vector<256x16xf32>
    %133 = arith.addf %132, %127 : vector<256x16xf32>
    %cst_47 = arith.constant 1.000000e+00 : f32
    %134 = vector.broadcast %cst_47 : f32 to vector<256x16xf32>
    %135 = arith.mulf %133, %134 : vector<256x16xf32>
    %136 = vector.shape_cast %135 : vector<256x16xf32> to vector<16x16x16xf32>
    %cst_48 = arith.constant 0.000000e+00 : f32
    %137 = vector.broadcast %cst_48 : f32 to vector<1x16x16xf32>
    %138 = tpu.concatenate %137, %136, %137 in 0 : vector<1x16x16xf32>, vector<16x16x16xf32>, vector<1x16x16xf32> -> vector<18x16x16xf32>
    %139 = vector.shape_cast %138 : vector<18x16x16xf32> to vector<9x2x16x16xf32>
    %cst_49 = arith.constant 0.000000e+00 : f32
    %140 = vector.broadcast %cst_49 : f32 to vector<8x1x16xf32>
    %141 = vector.extract_strided_slice %139 {offsets = [0, 0, 0, 0], sizes = [8, 1, 16, 16], strides = [1, 1, 1, 1]} : vector<9x2x16x16xf32> to vector<8x1x16x16xf32>
    %142 = vector.shape_cast %141 : vector<8x1x16x16xf32> to vector<8x16x16xf32>
    %143 = vector.shape_cast %142 : vector<8x16x16xf32> to vector<8x8x2x16xf32>
    %144 = vector.extract_strided_slice %143 {offsets = [0, 0, 0, 0], sizes = [8, 8, 1, 16], strides = [1, 1, 1, 1]} : vector<8x8x2x16xf32> to vector<8x8x1x16xf32>
    %145 = vector.shape_cast %144 : vector<8x8x1x16xf32> to vector<8x8x16xf32>
    %146 = vector.extract_strided_slice %143 {offsets = [0, 0, 1, 0], sizes = [8, 8, 1, 16], strides = [1, 1, 1, 1]} : vector<8x8x2x16xf32> to vector<8x8x1x16xf32>
    %147 = vector.shape_cast %146 : vector<8x8x1x16xf32> to vector<8x8x16xf32>
    %148 = vector.extract_strided_slice %147 {offsets = [0, 0, 0], sizes = [8, 7, 16], strides = [1, 1, 1]} : vector<8x8x16xf32> to vector<8x7x16xf32>
    %149 = tpu.concatenate %140, %148 in 1 : vector<8x1x16xf32>, vector<8x7x16xf32> -> vector<8x8x16xf32>
    %150 = vector.shape_cast %149 : vector<8x8x16xf32> to vector<64x16xf32>
    %151 = vector.shape_cast %145 : vector<8x8x16xf32> to vector<64x16xf32>
    %152 = vector.shape_cast %147 : vector<8x8x16xf32> to vector<64x16xf32>
    %153 = vector.extract_strided_slice %139 {offsets = [0, 1, 0, 0], sizes = [8, 1, 16, 16], strides = [1, 1, 1, 1]} : vector<9x2x16x16xf32> to vector<8x1x16x16xf32>
    %154 = vector.shape_cast %153 : vector<8x1x16x16xf32> to vector<8x16x16xf32>
    %155 = vector.shape_cast %154 : vector<8x16x16xf32> to vector<8x8x2x16xf32>
    %156 = vector.extract_strided_slice %155 {offsets = [0, 0, 0, 0], sizes = [8, 8, 1, 16], strides = [1, 1, 1, 1]} : vector<8x8x2x16xf32> to vector<8x8x1x16xf32>
    %157 = vector.shape_cast %156 : vector<8x8x1x16xf32> to vector<8x8x16xf32>
    %158 = vector.extract_strided_slice %155 {offsets = [0, 0, 1, 0], sizes = [8, 8, 1, 16], strides = [1, 1, 1, 1]} : vector<8x8x2x16xf32> to vector<8x8x1x16xf32>
    %159 = vector.shape_cast %158 : vector<8x8x1x16xf32> to vector<8x8x16xf32>
    %160 = vector.extract_strided_slice %159 {offsets = [0, 0, 0], sizes = [8, 7, 16], strides = [1, 1, 1]} : vector<8x8x16xf32> to vector<8x7x16xf32>
    %161 = tpu.concatenate %140, %160 in 1 : vector<8x1x16xf32>, vector<8x7x16xf32> -> vector<8x8x16xf32>
    %162 = vector.shape_cast %161 : vector<8x8x16xf32> to vector<64x16xf32>
    %163 = vector.shape_cast %157 : vector<8x8x16xf32> to vector<64x16xf32>
    %164 = vector.shape_cast %159 : vector<8x8x16xf32> to vector<64x16xf32>
    %165 = vector.extract_strided_slice %139 {offsets = [1, 0, 0, 0], sizes = [8, 1, 16, 16], strides = [1, 1, 1, 1]} : vector<9x2x16x16xf32> to vector<8x1x16x16xf32>
    %166 = vector.shape_cast %165 : vector<8x1x16x16xf32> to vector<8x16x16xf32>
    %167 = vector.shape_cast %166 : vector<8x16x16xf32> to vector<8x8x2x16xf32>
    %168 = vector.extract_strided_slice %167 {offsets = [0, 0, 0, 0], sizes = [8, 8, 1, 16], strides = [1, 1, 1, 1]} : vector<8x8x2x16xf32> to vector<8x8x1x16xf32>
    %169 = vector.shape_cast %168 : vector<8x8x1x16xf32> to vector<8x8x16xf32>
    %170 = vector.extract_strided_slice %167 {offsets = [0, 0, 1, 0], sizes = [8, 8, 1, 16], strides = [1, 1, 1, 1]} : vector<8x8x2x16xf32> to vector<8x8x1x16xf32>
    %171 = vector.shape_cast %170 : vector<8x8x1x16xf32> to vector<8x8x16xf32>
    %172 = vector.extract_strided_slice %171 {offsets = [0, 0, 0], sizes = [8, 7, 16], strides = [1, 1, 1]} : vector<8x8x16xf32> to vector<8x7x16xf32>
    %173 = tpu.concatenate %140, %172 in 1 : vector<8x1x16xf32>, vector<8x7x16xf32> -> vector<8x8x16xf32>
    %174 = vector.shape_cast %173 : vector<8x8x16xf32> to vector<64x16xf32>
    %175 = vector.shape_cast %169 : vector<8x8x16xf32> to vector<64x16xf32>
    %176 = vector.shape_cast %171 : vector<8x8x16xf32> to vector<64x16xf32>
    %177 = tpu.concatenate %150, %151, %152, %162, %163, %164, %174, %175, %176 in 1 : vector<64x16xf32>, vector<64x16xf32>, vector<64x16xf32>, vector<64x16xf32>, vector<64x16xf32>, vector<64x16xf32>, vector<64x16xf32>, vector<64x16xf32>, vector<64x16xf32> -> vector<64x144xf32>
    %c0_50 = arith.constant 0 : index
    %c0_51 = arith.constant 0 : index
    %178 = vector.load %arg14[%c0_50, %c0_51] : memref<144x16xf32, #tpu.memory_space<vmem>>, vector<144x16xf32>
    %cst_52 = arith.constant dense<0.000000e+00> : vector<64x16xf32>
    %179 = tpu.matmul %177, %178, %cst_52 {dimension_numbers = #tpu.dot_dimension_numbers<[1], [0], [0], [1], [0, 0, 1, 1], [], []>} : vector<64x144xf32>, vector<144x16xf32>, vector<64x16xf32> -> vector<64x16xf32>
    %c0_53 = arith.constant 0 : index
    %c0_54 = arith.constant 0 : index
    %180 = vector.load %arg15[%c0_53, %c0_54] : memref<1x16xf32, #tpu.memory_space<vmem>>, vector<1x16xf32>
    %181 = vector.broadcast %180 : vector<1x16xf32> to vector<64x16xf32>
    %182 = arith.addf %179, %181 : vector<64x16xf32>
    %183 = vector.shape_cast %182 : vector<64x16xf32> to vector<1x8x8x16xf32>
    %c0_55 = arith.constant 0 : index
    %c0_56 = arith.constant 0 : index
    %c0_57 = arith.constant 0 : index
    %c0_58 = arith.constant 0 : index
    %184 = vector.load %arg16[%c0_55, %c0_56, %c0_57, %c0_58] : memref<1x8x8x16xf32, #tpu.memory_space<vmem>>, vector<1x8x8x16xf32>
    tpu.vector_store %arg16[%c0_55, %c0_56, %c0_57, %c0_58], %183 {strides = array<i32>} : memref<1x8x8x16xf32, #tpu.memory_space<vmem>>, vector<1x8x8x16xf32>,
    return
  }
  func.func @transform_0(%arg0: i32) -> (i32, i32, i32, i32) {
    %c0_i32 = arith.constant 0 : i32
    %c0_i32_0 = arith.constant 0 : i32
    %c0_i32_1 = arith.constant 0 : i32
    %c0_i32_2 = arith.constant 0 : i32
    return %arg0, %c0_i32, %c0_i32_0, %c0_i32_1 : i32, i32, i32, i32
  }
  func.func @transform_1(%arg0: i32) -> (i32, i32) {
    %c0_i32 = arith.constant 0 : i32
    %c0_i32_0 = arith.constant 0 : i32
    %c0_i32_1 = arith.constant 0 : i32
    return %c0_i32, %c0_i32_0 : i32, i32
  }
  func.func @transform_2(%arg0: i32) -> (i32, i32) {
    %c0_i32 = arith.constant 0 : i32
    %c0_i32_0 = arith.constant 0 : i32
    %c0_i32_1 = arith.constant 0 : i32
    return %c0_i32, %c0_i32_0 : i32, i32
  }
  func.func @transform_3(%arg0: i32) -> (i32, i32) {
    %c0_i32 = arith.constant 0 : i32
    %c0_i32_0 = arith.constant 0 : i32
    %c0_i32_1 = arith.constant 0 : i32
    return %c0_i32, %c0_i32_0 : i32, i32
  }
  func.func @transform_4(%arg0: i32) -> (i32, i32) {
    %c0_i32 = arith.constant 0 : i32
    %c0_i32_0 = arith.constant 0 : i32
    %c0_i32_1 = arith.constant 0 : i32
    return %c0_i32, %c0_i32_0 : i32, i32
  }
  func.func @transform_5(%arg0: i32) -> (i32, i32) {
    %c0_i32 = arith.constant 0 : i32
    %c0_i32_0 = arith.constant 0 : i32
    %c0_i32_1 = arith.constant 0 : i32
    return %c0_i32, %c0_i32_0 : i32, i32
  }
  func.func @transform_6(%arg0: i32) -> (i32, i32) {
    %c0_i32 = arith.constant 0 : i32
    %c0_i32_0 = arith.constant 0 : i32
    %c0_i32_1 = arith.constant 0 : i32
    return %c0_i32, %c0_i32_0 : i32, i32
  }
  func.func @transform_7(%arg0: i32) -> (i32, i32) {
    %c0_i32 = arith.constant 0 : i32
    %c0_i32_0 = arith.constant 0 : i32
    %c0_i32_1 = arith.constant 0 : i32
    return %c0_i32, %c0_i32_0 : i32, i32
  }
  func.func @transform_8(%arg0: i32) -> (i32, i32) {
    %c0_i32 = arith.constant 0 : i32
    %c0_i32_0 = arith.constant 0 : i32
    %c0_i32_1 = arith.constant 0 : i32
    return %c0_i32, %c0_i32_0 : i32, i32
  }
  func.func @transform_9(%arg0: i32) -> (i32, i32) {
    %c0_i32 = arith.constant 0 : i32
    %c0_i32_0 = arith.constant 0 : i32
    %c0_i32_1 = arith.constant 0 : i32
    return %c0_i32, %c0_i32_0 : i32, i32
  }
  func.func @transform_10(%arg0: i32) -> (i32, i32) {
    %c0_i32 = arith.constant 0 : i32
    %c0_i32_0 = arith.constant 0 : i32
    %c0_i32_1 = arith.constant 0 : i32
    return %c0_i32, %c0_i32_0 : i32, i32
  }
  func.func @transform_11(%arg0: i32) -> (i32, i32) {
    %c0_i32 = arith.constant 0 : i32
    %c0_i32_0 = arith.constant 0 : i32
    %c0_i32_1 = arith.constant 0 : i32
    return %c0_i32, %c0_i32_0 : i32, i32
  }
  func.func @transform_12(%arg0: i32) -> (i32, i32) {
    %c0_i32 = arith.constant 0 : i32
    %c0_i32_0 = arith.constant 0 : i32
    %c0_i32_1 = arith.constant 0 : i32
    return %c0_i32, %c0_i32_0 : i32, i32
  }
  func.func @transform_13(%arg0: i32) -> (i32, i32) {
    %c0_i32 = arith.constant 0 : i32
    %c0_i32_0 = arith.constant 0 : i32
    %c0_i32_1 = arith.constant 0 : i32
    return %c0_i32, %c0_i32_0 : i32, i32
  }
  func.func @transform_14(%arg0: i32) -> (i32, i32) {
    %c0_i32 = arith.constant 0 : i32
    %c0_i32_0 = arith.constant 0 : i32
    %c0_i32_1 = arith.constant 0 : i32
    return %c0_i32, %c0_i32_0 : i32, i32
  }
  func.func @transform_15(%arg0: i32) -> (i32, i32, i32, i32) {
    %c0_i32 = arith.constant 0 : i32
    %c0_i32_0 = arith.constant 0 : i32
    %c0_i32_1 = arith.constant 0 : i32
    %c0_i32_2 = arith.constant 0 : i32
    return %arg0, %c0_i32, %c0_i32_0, %c0_i32_1 : i32, i32, i32, i32
  }
}

</mosaic_0001>

<llo_original>
// kernel: down_encoder_block2d.1
$region0: #{down_encoder_block2d.1}
  #allocation0 [shape = 'u32[]', space=smem, size = 0x4, offset = 0x4, fixed_abs, tag = 'smem constant byte address 0x4 - core index']
  #allocation1 [shape = 'u32[72,128]{1,0:T(1,128)}', space=vmem, size = 0x9000, scoped, tag = 'internal scratch']
  %s0 = inlined_call_operand.vmem [shape: f32[2,16,16,8], index: 0, kind: input, shape index: {}]
  %s1 = inlined_call_operand.vmem [shape: f32[8,8], index: 1, kind: input, shape index: {}]
  %s2 = inlined_call_operand.vmem [shape: f32[1,8], index: 2, kind: input, shape index: {}]
  %s3 = inlined_call_operand.vmem [shape: f32[1,8], index: 3, kind: input, shape index: {}]
  %s4 = inlined_call_operand.vmem [shape: f32[72,16], index: 4, kind: input, shape index: {}]
  %s5 = inlined_call_operand.vmem [shape: f32[1,16], index: 5, kind: input, shape index: {}]
  %s6 = inlined_call_operand.vmem [shape: f32[16,16], index: 6, kind: input, shape index: {}]
  %s7 = inlined_call_operand.vmem [shape: f32[1,16], index: 7, kind: input, shape index: {}]
  %s8 = inlined_call_operand.vmem [shape: f32[1,16], index: 8, kind: input, shape index: {}]
  %s9 = inlined_call_operand.vmem [shape: f32[144,16], index: 9, kind: input, shape index: {}]
  %s10 = inlined_call_operand.vmem [shape: f32[1,16], index: 10, kind: input, shape index: {}]
  %s11 = inlined_call_operand.vmem [shape: f32[8,16], index: 11, kind: input, shape index: {}]
  %s12 = inlined_call_operand.vmem [shape: f32[1,16], index: 12, kind: input, shape index: {}]
  %s13 = inlined_call_operand.vmem [shape: f32[144,16], index: 13, kind: input, shape index: {}]
  %s14 = inlined_call_operand.vmem [shape: f32[1,16], index: 14, kind: input, shape index: {}]
  %s15 = inlined_call_operand.hbm [shape: f32[2,8,8,16], index: 15, kind: output, shape index: {}]
  %s16 = sld [smem:[#allocation0]]
  $region93: #{down_encoder_block2d.1} parent=0
    _
  %s18 = ssub.s32 1, %s16
  %s19 = scalar_select 0, %s18, %s16
  $region1: #{down_encoder_block2d.1} parent=0
    #allocation2 [shape = 'u8[65536]{0}', space=vmem, size = 0x10000, scoped, tag = 'output window, operand 0']
    #allocation3 [shape = 's32[2]{0}', space=sflag, size = 0x8, scoped, tag = 'scoped memory for down_encoder_block2d.1']
    %20 = vsyncpa [#allocation3], 0
    %s21 = scalar_lea.sflag [#allocation3], 1
    %22 = vsyncpa %s21, 0
    loop: start=0, step=1, limit=4
    $region2: #{down_encoder_block2d.1} parent=1 // loop_pre_header
      _
    $region3: #{down_encoder_block2d.1} parent=1 // loop_header
      %s24 = sphi 0, %s28
      %p25 = scmp.ge.s32.totalorder %s24, 4
      %s34 = sphi 0, %s36
      %s37 = sphi 0, %s34
      %s38 = sphi 0, %s37
      %s54 = sphi 0, %s38
      %s58 = sphi 0, %s58
      %s60 = sphi 0, %s58
      %s61 = sphi 0, %s60
      %s75 = sphi 0, %s61
      %s79 = sphi 0, %s79
      %s81 = sphi 0, %s79
      %s82 = sphi 0, %s81
      %s96 = sphi 0, %s82
      %s100 = sphi 0, %s100
      %s102 = sphi 0, %s100
      %s103 = sphi 0, %s102
      %s117 = sphi 0, %s103
      %s121 = sphi 0, %s121
      %s123 = sphi 0, %s121
      %s124 = sphi 0, %s123
      %s138 = sphi 0, %s124
      %s142 = sphi 0, %s142
      %s144 = sphi 0, %s142
      %s145 = sphi 0, %s144
      %s159 = sphi 0, %s145
      %s163 = sphi 0, %s163
      %s165 = sphi 0, %s163
      %s166 = sphi 0, %s165
      %s180 = sphi 0, %s166
      %s184 = sphi 0, %s184
      %s186 = sphi 0, %s184
      %s187 = sphi 0, %s186
      %s201 = sphi 0, %s187
      %s205 = sphi 0, %s205
      %s207 = sphi 0, %s205
      %s208 = sphi 0, %s207
      %s222 = sphi 0, %s208
      %s226 = sphi 0, %s226
      %s228 = sphi 0, %s226
      %s229 = sphi 0, %s228
      %s243 = sphi 0, %s229
      %s247 = sphi 0, %s247
      %s249 = sphi 0, %s247
      %s250 = sphi 0, %s249
      %s264 = sphi 0, %s250
      %s268 = sphi 0, %s268
      %s270 = sphi 0, %s268
      %s271 = sphi 0, %s270
      %s285 = sphi 0, %s271
      %s289 = sphi 0, %s289
      %s291 = sphi 0, %s289
      %s292 = sphi 0, %s291
      %s306 = sphi 0, %s292
      %s310 = sphi 0, %s310
      %s312 = sphi 0, %s310
      %s313 = sphi 0, %s312
      %s327 = sphi 0, %s313
      %s331 = sphi 0, %s331
      %s333 = sphi 0, %s331
      %s334 = sphi 0, %s333
      %s348 = sphi 0, %s334
      %s354 = sphi 0, %s356
      %s357 = sphi 0, %s354
      %s358 = sphi 0, %s357
      %s374 = sphi 0, %s358
    $region4: #{down_encoder_block2d.1} parent=1 // loop_header_branch
      %27 = sbr.rel (%p25) target = $region8
    $region5: #{down_encoder_block2d.1} parent=1 // loop_body
      %s29 = ssub.s32 %s24, 1
      %s30 = ssub.s32 %s24, 2
      %s31 = sadd.s32 %s24, 1
      %s32 = ssub.s32 %s24, %s31
      %p33 = scmp.eq.s32.totalorder %s32, 0
      %s35 = sadd.s32 %s34, 1
      %s36 = scalar_select %p33, %s34, %s35
      %p39 = pneg %p33
      %p40 = scmp.eq.s32.totalorder %s24, 1
      %p41 = por %p39, %p40
      %p42 = scmp.ne.s32.totalorder %s34, %s37
      %p43 = scmp.eq.s32.totalorder %s24, 0
      %p44 = por %p42, %p43
      %p45 = scmp.ne.s32.totalorder %s34, %s37
      %p46 = scmp.eq.s32.totalorder %s29, 1
      %p47 = por %p45, %p46
      %p48 = scmp.ne.s32.totalorder %s37, %s38
      %p49 = scmp.eq.s32.totalorder %s29, 0
      %p50 = por %p48, %p49
      %p51 = scmp.ne.s32.totalorder %s37, %s38
      %p52 = scmp.eq.s32.totalorder %s30, 1
      %p53 = por %p51, %p52
      %p55 = scmp.ne.s32.totalorder %s38, %s54
      %p56 = scmp.eq.s32.totalorder %s30, 0
      %p57 = por %p55, %p56
      %s59 = sadd.s32 %s58, 1
      %p62 = scmp.eq.s32.totalorder %s24, 1
      %p63 = scmp.ne.s32.totalorder %s58, %s60
      %p64 = scmp.eq.s32.totalorder %s24, 0
      %p65 = por %p63, %p64
      %p66 = scmp.ne.s32.totalorder %s58, %s60
      %p67 = scmp.eq.s32.totalorder %s29, 1
      %p68 = por %p66, %p67
      %p69 = scmp.ne.s32.totalorder %s60, %s61
      %p70 = scmp.eq.s32.totalorder %s29, 0
      %p71 = por %p69, %p70
      %p72 = scmp.ne.s32.totalorder %s60, %s61
      %p73 = scmp.eq.s32.totalorder %s30, 1
      %p74 = por %p72, %p73
      %p76 = scmp.ne.s32.totalorder %s61, %s75
      %p77 = scmp.eq.s32.totalorder %s30, 0
      %p78 = por %p76, %p77
      %s80 = sadd.s32 %s79, 1
      %p83 = scmp.eq.s32.totalorder %s24, 1
      %p84 = scmp.ne.s32.totalorder %s79, %s81
      %p85 = scmp.eq.s32.totalorder %s24, 0
      %p86 = por %p84, %p85
      %p87 = scmp.ne.s32.totalorder %s79, %s81
      %p88 = scmp.eq.s32.totalorder %s29, 1
      %p89 = por %p87, %p88
      %p90 = scmp.ne.s32.totalorder %s81, %s82
      %p91 = scmp.eq.s32.totalorder %s29, 0
      %p92 = por %p90, %p91
      %p93 = scmp.ne.s32.totalorder %s81, %s82
      %p94 = scmp.eq.s32.totalorder %s30, 1
      %p95 = por %p93, %p94
      %p97 = scmp.ne.s32.totalorder %s82, %s96
      %p98 = scmp.eq.s32.totalorder %s30, 0
      %p99 = por %p97, %p98
      %s101 = sadd.s32 %s100, 1
      %p104 = scmp.eq.s32.totalorder %s24, 1
      %p105 = scmp.ne.s32.totalorder %s100, %s102
      %p106 = scmp.eq.s32.totalorder %s24, 0
      %p107 = por %p105, %p106
      %p108 = scmp.ne.s32.totalorder %s100, %s102
      %p109 = scmp.eq.s32.totalorder %s29, 1
      %p110 = por %p108, %p109
      %p111 = scmp.ne.s32.totalorder %s102, %s103
      %p112 = scmp.eq.s32.totalorder %s29, 0
      %p113 = por %p111, %p112
      %p114 = scmp.ne.s32.totalorder %s102, %s103
      %p115 = scmp.eq.s32.totalorder %s30, 1
      %p116 = por %p114, %p115
      %p118 = scmp.ne.s32.totalorder %s103, %s117
      %p119 = scmp.eq.s32.totalorder %s30, 0
      %p120 = por %p118, %p119
      %s122 = sadd.s32 %s121, 1
      %p125 = scmp.eq.s32.totalorder %s24, 1
      %p126 = scmp.ne.s32.totalorder %s121, %s123
      %p127 = scmp.eq.s32.totalorder %s24, 0
      %p128 = por %p126, %p127
      %p129 = scmp.ne.s32.totalorder %s121, %s123
      %p130 = scmp.eq.s32.totalorder %s29, 1
      %p131 = por %p129, %p130
      %p132 = scmp.ne.s32.totalorder %s123, %s124
      %p133 = scmp.eq.s32.totalorder %s29, 0
      %p134 = por %p132, %p133
      %p135 = scmp.ne.s32.totalorder %s123, %s124
      %p136 = scmp.eq.s32.totalorder %s30, 1
      %p137 = por %p135, %p136
      %p139 = scmp.ne.s32.totalorder %s124, %s138
      %p140 = scmp.eq.s32.totalorder %s30, 0
      %p141 = por %p139, %p140
      %s143 = sadd.s32 %s142, 1
      %p146 = scmp.eq.s32.totalorder %s24, 1
      %p147 = scmp.ne.s32.totalorder %s142, %s144
      %p148 = scmp.eq.s32.totalorder %s24, 0
      %p149 = por %p147, %p148
      %p150 = scmp.ne.s32.totalorder %s142, %s144
      %p151 = scmp.eq.s32.totalorder %s29, 1
      %p152 = por %p150, %p151
      %p153 = scmp.ne.s32.totalorder %s144, %s145
      %p154 = scmp.eq.s32.totalorder %s29, 0
      %p155 = por %p153, %p154
      %p156 = scmp.ne.s32.totalorder %s144, %s145
      %p157 = scmp.eq.s32.totalorder %s30, 1
      %p158 = por %p156, %p157
      %p160 = scmp.ne.s32.totalorder %s145, %s159
      %p161 = scmp.eq.s32.totalorder %s30, 0
      %p162 = por %p160, %p161
      %s164 = sadd.s32 %s163, 1
      %p167 = scmp.eq.s32.totalorder %s24, 1
      %p168 = scmp.ne.s32.totalorder %s163, %s165
      %p169 = scmp.eq.s32.totalorder %s24, 0
      %p170 = por %p168, %p169
      %p171 = scmp.ne.s32.totalorder %s163, %s165
      %p172 = scmp.eq.s32.totalorder %s29, 1
      %p173 = por %p171, %p172
      %p174 = scmp.ne.s32.totalorder %s165, %s166
      %p175 = scmp.eq.s32.totalorder %s29, 0
      %p176 = por %p174, %p175
      %p177 = scmp.ne.s32.totalorder %s165, %s166
      %p178 = scmp.eq.s32.totalorder %s30, 1
      %p179 = por %p177, %p178
      %p181 = scmp.ne.s32.totalorder %s166, %s180
      %p182 = scmp.eq.s32.totalorder %s30, 0
      %p183 = por %p181, %p182
      %s185 = sadd.s32 %s184, 1
      %p188 = scmp.eq.s32.totalorder %s24, 1
      %p189 = scmp.ne.s32.totalorder %s184, %s186
      %p190 = scmp.eq.s32.totalorder %s24, 0
      %p191 = por %p189, %p190
      %p192 = scmp.ne.s32.totalorder %s184, %s186
      %p193 = scmp.eq.s32.totalorder %s29, 1
      %p194 = por %p192, %p193
      %p195 = scmp.ne.s32.totalorder %s186, %s187
      %p196 = scmp.eq.s32.totalorder %s29, 0
      %p197 = por %p195, %p196
      %p198 = scmp.ne.s32.totalorder %s186, %s187
      %p199 = scmp.eq.s32.totalorder %s30, 1
      %p200 = por %p198, %p199
      %p202 = scmp.ne.s32.totalorder %s187, %s201
      %p203 = scmp.eq.s32.totalorder %s30, 0
      %p204 = por %p202, %p203
      %s206 = sadd.s32 %s205, 1
      %p209 = scmp.eq.s32.totalorder %s24, 1
      %p210 = scmp.ne.s32.totalorder %s205, %s207
      %p211 = scmp.eq.s32.totalorder %s24, 0
      %p212 = por %p210, %p211
      %p213 = scmp.ne.s32.totalorder %s205, %s207
      %p214 = scmp.eq.s32.totalorder %s29, 1
      %p215 = por %p213, %p214
      %p216 = scmp.ne.s32.totalorder %s207, %s208
      %p217 = scmp.eq.s32.totalorder %s29, 0
      %p218 = por %p216, %p217
      %p219 = scmp.ne.s32.totalorder %s207, %s208
      %p220 = scmp.eq.s32.totalorder %s30, 1
      %p221 = por %p219, %p220
      %p223 = scmp.ne.s32.totalorder %s208, %s222
      %p224 = scmp.eq.s32.totalorder %s30, 0
      %p225 = por %p223, %p224
      %s227 = sadd.s32 %s226, 1
      %p230 = scmp.eq.s32.totalorder %s24, 1
      %p231 = scmp.ne.s32.totalorder %s226, %s228
      %p232 = scmp.eq.s32.totalorder %s24, 0
      %p233 = por %p231, %p232
      %p234 = scmp.ne.s32.totalorder %s226, %s228
      %p235 = scmp.eq.s32.totalorder %s29, 1
      %p236 = por %p234, %p235
      %p237 = scmp.ne.s32.totalorder %s228, %s229
      %p238 = scmp.eq.s32.totalorder %s29, 0
      %p239 = por %p237, %p238
      %p240 = scmp.ne.s32.totalorder %s228, %s229
      %p241 = scmp.eq.s32.totalorder %s30, 1
      %p242 = por %p240, %p241
      %p244 = scmp.ne.s32.totalorder %s229, %s243
      %p245 = scmp.eq.s32.totalorder %s30, 0
      %p246 = por %p244, %p245
      %s248 = sadd.s32 %s247, 1
      %p251 = scmp.eq.s32.totalorder %s24, 1
      %p252 = scmp.ne.s32.totalorder %s247, %s249
      %p253 = scmp.eq.s32.totalorder %s24, 0
      %p254 = por %p252, %p253
      %p255 = scmp.ne.s32.totalorder %s247, %s249
      %p256 = scmp.eq.s32.totalorder %s29, 1
      %p257 = por %p255, %p256
      %p258 = scmp.ne.s32.totalorder %s249, %s250
      %p259 = scmp.eq.s32.totalorder %s29, 0
      %p260 = por %p258, %p259
      %p261 = scmp.ne.s32.totalorder %s249, %s250
      %p262 = scmp.eq.s32.totalorder %s30, 1
      %p263 = por %p261, %p262
      %p265 = scmp.ne.s32.totalorder %s250, %s264
      %p266 = scmp.eq.s32.totalorder %s30, 0
      %p267 = por %p265, %p266
      %s269 = sadd.s32 %s268, 1
      %p272 = scmp.eq.s32.totalorder %s24, 1
      %p273 = scmp.ne.s32.totalorder %s268, %s270
      %p274 = scmp.eq.s32.totalorder %s24, 0
      %p275 = por %p273, %p274
      %p276 = scmp.ne.s32.totalorder %s268, %s270
      %p277 = scmp.eq.s32.totalorder %s29, 1
      %p278 = por %p276, %p277
      %p279 = scmp.ne.s32.totalorder %s270, %s271
      %p280 = scmp.eq.s32.totalorder %s29, 0
      %p281 = por %p279, %p280
      %p282 = scmp.ne.s32.totalorder %s270, %s271
      %p283 = scmp.eq.s32.totalorder %s30, 1
      %p284 = por %p282, %p283
      %p286 = scmp.ne.s32.totalorder %s271, %s285
      %p287 = scmp.eq.s32.totalorder %s30, 0
      %p288 = por %p286, %p287
      %s290 = sadd.s32 %s289, 1
      %p293 = scmp.eq.s32.totalorder %s24, 1
      %p294 = scmp.ne.s32.totalorder %s289, %s291
      %p295 = scmp.eq.s32.totalorder %s24, 0
      %p296 = por %p294, %p295
      %p297 = scmp.ne.s32.totalorder %s289, %s291
      %p298 = scmp.eq.s32.totalorder %s29, 1
      %p299 = por %p297, %p298
      %p300 = scmp.ne.s32.totalorder %s291, %s292
      %p301 = scmp.eq.s32.totalorder %s29, 0
      %p302 = por %p300, %p301
      %p303 = scmp.ne.s32.totalorder %s291, %s292
      %p304 = scmp.eq.s32.totalorder %s30, 1
      %p305 = por %p303, %p304
      %p307 = scmp.ne.s32.totalorder %s292, %s306
      %p308 = scmp.eq.s32.totalorder %s30, 0
      %p309 = por %p307, %p308
      %s311 = sadd.s32 %s310, 1
      %p314 = scmp.eq.s32.totalorder %s24, 1
      %p315 = scmp.ne.s32.totalorder %s310, %s312
      %p316 = scmp.eq.s32.totalorder %s24, 0
      %p317 = por %p315, %p316
      %p318 = scmp.ne.s32.totalorder %s310, %s312
      %p319 = scmp.eq.s32.totalorder %s29, 1
      %p320 = por %p318, %p319
      %p321 = scmp.ne.s32.totalorder %s312, %s313
      %p322 = scmp.eq.s32.totalorder %s29, 0
      %p323 = por %p321, %p322
      %p324 = scmp.ne.s32.totalorder %s312, %s313
      %p325 = scmp.eq.s32.totalorder %s30, 1
      %p326 = por %p324, %p325
      %p328 = scmp.ne.s32.totalorder %s313, %s327
      %p329 = scmp.eq.s32.totalorder %s30, 0
      %p330 = por %p328, %p329
      %s332 = sadd.s32 %s331, 1
      %p335 = scmp.eq.s32.totalorder %s24, 1
      %p336 = scmp.ne.s32.totalorder %s331, %s333
      %p337 = scmp.eq.s32.totalorder %s24, 0
      %p338 = por %p336, %p337
      %p339 = scmp.ne.s32.totalorder %s331, %s333
      %p340 = scmp.eq.s32.totalorder %s29, 1
      %p341 = por %p339, %p340
      %p342 = scmp.ne.s32.totalorder %s333, %s334
      %p343 = scmp.eq.s32.totalorder %s29, 0
      %p344 = por %p342, %p343
      %p345 = scmp.ne.s32.totalorder %s333, %s334
      %p346 = scmp.eq.s32.totalorder %s30, 1
      %p347 = por %p345, %p346
      %p349 = scmp.ne.s32.totalorder %s334, %s348
      %p350 = scmp.eq.s32.totalorder %s30, 0
      %p351 = por %p349, %p350
      %s352 = ssub.s32 %s24, %s31
      %p353 = scmp.eq.s32.totalorder %s352, 0
      %s355 = sadd.s32 %s354, 1
      %s356 = scalar_select %p353, %s354, %s355
      %p359 = pneg %p353
      %p360 = scmp.eq.s32.totalorder %s24, 1
      %p361 = por %p359, %p360
      %p362 = scmp.ne.s32.totalorder %s354, %s357
      %p363 = scmp.eq.s32.totalorder %s24, 0
      %p364 = por %p362, %p363
      %p365 = scmp.ne.s32.totalorder %s354, %s357
      %p366 = scmp.eq.s32.totalorder %s29, 1
      %p367 = por %p365, %p366
      %p368 = scmp.ne.s32.totalorder %s357, %s358
      %p369 = scmp.eq.s32.totalorder %s29, 0
      %p370 = por %p368, %p369
      %p371 = scmp.ne.s32.totalorder %s357, %s358
      %p372 = scmp.eq.s32.totalorder %s30, 1
      %p373 = por %p371, %p372
      %p375 = scmp.ne.s32.totalorder %s358, %s374
      %p376 = scmp.eq.s32.totalorder %s30, 0
      %p377 = por %p375, %p376
      %p378 = scmp.le.s32.totalorder 1, %s24
      %p379 = scmp.lt.s32.totalorder %s24, 3
      %p380 = pnand %p378, %p379
      %p381 = pneg %p380
      // Predicated region
      $region9: #{down_encoder_block2d.1} parent=5 // pred_check
        _
      $region10: #{down_encoder_block2d.1} parent=5 // pred_check_branch
        %383 = sbr.rel (%p380) target = $region12
      $region11: #{down_encoder_block2d.1} parent=5 // pred_region
        %s384 = ssub.s32 %s24, 1
        // Predicated region
        $region13: #{down_encoder_block2d.1} parent=11 // pred_check
          %p385 = pneg %p71
        $region14: #{down_encoder_block2d.1} parent=11 // pred_check_branch
          %387 = sbr.rel (%p385) target = $region16
        $region15: #{down_encoder_block2d.1} parent=11 // pred_region
          _
        $region16: #{down_encoder_block2d.1} parent=11 // pred_fallthru
          _
        // Predicated region
        $region17: #{down_encoder_block2d.1} parent=11 // pred_check
          %p388 = pneg %p92
        $region18: #{down_encoder_block2d.1} parent=11 // pred_check_branch
          %390 = sbr.rel (%p388) target = $region20
        $region19: #{down_encoder_block2d.1} parent=11 // pred_region
          _
        $region20: #{down_encoder_block2d.1} parent=11 // pred_fallthru
          _
        // Predicated region
        $region21: #{down_encoder_block2d.1} parent=11 // pred_check
          %p391 = pneg %p113
        $region22: #{down_encoder_block2d.1} parent=11 // pred_check_branch
          %393 = sbr.rel (%p391) target = $region24
        $region23: #{down_encoder_block2d.1} parent=11 // pred_region
          _
        $region24: #{down_encoder_block2d.1} parent=11 // pred_fallthru
          _
        // Predicated region
        $region25: #{down_encoder_block2d.1} parent=11 // pred_check
          %p394 = pneg %p134
        $region26: #{down_encoder_block2d.1} parent=11 // pred_check_branch
          %396 = sbr.rel (%p394) target = $region28
        $region27: #{down_encoder_block2d.1} parent=11 // pred_region
          _
        $region28: #{down_encoder_block2d.1} parent=11 // pred_fallthru
          _
        // Predicated region
        $region29: #{down_encoder_block2d.1} parent=11 // pred_check
          %p397 = pneg %p155
        $region30: #{down_encoder_block2d.1} parent=11 // pred_check_branch
          %399 = sbr.rel (%p397) target = $region32
        $region31: #{down_encoder_block2d.1} parent=11 // pred_region
          _
        $region32: #{down_encoder_block2d.1} parent=11 // pred_fallthru
          _
        // Predicated region
        $region33: #{down_encoder_block2d.1} parent=11 // pred_check
          %p400 = pneg %p176
        $region34: #{down_encoder_block2d.1} parent=11 // pred_check_branch
          %402 = sbr.rel (%p400) target = $region36
        $region35: #{down_encoder_block2d.1} parent=11 // pred_region
          _
        $region36: #{down_encoder_block2d.1} parent=11 // pred_fallthru
          _
        // Predicated region
        $region37: #{down_encoder_block2d.1} parent=11 // pred_check
          %p403 = pneg %p197
        $region38: #{down_encoder_block2d.1} parent=11 // pred_check_branch
          %405 = sbr.rel (%p403) target = $region40
        $region39: #{down_encoder_block2d.1} parent=11 // pred_region
          _
        $region40: #{down_encoder_block2d.1} parent=11 // pred_fallthru
          _
        // Predicated region
        $region41: #{down_encoder_block2d.1} parent=11 // pred_check
          %p406 = pneg %p218
        $region42: #{down_encoder_block2d.1} parent=11 // pred_check_branch
          %408 = sbr.rel (%p406) target = $region44
        $region43: #{down_encoder_block2d.1} parent=11 // pred_region
          _
        $region44: #{down_encoder_block2d.1} parent=11 // pred_fallthru
          _
        // Predicated region
        $region45: #{down_encoder_block2d.1} parent=11 // pred_check
          %p409 = pneg %p239
        $region46: #{down_encoder_block2d.1} parent=11 // pred_check_branch
          %411 = sbr.rel (%p409) target = $region48
        $region47: #{down_encoder_block2d.1} parent=11 // pred_region
          _
        $region48: #{down_encoder_block2d.1} parent=11 // pred_fallthru
          _
        // Predicated region
        $region49: #{down_encoder_block2d.1} parent=11 // pred_check
          %p412 = pneg %p260
        $region50: #{down_encoder_block2d.1} parent=11 // pred_check_branch
          %414 = sbr.rel (%p412) target = $region52
        $region51: #{down_encoder_block2d.1} parent=11 // pred_region
          _
        $region52: #{down_encoder_block2d.1} parent=11 // pred_fallthru
          _
        // Predicated region
        $region53: #{down_encoder_block2d.1} parent=11 // pred_check
          %p415 = pneg %p281
        $region54: #{down_encoder_block2d.1} parent=11 // pred_check_branch
          %417 = sbr.rel (%p415) target = $region56
        $region55: #{down_encoder_block2d.1} parent=11 // pred_region
          _
        $region56: #{down_encoder_block2d.1} parent=11 // pred_fallthru
          _
        // Predicated region
        $region57: #{down_encoder_block2d.1} parent=11 // pred_check
          %p418 = pneg %p302
        $region58: #{down_encoder_block2d.1} parent=11 // pred_check_branch
          %420 = sbr.rel (%p418) target = $region60
        $region59: #{down_encoder_block2d.1} parent=11 // pred_region
          _
        $region60: #{down_encoder_block2d.1} parent=11 // pred_fallthru
          _
        // Predicated region
        $region61: #{down_encoder_block2d.1} parent=11 // pred_check
          %p421 = pneg %p323
        $region62: #{down_encoder_block2d.1} parent=11 // pred_check_branch
          %423 = sbr.rel (%p421) target = $region64
        $region63: #{down_encoder_block2d.1} parent=11 // pred_region
          _
        $region64: #{down_encoder_block2d.1} parent=11 // pred_fallthru
          _
        // Predicated region
        $region65: #{down_encoder_block2d.1} parent=11 // pred_check
          %p424 = pneg %p344
        $region66: #{down_encoder_block2d.1} parent=11 // pred_check_branch
          %426 = sbr.rel (%p424) target = $region68
        $region67: #{down_encoder_block2d.1} parent=11 // pred_region
          _
        $region68: #{down_encoder_block2d.1} parent=11 // pred_fallthru
          _
      $region12: #{down_encoder_block2d.1} parent=5 // pred_fallthru
        _
      %p427 = scmp.lt.s32.totalorder %s24, 2
      // Predicated region
      $region69: #{down_encoder_block2d.1} parent=5 // pred_check
        %p428 = pneg %p427
      $region70: #{down_encoder_block2d.1} parent=5 // pred_check_branch
        %430 = sbr.rel (%p428) target = $region72
      $region71: #{down_encoder_block2d.1} parent=5 // pred_region
        // Predicated region
        $region73: #{down_encoder_block2d.1} parent=71 // pred_check
          %p431 = pneg %p44
        $region74: #{down_encoder_block2d.1} parent=71 // pred_check_branch
          %433 = sbr.rel (%p431) target = $region76
        $region75: #{down_encoder_block2d.1} parent=71 // pred_region
          %p434 = scmp.lt.s32.totalorder %s24, 1
          %s435 = scalar_select %p434, %s24, 1
          %s436 = smul.addr %s435, 32
          %s437 = smul.addr %s436, 8
          %s438 = scalar_lea.vmem %s0, %s437
        $region76: #{down_encoder_block2d.1} parent=71 // pred_fallthru
          _
      $region72: #{down_encoder_block2d.1} parent=5 // pred_fallthru
        _
      %p439 = scmp.le.s32.totalorder 1, %s24
      %p440 = scmp.lt.s32.totalorder %s24, 3
      %p441 = pnand %p439, %p440
      %p442 = pneg %p441
      // Predicated region
      $region77: #{down_encoder_block2d.1} parent=5 // pred_check
        _
      $region78: #{down_encoder_block2d.1} parent=5 // pred_check_branch
        %444 = sbr.rel (%p441) target = $region80
      $region79: #{down_encoder_block2d.1} parent=5 // pred_region
        %s445 = ssub.s32 %s24, 1
        %p446 = scmp.lt.s32.totalorder %s29, 1
        %s447 = scalar_select %p446, %s29, 1
        %s448 = smul.addr %s447, 32
        %s449 = smul.addr %s448, 8
        %s450 = scalar_lea.vmem %s0, %s449
        %p451 = pneg %p50
        %p452 = pneg %p47
        %p453 = pneg %p71
        %p454 = pneg %p68
        %p455 = pneg %p92
        %p456 = pneg %p89
        %p457 = pneg %p113
        %p458 = pneg %p110
        %p459 = pneg %p134
        %p460 = pneg %p131
        %p461 = pneg %p155
        %p462 = pneg %p152
        %p463 = pneg %p176
        %p464 = pneg %p173
        %p465 = pneg %p197
        %p466 = pneg %p194
        %p467 = pneg %p218
        %p468 = pneg %p215
        %p469 = pneg %p239
        %p470 = pneg %p236
        %p471 = pneg %p260
        %p472 = pneg %p257
        %p473 = pneg %p281
        %p474 = pneg %p278
        %p475 = pneg %p302
        %p476 = pneg %p299
        %p477 = pneg %p323
        %p478 = pneg %p320
        %p479 = pneg %p344
        %p480 = pneg %p341
        %p481 = pneg %p370
        %p482 = pneg %p367
        %s483 = sand.u32 %s357, 1
        %s484 = scalar_lea.sflag [#allocation3], %s483
        %s485 = sand.u32 %s357, 1
        %s486 = smul.addr %s485, 64
        %s487 = scalar_lea.vmem [#allocation2], %s486
        %p488 = scmp.lt.s32.totalorder %s29, 1
        %s489 = scalar_select %p488, %s29, 1
        %s490 = smul.addr %s489, 32
        %s491 = smul.addr %s490, 8
        %s492 = scalar_lea.vmem %s0, %s491
        %v493 = vld [vmem:[%s492] sm:$0xff]
        %v494 = vld [vmem:[%s492 + $0x8] sm:$0xff]
        %v495 = vld [vmem:[%s492 + $0x10] sm:$0xff]
        %v496 = vld [vmem:[%s492 + $0x18] sm:$0xff]
        %v497 = vld [vmem:[%s492 + $0x20] sm:$0xff]
        %v498 = vld [vmem:[%s492 + $0x28] sm:$0xff]
        %v499 = vld [vmem:[%s492 + $0x30] sm:$0xff]
        %v500 = vld [vmem:[%s492 + $0x38] sm:$0xff]
        %v501 = vld [vmem:[%s492 + $0x40] sm:$0xff]
        %v502 = vld [vmem:[%s492 + $0x48] sm:$0xff]
        %v503 = vld [vmem:[%s492 + $0x50] sm:$0xff]
        %v504 = vld [vmem:[%s492 + $0x58] sm:$0xff]
        %v505 = vld [vmem:[%s492 + $0x60] sm:$0xff]
        %v506 = vld [vmem:[%s492 + $0x68] sm:$0xff]
        %v507 = vld [vmem:[%s492 + $0x70] sm:$0xff]
        %v508 = vld [vmem:[%s492 + $0x78] sm:$0xff]
        %v509 = vld [vmem:[%s492 + $0x80] sm:$0xff]
        %v510 = vld [vmem:[%s492 + $0x88] sm:$0xff]
        %v511 = vld [vmem:[%s492 + $0x90] sm:$0xff]
        %v512 = vld [vmem:[%s492 + $0x98] sm:$0xff]
        %v513 = vld [vmem:[%s492 + $0xa0] sm:$0xff]
        %v514 = vld [vmem:[%s492 + $0xa8] sm:$0xff]
        %v515 = vld [vmem:[%s492 + $0xb0] sm:$0xff]
        %v516 = vld [vmem:[%s492 + $0xb8] sm:$0xff]
        %v517 = vld [vmem:[%s492 + $0xc0] sm:$0xff]
        %v518 = vld [vmem:[%s492 + $0xc8] sm:$0xff]
        %v519 = vld [vmem:[%s492 + $0xd0] sm:$0xff]
        %v520 = vld [vmem:[%s492 + $0xd8] sm:$0xff]
        %v521 = vld [vmem:[%s492 + $0xe0] sm:$0xff]
        %v522 = vld [vmem:[%s492 + $0xe8] sm:$0xff]
        %v523 = vld [vmem:[%s492 + $0xf0] sm:$0xff]
        %v524 = vld [vmem:[%s492 + $0xf8] sm:$0xff]
        %v525 = vld [vmem:[%s1] sm:$0xff]
        %v526 = vld [vmem:[%s2] sm:$0x1]
        %v527 = vld [vmem:[%s3] sm:$0x1]
        %vm528 = vcmask 64512
        %v529 = vsel %vm528, %v493, 0.0
        %v530 = vsel %vm528, %v494, 0.0
        %v531 = vadd.f32 %v529, %v530
        %v532 = vsel %vm528, %v495, 0.0
        %v533 = vadd.f32 %v531, %v532
        %v534 = vsel %vm528, %v496, 0.0
        %v535 = vadd.f32 %v533, %v534
        %v536 = vsel %vm528, %v497, 0.0
        %v537 = vadd.f32 %v535, %v536
        %v538 = vsel %vm528, %v498, 0.0
        %v539 = vadd.f32 %v537, %v538
        %v540 = vsel %vm528, %v499, 0.0
        %v541 = vadd.f32 %v539, %v540
        %v542 = vsel %vm528, %v500, 0.0
        %v543 = vadd.f32 %v541, %v542
        %v544 = vsel %vm528, %v501, 0.0
        %v545 = vadd.f32 %v543, %v544
        %v546 = vsel %vm528, %v502, 0.0
        %v547 = vadd.f32 %v545, %v546
        %v548 = vsel %vm528, %v503, 0.0
        %v549 = vadd.f32 %v547, %v548
        %v550 = vsel %vm528, %v504, 0.0
        %v551 = vadd.f32 %v549, %v550
        %v552 = vsel %vm528, %v505, 0.0
        %v553 = vadd.f32 %v551, %v552
        %v554 = vsel %vm528, %v506, 0.0
        %v555 = vadd.f32 %v553, %v554
        %v556 = vsel %vm528, %v507, 0.0
        %v557 = vadd.f32 %v555, %v556
        %v558 = vsel %vm528, %v508, 0.0
        %v559 = vadd.f32 %v557, %v558
        %v560 = vsel %vm528, %v509, 0.0
        %v561 = vadd.f32 %v559, %v560
        %v562 = vsel %vm528, %v510, 0.0
        %v563 = vadd.f32 %v561, %v562
        %v564 = vsel %vm528, %v511, 0.0
        %v565 = vadd.f32 %v563, %v564
        %v566 = vsel %vm528, %v512, 0.0
        %v567 = vadd.f32 %v565, %v566
        %v568 = vsel %vm528, %v513, 0.0
        %v569 = vadd.f32 %v567, %v568
        %v570 = vsel %vm528, %v514, 0.0
        %v571 = vadd.f32 %v569, %v570
        %v572 = vsel %vm528, %v515, 0.0
        %v573 = vadd.f32 %v571, %v572
        %v574 = vsel %vm528, %v516, 0.0
        %v575 = vadd.f32 %v573, %v574
        %v576 = vsel %vm528, %v517, 0.0
        %v577 = vadd.f32 %v575, %v576
        %v578 = vsel %vm528, %v518, 0.0
        %v579 = vadd.f32 %v577, %v578
        %v580 = vsel %vm528, %v519, 0.0
        %v581 = vadd.f32 %v579, %v580
        %v582 = vsel %vm528, %v520, 0.0
        %v583 = vadd.f32 %v581, %v582
        %v584 = vsel %vm528, %v521, 0.0
        %v585 = vadd.f32 %v583, %v584
        %v586 = vsel %vm528, %v522, 0.0
        %v587 = vadd.f32 %v585, %v586
        %v588 = vsel %vm528, %v523, 0.0
        %v589 = vadd.f32 %v587, %v588
        %v590 = vsel %vm528, %v524, 0.0
        %v591 = vadd.f32 %v589, %v590
        %v592 = vrot.slane %v591, 4
        %v593 = vadd.f32 %v591, %v592
        %v594 = vrot.slane %v593, 2
        %v595 = vadd.f32 %v593, %v594
        %v596 = vrot.slane %v595, 1
        %v597 = vadd.f32 %v595, %v596
        %v599 = vsel %vm528, %v597, 0
        %601 = vmatpush.msra.mxu0 0.0
        %602 = vmatpush.msra.mxu0 0.0
        %603 = vmatpush.msra.mxu0 0.0
        %604 = vmatpush.msra.mxu0 0.0
        %605 = vmatpush.msra.mxu0 0.0
        %606 = vmatpush.msra.mxu0 0.0
        %607 = vmatpush.msra.mxu0 0.0
        %608 = vmatpush.msra.mxu0 0.0
        %609 = vmatpush.msra.mxu0 0.0
        %610 = vmatpush.msra.mxu0 0.0
        %611 = vmatpush.msra.mxu0 0.0
        %612 = vmatpush.msra.mxu0 0.0
        %613 = vmatpush.msra.mxu0 0.0
        %614 = vmatpush.msra.mxu0 0.0
        %615 = vmatpush.msra.mxu0 0.0
        %616 = vmatpush.msra.mxu0 %v525
        %617 = vmatmul.f32.gmra.mxu0 %v599
        %v618 = vpop.f32.mrf.mxu0
        %v619 = vadd.f32 0.0, %v618
        %620 = vdwg.mxu0
        %v621 = vperm.slane %v619, 0
        %v622 = vsub.f32 %v493, %v621
        %v623 = vsub.f32 %v494, %v621
        %v624 = vsub.f32 %v495, %v621
        %v625 = vsub.f32 %v496, %v621
        %v626 = vsub.f32 %v497, %v621
        %v627 = vsub.f32 %v498, %v621
        %v628 = vsub.f32 %v499, %v621
        %v629 = vsub.f32 %v500, %v621
        %v630 = vsub.f32 %v501, %v621
        %v631 = vsub.f32 %v502, %v621
        %v632 = vsub.f32 %v503, %v621
        %v633 = vsub.f32 %v504, %v621
        %v634 = vsub.f32 %v505, %v621
        %v635 = vsub.f32 %v506, %v621
        %v636 = vsub.f32 %v507, %v621
        %v637 = vsub.f32 %v508, %v621
        %v638 = vsub.f32 %v509, %v621
        %v639 = vsub.f32 %v510, %v621
        %v640 = vsub.f32 %v511, %v621
        %v641 = vsub.f32 %v512, %v621
        %v642 = vsub.f32 %v513, %v621
        %v643 = vsub.f32 %v514, %v621
        %v644 = vsub.f32 %v515, %v621
        %v645 = vsub.f32 %v516, %v621
        %v646 = vsub.f32 %v517, %v621
        %v647 = vsub.f32 %v518, %v621
        %v648 = vsub.f32 %v519, %v621
        %v649 = vsub.f32 %v520, %v621
        %v650 = vsub.f32 %v521, %v621
        %v651 = vsub.f32 %v522, %v621
        %v652 = vsub.f32 %v523, %v621
        %v653 = vsub.f32 %v524, %v621
        %v654 = vmul.f32 %v622, %v622
        %v655 = vmul.f32 %v623, %v623
        %v656 = vmul.f32 %v624, %v624
        %v657 = vmul.f32 %v625, %v625
        %v658 = vmul.f32 %v626, %v626
        %v659 = vmul.f32 %v627, %v627
        %v660 = vmul.f32 %v628, %v628
        %v661 = vmul.f32 %v629, %v629
        %v662 = vmul.f32 %v630, %v630
        %v663 = vmul.f32 %v631, %v631
        %v664 = vmul.f32 %v632, %v632
        %v665 = vmul.f32 %v633, %v633
        %v666 = vmul.f32 %v634, %v634
        %v667 = vmul.f32 %v635, %v635
        %v668 = vmul.f32 %v636, %v636
        %v669 = vmul.f32 %v637, %v637
        %v670 = vmul.f32 %v638, %v638
        %v671 = vmul.f32 %v639, %v639
        %v672 = vmul.f32 %v640, %v640
        %v673 = vmul.f32 %v641, %v641
        %v674 = vmul.f32 %v642, %v642
        %v675 = vmul.f32 %v643, %v643
        %v676 = vmul.f32 %v644, %v644
        %v677 = vmul.f32 %v645, %v645
        %v678 = vmul.f32 %v646, %v646
        %v679 = vmul.f32 %v647, %v647
        %v680 = vmul.f32 %v648, %v648
        %v681 = vmul.f32 %v649, %v649
        %v682 = vmul.f32 %v650, %v650
        %v683 = vmul.f32 %v651, %v651
        %v684 = vmul.f32 %v652, %v652
        %v685 = vmul.f32 %v653, %v653
        %v686 = vsel %vm528, %v654, 0.0
        %v687 = vsel %vm528, %v655, 0.0
        %v688 = vadd.f32 %v686, %v687
        %v689 = vsel %vm528, %v656, 0.0
        %v690 = vadd.f32 %v688, %v689
        %v691 = vsel %vm528, %v657, 0.0
        %v692 = vadd.f32 %v690, %v691
        %v693 = vsel %vm528, %v658, 0.0
        %v694 = vadd.f32 %v692, %v693
        %v695 = vsel %vm528, %v659, 0.0
        %v696 = vadd.f32 %v694, %v695
        %v697 = vsel %vm528, %v660, 0.0
        %v698 = vadd.f32 %v696, %v697
        %v699 = vsel %vm528, %v661, 0.0
        %v700 = vadd.f32 %v698, %v699
        %v701 = vsel %vm528, %v662, 0.0
        %v702 = vadd.f32 %v700, %v701
        %v703 = vsel %vm528, %v663, 0.0
        %v704 = vadd.f32 %v702, %v703
        %v705 = vsel %vm528, %v664, 0.0
        %v706 = vadd.f32 %v704, %v705
        %v707 = vsel %vm528, %v665, 0.0
        %v708 = vadd.f32 %v706, %v707
        %v709 = vsel %vm528, %v666, 0.0
        %v710 = vadd.f32 %v708, %v709
        %v711 = vsel %vm528, %v667, 0.0
        %v712 = vadd.f32 %v710, %v711
        %v713 = vsel %vm528, %v668, 0.0
        %v714 = vadd.f32 %v712, %v713
        %v715 = vsel %vm528, %v669, 0.0
        %v716 = vadd.f32 %v714, %v715
        %v717 = vsel %vm528, %v670, 0.0
        %v718 = vadd.f32 %v716, %v717
        %v719 = vsel %vm528, %v671, 0.0
        %v720 = vadd.f32 %v718, %v719
        %v721 = vsel %vm528, %v672, 0.0
        %v722 = vadd.f32 %v720, %v721
        %v723 = vsel %vm528, %v673, 0.0
        %v724 = vadd.f32 %v722, %v723
        %v725 = vsel %vm528, %v674, 0.0
        %v726 = vadd.f32 %v724, %v725
        %v727 = vsel %vm528, %v675, 0.0
        %v728 = vadd.f32 %v726, %v727
        %v729 = vsel %vm528, %v676, 0.0
        %v730 = vadd.f32 %v728, %v729
        %v731 = vsel %vm528, %v677, 0.0
        %v732 = vadd.f32 %v730, %v731
        %v733 = vsel %vm528, %v678, 0.0
        %v734 = vadd.f32 %v732, %v733
        %v735 = vsel %vm528, %v679, 0.0
        %v736 = vadd.f32 %v734, %v735
        %v737 = vsel %vm528, %v680, 0.0
        %v738 = vadd.f32 %v736, %v737
        %v739 = vsel %vm528, %v681, 0.0
        %v740 = vadd.f32 %v738, %v739
        %v741 = vsel %vm528, %v682, 0.0
        %v742 = vadd.f32 %v740, %v741
        %v743 = vsel %vm528, %v683, 0.0
        %v744 = vadd.f32 %v742, %v743
        %v745 = vsel %vm528, %v684, 0.0
        %v746 = vadd.f32 %v744, %v745
        %v747 = vsel %vm528, %v685, 0.0
        %v748 = vadd.f32 %v746, %v747
        %v749 = vrot.slane %v748, 4
        %v750 = vadd.f32 %v748, %v749
        %v751 = vrot.slane %v750, 2
        %v752 = vadd.f32 %v750, %v751
        %v753 = vrot.slane %v752, 1
        %v754 = vadd.f32 %v752, %v753
        %v756 = vsel %vm528, %v754, 0
        %758 = vmatpush.msra.mxu0 0.0
        %759 = vmatpush.msra.mxu0 0.0
        %760 = vmatpush.msra.mxu0 0.0
        %761 = vmatpush.msra.mxu0 0.0
        %762 = vmatpush.msra.mxu0 0.0
        %763 = vmatpush.msra.mxu0 0.0
        %764 = vmatpush.msra.mxu0 0.0
        %765 = vmatpush.msra.mxu0 0.0
        %766 = vmatpush.msra.mxu0 0.0
        %767 = vmatpush.msra.mxu0 0.0
        %768 = vmatpush.msra.mxu0 0.0
        %769 = vmatpush.msra.mxu0 0.0
        %770 = vmatpush.msra.mxu0 0.0
        %771 = vmatpush.msra.mxu0 0.0
        %772 = vmatpush.msra.mxu0 0.0
        %773 = vmatpush.msra.mxu0 %v525
        %774 = vmatmul.f32.gmra.mxu0 %v756
        %v775 = vpop.f32.mrf.mxu0
        %v776 = vadd.f32 0.0, %v775
        %777 = vdwg.mxu0
        %v778 = vmax.f32 %v776, 0.0
        %v779 = vadd.f32 %v778, 1e-06
        %v780 = vrsqrt.pop %v779
        %v781 = vmul.f32 %v780, %v779
        %v782 = vmul.f32 %v781, %v780
        %v783 = vmul.f32 0.5, %v782
        %v784 = vsub.f32 1.5, %v783
        %v785 = vmul.f32 %v780, %v784
        %vm786 = vweird.f32 %v779
        %vm787 = vweird.f32 %v780
        %vm788 = vmor %vm786, %vm787
        %v789 = vsel %vm788, %v780, %v785
        %v790 = vperm.slane %v789, 0
        %v791 = vmul.f32 %v622, %v790
        %v792 = vmul.f32 %v623, %v790
        %v793 = vmul.f32 %v624, %v790
        %v794 = vmul.f32 %v625, %v790
        %v795 = vmul.f32 %v626, %v790
        %v796 = vmul.f32 %v627, %v790
        %v797 = vmul.f32 %v628, %v790
        %v798 = vmul.f32 %v629, %v790
        %v799 = vmul.f32 %v630, %v790
        %v800 = vmul.f32 %v631, %v790
        %v801 = vmul.f32 %v632, %v790
        %v802 = vmul.f32 %v633, %v790
        %v803 = vmul.f32 %v634, %v790
        %v804 = vmul.f32 %v635, %v790
        %v805 = vmul.f32 %v636, %v790
        %v806 = vmul.f32 %v637, %v790
        %v807 = vmul.f32 %v638, %v790
        %v808 = vmul.f32 %v639, %v790
        %v809 = vmul.f32 %v640, %v790
        %v810 = vmul.f32 %v641, %v790
        %v811 = vmul.f32 %v642, %v790
        %v812 = vmul.f32 %v643, %v790
        %v813 = vmul.f32 %v644, %v790
        %v814 = vmul.f32 %v645, %v790
        %v815 = vmul.f32 %v646, %v790
        %v816 = vmul.f32 %v647, %v790
        %v817 = vmul.f32 %v648, %v790
        %v818 = vmul.f32 %v649, %v790
        %v819 = vmul.f32 %v650, %v790
        %v820 = vmul.f32 %v651, %v790
        %v821 = vmul.f32 %v652, %v790
        %v822 = vmul.f32 %v653, %v790
        %v824 = vperm.slane %v526, 0
        %v826 = vmul.f32 %v791, %v824
        %v827 = vmul.f32 %v792, %v824
        %v828 = vmul.f32 %v793, %v824
        %v829 = vmul.f32 %v794, %v824
        %v830 = vmul.f32 %v795, %v824
        %v831 = vmul.f32 %v796, %v824
        %v832 = vmul.f32 %v797, %v824
        %v833 = vmul.f32 %v798, %v824
        %v834 = vmul.f32 %v799, %v824
        %v835 = vmul.f32 %v800, %v824
        %v836 = vmul.f32 %v801, %v824
        %v837 = vmul.f32 %v802, %v824
        %v838 = vmul.f32 %v803, %v824
        %v839 = vmul.f32 %v804, %v824
        %v840 = vmul.f32 %v805, %v824
        %v841 = vmul.f32 %v806, %v824
        %v842 = vmul.f32 %v807, %v824
        %v843 = vmul.f32 %v808, %v824
        %v844 = vmul.f32 %v809, %v824
        %v845 = vmul.f32 %v810, %v824
        %v846 = vmul.f32 %v811, %v824
        %v847 = vmul.f32 %v812, %v824
        %v848 = vmul.f32 %v813, %v824
        %v849 = vmul.f32 %v814, %v824
        %v850 = vmul.f32 %v815, %v824
        %v851 = vmul.f32 %v816, %v824
        %v852 = vmul.f32 %v817, %v824
        %v853 = vmul.f32 %v818, %v824
        %v854 = vmul.f32 %v819, %v824
        %v855 = vmul.f32 %v820, %v824
        %v856 = vmul.f32 %v821, %v824
        %v857 = vmul.f32 %v822, %v824
        %v859 = vperm.slane %v527, 0
        %v861 = vadd.f32 %v826, %v859
        %v862 = vadd.f32 %v827, %v859
        %v863 = vadd.f32 %v828, %v859
        %v864 = vadd.f32 %v829, %v859
        %v865 = vadd.f32 %v830, %v859
        %v866 = vadd.f32 %v831, %v859
        %v867 = vadd.f32 %v832, %v859
        %v868 = vadd.f32 %v833, %v859
        %v869 = vadd.f32 %v834, %v859
        %v870 = vadd.f32 %v835, %v859
        %v871 = vadd.f32 %v836, %v859
        %v872 = vadd.f32 %v837, %v859
        %v873 = vadd.f32 %v838, %v859
        %v874 = vadd.f32 %v839, %v859
        %v875 = vadd.f32 %v840, %v859
        %v876 = vadd.f32 %v841, %v859
        %v877 = vadd.f32 %v842, %v859
        %v878 = vadd.f32 %v843, %v859
        %v879 = vadd.f32 %v844, %v859
        %v880 = vadd.f32 %v845, %v859
        %v881 = vadd.f32 %v846, %v859
        %v882 = vadd.f32 %v847, %v859
        %v883 = vadd.f32 %v848, %v859
        %v884 = vadd.f32 %v849, %v859
        %v885 = vadd.f32 %v850, %v859
        %v886 = vadd.f32 %v851, %v859
        %v887 = vadd.f32 %v852, %v859
        %v888 = vadd.f32 %v853, %v859
        %v889 = vadd.f32 %v854, %v859
        %v890 = vadd.f32 %v855, %v859
        %v891 = vadd.f32 %v856, %v859
        %v892 = vadd.f32 %v857, %v859
        %v893 = vxor.u32 %v861, 2147483648
        %v894 = vxor.u32 %v862, 2147483648
        %v895 = vxor.u32 %v863, 2147483648
        %v896 = vxor.u32 %v864, 2147483648
        %v897 = vxor.u32 %v865, 2147483648
        %v898 = vxor.u32 %v866, 2147483648
        %v899 = vxor.u32 %v867, 2147483648
        %v900 = vxor.u32 %v868, 2147483648
        %v901 = vxor.u32 %v869, 2147483648
        %v902 = vxor.u32 %v870, 2147483648
        %v903 = vxor.u32 %v871, 2147483648
        %v904 = vxor.u32 %v872, 2147483648
        %v905 = vxor.u32 %v873, 2147483648
        %v906 = vxor.u32 %v874, 2147483648
        %v907 = vxor.u32 %v875, 2147483648
        %v908 = vxor.u32 %v876, 2147483648
        %v909 = vxor.u32 %v877, 2147483648
        %v910 = vxor.u32 %v878, 2147483648
        %v911 = vxor.u32 %v879, 2147483648
        %v912 = vxor.u32 %v880, 2147483648
        %v913 = vxor.u32 %v881, 2147483648
        %v914 = vxor.u32 %v882, 2147483648
        %v915 = vxor.u32 %v883, 2147483648
        %v916 = vxor.u32 %v884, 2147483648
        %v917 = vxor.u32 %v885, 2147483648
        %v918 = vxor.u32 %v886, 2147483648
        %v919 = vxor.u32 %v887, 2147483648
        %v920 = vxor.u32 %v888, 2147483648
        %v921 = vxor.u32 %v889, 2147483648
        %v922 = vxor.u32 %v890, 2147483648
        %v923 = vxor.u32 %v891, 2147483648
        %v924 = vxor.u32 %v892, 2147483648
        %v925 = vmul.f32 %v893, 1.442695
        %v926 = vpow.pop %v925
        %v927 = vmul.f32 %v894, 1.442695
        %v928 = vpow.pop %v927
        %v929 = vmul.f32 %v895, 1.442695
        %v930 = vpow.pop %v929
        %v931 = vmul.f32 %v896, 1.442695
        %v932 = vpow.pop %v931
        %v933 = vmul.f32 %v897, 1.442695
        %v934 = vpow.pop %v933
        %v935 = vmul.f32 %v898, 1.442695
        %v936 = vpow.pop %v935
        %v937 = vmul.f32 %v899, 1.442695
        %v938 = vpow.pop %v937
        %v939 = vmul.f32 %v900, 1.442695
        %v940 = vpow.pop %v939
        %v941 = vmul.f32 %v901, 1.442695
        %v942 = vpow.pop %v941
        %v943 = vmul.f32 %v902, 1.442695
        %v944 = vpow.pop %v943
        %v945 = vmul.f32 %v903, 1.442695
        %v946 = vpow.pop %v945
        %v947 = vmul.f32 %v904, 1.442695
        %v948 = vpow.pop %v947
        %v949 = vmul.f32 %v905, 1.442695
        %v950 = vpow.pop %v949
        %v951 = vmul.f32 %v906, 1.442695
        %v952 = vpow.pop %v951
        %v953 = vmul.f32 %v907, 1.442695
        %v954 = vpow.pop %v953
        %v955 = vmul.f32 %v908, 1.442695
        %v956 = vpow.pop %v955
        %v957 = vmul.f32 %v909, 1.442695
        %v958 = vpow.pop %v957
        %v959 = vmul.f32 %v910, 1.442695
        %v960 = vpow.pop %v959
        %v961 = vmul.f32 %v911, 1.442695
        %v962 = vpow.pop %v961
        %v963 = vmul.f32 %v912, 1.442695
        %v964 = vpow.pop %v963
        %v965 = vmul.f32 %v913, 1.442695
        %v966 = vpow.pop %v965
        %v967 = vmul.f32 %v914, 1.442695
        %v968 = vpow.pop %v967
        %v969 = vmul.f32 %v915, 1.442695
        %v970 = vpow.pop %v969
        %v971 = vmul.f32 %v916, 1.442695
        %v972 = vpow.pop %v971
        %v973 = vmul.f32 %v917, 1.442695
        %v974 = vpow.pop %v973
        %v975 = vmul.f32 %v918, 1.442695
        %v976 = vpow.pop %v975
        %v977 = vmul.f32 %v919, 1.442695
        %v978 = vpow.pop %v977
        %v979 = vmul.f32 %v920, 1.442695
        %v980 = vpow.pop %v979
        %v981 = vmul.f32 %v921, 1.442695
        %v982 = vpow.pop %v981
        %v983 = vmul.f32 %v922, 1.442695
        %v984 = vpow.pop %v983
        %v985 = vmul.f32 %v923, 1.442695
        %v986 = vpow.pop %v985
        %v987 = vmul.f32 %v924, 1.442695
        %v988 = vpow.pop %v987
        %v989 = vadd.f32 %v926, 1.0
        %v990 = vadd.f32 %v928, 1.0
        %v991 = vadd.f32 %v930, 1.0
        %v992 = vadd.f32 %v932, 1.0
        %v993 = vadd.f32 %v934, 1.0
        %v994 = vadd.f32 %v936, 1.0
        %v995 = vadd.f32 %v938, 1.0
        %v996 = vadd.f32 %v940, 1.0
        %v997 = vadd.f32 %v942, 1.0
        %v998 = vadd.f32 %v944, 1.0
        %v999 = vadd.f32 %v946, 1.0
        %v1000 = vadd.f32 %v948, 1.0
        %v1001 = vadd.f32 %v950, 1.0
        %v1002 = vadd.f32 %v952, 1.0
        %v1003 = vadd.f32 %v954, 1.0
        %v1004 = vadd.f32 %v956, 1.0
        %v1005 = vadd.f32 %v958, 1.0
        %v1006 = vadd.f32 %v960, 1.0
        %v1007 = vadd.f32 %v962, 1.0
        %v1008 = vadd.f32 %v964, 1.0
        %v1009 = vadd.f32 %v966, 1.0
        %v1010 = vadd.f32 %v968, 1.0
        %v1011 = vadd.f32 %v970, 1.0
        %v1012 = vadd.f32 %v972, 1.0
        %v1013 = vadd.f32 %v974, 1.0
        %v1014 = vadd.f32 %v976, 1.0
        %v1015 = vadd.f32 %v978, 1.0
        %v1016 = vadd.f32 %v980, 1.0
        %v1017 = vadd.f32 %v982, 1.0
        %v1018 = vadd.f32 %v984, 1.0
        %v1019 = vadd.f32 %v986, 1.0
        %v1020 = vadd.f32 %v988, 1.0
        %v1021 = vrcp.pop %v989
        %v1022 = vmul.f32 %v989, %v1021
        %v1023 = vsub.f32 1.0, %v1022
        %v1024 = vmul.f32 %v1021, %v1023
        %v1025 = vadd.f32 %v1021, %v1024
        %vm1026 = vweird.f32 %v989
        %vm1027 = vweird.f32 %v1021
        %vm1028 = vmor %vm1026, %vm1027
        %v1029 = vsel %vm1028, %v1021, %v1025
        %v1030 = vand.u32 2147483647, %v989
        %vm1031 = vcmp.eq.f32.partialorder %v1030, 8.507059e+37
        %v1032 = vand.u32 %v989, 2147483648
        %v1033 = vor.u32 1.1754944e-38, %v1032
        %v1034 = vsel %vm1031, %v1033, %v1029
        %v1035 = vmul.f32 1.0, %v1034
        %v1036 = vrcp.pop %v990
        %v1037 = vmul.f32 %v990, %v1036
        %v1038 = vsub.f32 1.0, %v1037
        %v1039 = vmul.f32 %v1036, %v1038
        %v1040 = vadd.f32 %v1036, %v1039
        %vm1041 = vweird.f32 %v990
        %vm1042 = vweird.f32 %v1036
        %vm1043 = vmor %vm1041, %vm1042
        %v1044 = vsel %vm1043, %v1036, %v1040
        %v1045 = vand.u32 2147483647, %v990
        %vm1046 = vcmp.eq.f32.partialorder %v1045, 8.507059e+37
        %v1047 = vand.u32 %v990, 2147483648
        %v1048 = vor.u32 1.1754944e-38, %v1047
        %v1049 = vsel %vm1046, %v1048, %v1044
        %v1050 = vmul.f32 1.0, %v1049
        %v1051 = vrcp.pop %v991
        %v1052 = vmul.f32 %v991, %v1051
        %v1053 = vsub.f32 1.0, %v1052
        %v1054 = vmul.f32 %v1051, %v1053
        %v1055 = vadd.f32 %v1051, %v1054
        %vm1056 = vweird.f32 %v991
        %vm1057 = vweird.f32 %v1051
        %vm1058 = vmor %vm1056, %vm1057
        %v1059 = vsel %vm1058, %v1051, %v1055
        %v1060 = vand.u32 2147483647, %v991
        %vm1061 = vcmp.eq.f32.partialorder %v1060, 8.507059e+37
        %v1062 = vand.u32 %v991, 2147483648
        %v1063 = vor.u32 1.1754944e-38, %v1062
        %v1064 = vsel %vm1061, %v1063, %v1059
        %v1065 = vmul.f32 1.0, %v1064
        %v1066 = vrcp.pop %v992
        %v1067 = vmul.f32 %v992, %v1066
        %v1068 = vsub.f32 1.0, %v1067
        %v1069 = vmul.f32 %v1066, %v1068
        %v1070 = vadd.f32 %v1066, %v1069
        %vm1071 = vweird.f32 %v992
        %vm1072 = vweird.f32 %v1066
        %vm1073 = vmor %vm1071, %vm1072
        %v1074 = vsel %vm1073, %v1066, %v1070
        %v1075 = vand.u32 2147483647, %v992
        %vm1076 = vcmp.eq.f32.partialorder %v1075, 8.507059e+37
        %v1077 = vand.u32 %v992, 2147483648
        %v1078 = vor.u32 1.1754944e-38, %v1077
        %v1079 = vsel %vm1076, %v1078, %v1074
        %v1080 = vmul.f32 1.0, %v1079
        %v1081 = vrcp.pop %v993
        %v1082 = vmul.f32 %v993, %v1081
        %v1083 = vsub.f32 1.0, %v1082
        %v1084 = vmul.f32 %v1081, %v1083
        %v1085 = vadd.f32 %v1081, %v1084
        %vm1086 = vweird.f32 %v993
        %vm1087 = vweird.f32 %v1081
        %vm1088 = vmor %vm1086, %vm1087
        %v1089 = vsel %vm1088, %v1081, %v1085
        %v1090 = vand.u32 2147483647, %v993
        %vm1091 = vcmp.eq.f32.partialorder %v1090, 8.507059e+37
        %v1092 = vand.u32 %v993, 2147483648
        %v1093 = vor.u32 1.1754944e-38, %v1092
        %v1094 = vsel %vm1091, %v1093, %v1089
        %v1095 = vmul.f32 1.0, %v1094
        %v1096 = vrcp.pop %v994
        %v1097 = vmul.f32 %v994, %v1096
        %v1098 = vsub.f32 1.0, %v1097
        %v1099 = vmul.f32 %v1096, %v1098
        %v1100 = vadd.f32 %v1096, %v1099
        %vm1101 = vweird.f32 %v994
        %vm1102 = vweird.f32 %v1096
        %vm1103 = vmor %vm1101, %vm1102
        %v1104 = vsel %vm1103, %v1096, %v1100
        %v1105 = vand.u32 2147483647, %v994
        %vm1106 = vcmp.eq.f32.partialorder %v1105, 8.507059e+37
        %v1107 = vand.u32 %v994, 2147483648
        %v1108 = vor.u32 1.1754944e-38, %v1107
        %v1109 = vsel %vm1106, %v1108, %v1104
        %v1110 = vmul.f32 1.0, %v1109
        %v1111 = vrcp.pop %v995
        %v1112 = vmul.f32 %v995, %v1111
        %v1113 = vsub.f32 1.0, %v1112
        %v1114 = vmul.f32 %v1111, %v1113
        %v1115 = vadd.f32 %v1111, %v1114
        %vm1116 = vweird.f32 %v995
        %vm1117 = vweird.f32 %v1111
        %vm1118 = vmor %vm1116, %vm1117
        %v1119 = vsel %vm1118, %v1111, %v1115
        %v1120 = vand.u32 2147483647, %v995
        %vm1121 = vcmp.eq.f32.partialorder %v1120, 8.507059e+37
        %v1122 = vand.u32 %v995, 2147483648
        %v1123 = vor.u32 1.1754944e-38, %v1122
        %v1124 = vsel %vm1121, %v1123, %v1119
        %v1125 = vmul.f32 1.0, %v1124
        %v1126 = vrcp.pop %v996
        %v1127 = vmul.f32 %v996, %v1126
        %v1128 = vsub.f32 1.0, %v1127
        %v1129 = vmul.f32 %v1126, %v1128
        %v1130 = vadd.f32 %v1126, %v1129
        %vm1131 = vweird.f32 %v996
        %vm1132 = vweird.f32 %v1126
        %vm1133 = vmor %vm1131, %vm1132
        %v1134 = vsel %vm1133, %v1126, %v1130
        %v1135 = vand.u32 2147483647, %v996
        %vm1136 = vcmp.eq.f32.partialorder %v1135, 8.507059e+37
        %v1137 = vand.u32 %v996, 2147483648
        %v1138 = vor.u32 1.1754944e-38, %v1137
        %v1139 = vsel %vm1136, %v1138, %v1134
        %v1140 = vmul.f32 1.0, %v1139
        %v1141 = vrcp.pop %v997
        %v1142 = vmul.f32 %v997, %v1141
        %v1143 = vsub.f32 1.0, %v1142
        %v1144 = vmul.f32 %v1141, %v1143
        %v1145 = vadd.f32 %v1141, %v1144
        %vm1146 = vweird.f32 %v997
        %vm1147 = vweird.f32 %v1141
        %vm1148 = vmor %vm1146, %vm1147
        %v1149 = vsel %vm1148, %v1141, %v1145
        %v1150 = vand.u32 2147483647, %v997
        %vm1151 = vcmp.eq.f32.partialorder %v1150, 8.507059e+37
        %v1152 = vand.u32 %v997, 2147483648
        %v1153 = vor.u32 1.1754944e-38, %v1152
        %v1154 = vsel %vm1151, %v1153, %v1149
        %v1155 = vmul.f32 1.0, %v1154
        %v1156 = vrcp.pop %v998
        %v1157 = vmul.f32 %v998, %v1156
        %v1158 = vsub.f32 1.0, %v1157
        %v1159 = vmul.f32 %v1156, %v1158
        %v1160 = vadd.f32 %v1156, %v1159
        %vm1161 = vweird.f32 %v998
        %vm1162 = vweird.f32 %v1156
        %vm1163 = vmor %vm1161, %vm1162
        %v1164 = vsel %vm1163, %v1156, %v1160
        %v1165 = vand.u32 2147483647, %v998
        %vm1166 = vcmp.eq.f32.partialorder %v1165, 8.507059e+37
        %v1167 = vand.u32 %v998, 2147483648
        %v1168 = vor.u32 1.1754944e-38, %v1167
        %v1169 = vsel %vm1166, %v1168, %v1164
        %v1170 = vmul.f32 1.0, %v1169
        %v1171 = vrcp.pop %v999
        %v1172 = vmul.f32 %v999, %v1171
        %v1173 = vsub.f32 1.0, %v1172
        %v1174 = vmul.f32 %v1171, %v1173
        %v1175 = vadd.f32 %v1171, %v1174
        %vm1176 = vweird.f32 %v999
        %vm1177 = vweird.f32 %v1171
        %vm1178 = vmor %vm1176, %vm1177
        %v1179 = vsel %vm1178, %v1171, %v1175
        %v1180 = vand.u32 2147483647, %v999
        %vm1181 = vcmp.eq.f32.partialorder %v1180, 8.507059e+37
        %v1182 = vand.u32 %v999, 2147483648
        %v1183 = vor.u32 1.1754944e-38, %v1182
        %v1184 = vsel %vm1181, %v1183, %v1179
        %v1185 = vmul.f32 1.0, %v1184
        %v1186 = vrcp.pop %v1000
        %v1187 = vmul.f32 %v1000, %v1186
        %v1188 = vsub.f32 1.0, %v1187
        %v1189 = vmul.f32 %v1186, %v1188
        %v1190 = vadd.f32 %v1186, %v1189
        %vm1191 = vweird.f32 %v1000
        %vm1192 = vweird.f32 %v1186
        %vm1193 = vmor %vm1191, %vm1192
        %v1194 = vsel %vm1193, %v1186, %v1190
        %v1195 = vand.u32 2147483647, %v1000
        %vm1196 = vcmp.eq.f32.partialorder %v1195, 8.507059e+37
        %v1197 = vand.u32 %v1000, 2147483648
        %v1198 = vor.u32 1.1754944e-38, %v1197
        %v1199 = vsel %vm1196, %v1198, %v1194
        %v1200 = vmul.f32 1.0, %v1199
        %v1201 = vrcp.pop %v1001
        %v1202 = vmul.f32 %v1001, %v1201
        %v1203 = vsub.f32 1.0, %v1202
        %v1204 = vmul.f32 %v1201, %v1203
        %v1205 = vadd.f32 %v1201, %v1204
        %vm1206 = vweird.f32 %v1001
        %vm1207 = vweird.f32 %v1201
        %vm1208 = vmor %vm1206, %vm1207
        %v1209 = vsel %vm1208, %v1201, %v1205
        %v1210 = vand.u32 2147483647, %v1001
        %vm1211 = vcmp.eq.f32.partialorder %v1210, 8.507059e+37
        %v1212 = vand.u32 %v1001, 2147483648
        %v1213 = vor.u32 1.1754944e-38, %v1212
        %v1214 = vsel %vm1211, %v1213, %v1209
        %v1215 = vmul.f32 1.0, %v1214
        %v1216 = vrcp.pop %v1002
        %v1217 = vmul.f32 %v1002, %v1216
        %v1218 = vsub.f32 1.0, %v1217
        %v1219 = vmul.f32 %v1216, %v1218
        %v1220 = vadd.f32 %v1216, %v1219
        %vm1221 = vweird.f32 %v1002
        %vm1222 = vweird.f32 %v1216
        %vm1223 = vmor %vm1221, %vm1222
        %v1224 = vsel %vm1223, %v1216, %v1220
        %v1225 = vand.u32 2147483647, %v1002
        %vm1226 = vcmp.eq.f32.partialorder %v1225, 8.507059e+37
        %v1227 = vand.u32 %v1002, 2147483648
        %v1228 = vor.u32 1.1754944e-38, %v1227
        %v1229 = vsel %vm1226, %v1228, %v1224
        %v1230 = vmul.f32 1.0, %v1229
        %v1231 = vrcp.pop %v1003
        %v1232 = vmul.f32 %v1003, %v1231
        %v1233 = vsub.f32 1.0, %v1232
        %v1234 = vmul.f32 %v1231, %v1233
        %v1235 = vadd.f32 %v1231, %v1234
        %vm1236 = vweird.f32 %v1003
        %vm1237 = vweird.f32 %v1231
        %vm1238 = vmor %vm1236, %vm1237
        %v1239 = vsel %vm1238, %v1231, %v1235
        %v1240 = vand.u32 2147483647, %v1003
        %vm1241 = vcmp.eq.f32.partialorder %v1240, 8.507059e+37
        %v1242 = vand.u32 %v1003, 2147483648
        %v1243 = vor.u32 1.1754944e-38, %v1242
        %v1244 = vsel %vm1241, %v1243, %v1239
        %v1245 = vmul.f32 1.0, %v1244
        %v1246 = vrcp.pop %v1004
        %v1247 = vmul.f32 %v1004, %v1246
        %v1248 = vsub.f32 1.0, %v1247
        %v1249 = vmul.f32 %v1246, %v1248
        %v1250 = vadd.f32 %v1246, %v1249
        %vm1251 = vweird.f32 %v1004
        %vm1252 = vweird.f32 %v1246
        %vm1253 = vmor %vm1251, %vm1252
        %v1254 = vsel %vm1253, %v1246, %v1250
        %v1255 = vand.u32 2147483647, %v1004
        %vm1256 = vcmp.eq.f32.partialorder %v1255, 8.507059e+37
        %v1257 = vand.u32 %v1004, 2147483648
        %v1258 = vor.u32 1.1754944e-38, %v1257
        %v1259 = vsel %vm1256, %v1258, %v1254
        %v1260 = vmul.f32 1.0, %v1259
        %v1261 = vrcp.pop %v1005
        %v1262 = vmul.f32 %v1005, %v1261
        %v1263 = vsub.f32 1.0, %v1262
        %v1264 = vmul.f32 %v1261, %v1263
        %v1265 = vadd.f32 %v1261, %v1264
        %vm1266 = vweird.f32 %v1005
        %vm1267 = vweird.f32 %v1261
        %vm1268 = vmor %vm1266, %vm1267
        %v1269 = vsel %vm1268, %v1261, %v1265
        %v1270 = vand.u32 2147483647, %v1005
        %vm1271 = vcmp.eq.f32.partialorder %v1270, 8.507059e+37
        %v1272 = vand.u32 %v1005, 2147483648
        %v1273 = vor.u32 1.1754944e-38, %v1272
        %v1274 = vsel %vm1271, %v1273, %v1269
        %v1275 = vmul.f32 1.0, %v1274
        %v1276 = vrcp.pop %v1006
        %v1277 = vmul.f32 %v1006, %v1276
        %v1278 = vsub.f32 1.0, %v1277
        %v1279 = vmul.f32 %v1276, %v1278
        %v1280 = vadd.f32 %v1276, %v1279
        %vm1281 = vweird.f32 %v1006
        %vm1282 = vweird.f32 %v1276
        %vm1283 = vmor %vm1281, %vm1282
        %v1284 = vsel %vm1283, %v1276, %v1280
        %v1285 = vand.u32 2147483647, %v1006
        %vm1286 = vcmp.eq.f32.partialorder %v1285, 8.507059e+37
        %v1287 = vand.u32 %v1006, 2147483648
        %v1288 = vor.u32 1.1754944e-38, %v1287
        %v1289 = vsel %vm1286, %v1288, %v1284
        %v1290 = vmul.f32 1.0, %v1289
        %v1291 = vrcp.pop %v1007
        %v1292 = vmul.f32 %v1007, %v1291
        %v1293 = vsub.f32 1.0, %v1292
        %v1294 = vmul.f32 %v1291, %v1293
        %v1295 = vadd.f32 %v1291, %v1294
        %vm1296 = vweird.f32 %v1007
        %vm1297 = vweird.f32 %v1291
        %vm1298 = vmor %vm1296, %vm1297
        %v1299 = vsel %vm1298, %v1291, %v1295
        %v1300 = vand.u32 2147483647, %v1007
        %vm1301 = vcmp.eq.f32.partialorder %v1300, 8.507059e+37
        %v1302 = vand.u32 %v1007, 2147483648
        %v1303 = vor.u32 1.1754944e-38, %v1302
        %v1304 = vsel %vm1301, %v1303, %v1299
        %v1305 = vmul.f32 1.0, %v1304
        %v1306 = vrcp.pop %v1008
        %v1307 = vmul.f32 %v1008, %v1306
        %v1308 = vsub.f32 1.0, %v1307
        %v1309 = vmul.f32 %v1306, %v1308
        %v1310 = vadd.f32 %v1306, %v1309
        %vm1311 = vweird.f32 %v1008
        %vm1312 = vweird.f32 %v1306
        %vm1313 = vmor %vm1311, %vm1312
        %v1314 = vsel %vm1313, %v1306, %v1310
        %v1315 = vand.u32 2147483647, %v1008
        %vm1316 = vcmp.eq.f32.partialorder %v1315, 8.507059e+37
        %v1317 = vand.u32 %v1008, 2147483648
        %v1318 = vor.u32 1.1754944e-38, %v1317
        %v1319 = vsel %vm1316, %v1318, %v1314
        %v1320 = vmul.f32 1.0, %v1319
        %v1321 = vrcp.pop %v1009
        %v1322 = vmul.f32 %v1009, %v1321
        %v1323 = vsub.f32 1.0, %v1322
        %v1324 = vmul.f32 %v1321, %v1323
        %v1325 = vadd.f32 %v1321, %v1324
        %vm1326 = vweird.f32 %v1009
        %vm1327 = vweird.f32 %v1321
        %vm1328 = vmor %vm1326, %vm1327
        %v1329 = vsel %vm1328, %v1321, %v1325
        %v1330 = vand.u32 2147483647, %v1009
        %vm1331 = vcmp.eq.f32.partialorder %v1330, 8.507059e+37
        %v1332 = vand.u32 %v1009, 2147483648
        %v1333 = vor.u32 1.1754944e-38, %v1332
        %v1334 = vsel %vm1331, %v1333, %v1329
        %v1335 = vmul.f32 1.0, %v1334
        %v1336 = vrcp.pop %v1010
        %v1337 = vmul.f32 %v1010, %v1336
        %v1338 = vsub.f32 1.0, %v1337
        %v1339 = vmul.f32 %v1336, %v1338
        %v1340 = vadd.f32 %v1336, %v1339
        %vm1341 = vweird.f32 %v1010
        %vm1342 = vweird.f32 %v1336
        %vm1343 = vmor %vm1341, %vm1342
        %v1344 = vsel %vm1343, %v1336, %v1340
        %v1345 = vand.u32 2147483647, %v1010
        %vm1346 = vcmp.eq.f32.partialorder %v1345, 8.507059e+37
        %v1347 = vand.u32 %v1010, 2147483648
        %v1348 = vor.u32 1.1754944e-38, %v1347
        %v1349 = vsel %vm1346, %v1348, %v1344
        %v1350 = vmul.f32 1.0, %v1349
        %v1351 = vrcp.pop %v1011
        %v1352 = vmul.f32 %v1011, %v1351
        %v1353 = vsub.f32 1.0, %v1352
        %v1354 = vmul.f32 %v1351, %v1353
        %v1355 = vadd.f32 %v1351, %v1354
        %vm1356 = vweird.f32 %v1011
        %vm1357 = vweird.f32 %v1351
        %vm1358 = vmor %vm1356, %vm1357
        %v1359 = vsel %vm1358, %v1351, %v1355
        %v1360 = vand.u32 2147483647, %v1011
        %vm1361 = vcmp.eq.f32.partialorder %v1360, 8.507059e+37
        %v1362 = vand.u32 %v1011, 2147483648
        %v1363 = vor.u32 1.1754944e-38, %v1362
        %v1364 = vsel %vm1361, %v1363, %v1359
        %v1365 = vmul.f32 1.0, %v1364
        %v1366 = vrcp.pop %v1012
        %v1367 = vmul.f32 %v1012, %v1366
        %v1368 = vsub.f32 1.0, %v1367
        %v1369 = vmul.f32 %v1366, %v1368
        %v1370 = vadd.f32 %v1366, %v1369
        %vm1371 = vweird.f32 %v1012
        %vm1372 = vweird.f32 %v1366
        %vm1373 = vmor %vm1371, %vm1372
        %v1374 = vsel %vm1373, %v1366, %v1370
        %v1375 = vand.u32 2147483647, %v1012
        %vm1376 = vcmp.eq.f32.partialorder %v1375, 8.507059e+37
        %v1377 = vand.u32 %v1012, 2147483648
        %v1378 = vor.u32 1.1754944e-38, %v1377
        %v1379 = vsel %vm1376, %v1378, %v1374
        %v1380 = vmul.f32 1.0, %v1379
        %v1381 = vrcp.pop %v1013
        %v1382 = vmul.f32 %v1013, %v1381
        %v1383 = vsub.f32 1.0, %v1382
        %v1384 = vmul.f32 %v1381, %v1383
        %v1385 = vadd.f32 %v1381, %v1384
        %vm1386 = vweird.f32 %v1013
        %vm1387 = vweird.f32 %v1381
        %vm1388 = vmor %vm1386, %vm1387
        %v1389 = vsel %vm1388, %v1381, %v1385
        %v1390 = vand.u32 2147483647, %v1013
        %vm1391 = vcmp.eq.f32.partialorder %v1390, 8.507059e+37
        %v1392 = vand.u32 %v1013, 2147483648
        %v1393 = vor.u32 1.1754944e-38, %v1392
        %v1394 = vsel %vm1391, %v1393, %v1389
        %v1395 = vmul.f32 1.0, %v1394
        %v1396 = vrcp.pop %v1014
        %v1397 = vmul.f32 %v1014, %v1396
        %v1398 = vsub.f32 1.0, %v1397
        %v1399 = vmul.f32 %v1396, %v1398
        %v1400 = vadd.f32 %v1396, %v1399
        %vm1401 = vweird.f32 %v1014
        %vm1402 = vweird.f32 %v1396
        %vm1403 = vmor %vm1401, %vm1402
        %v1404 = vsel %vm1403, %v1396, %v1400
        %v1405 = vand.u32 2147483647, %v1014
        %vm1406 = vcmp.eq.f32.partialorder %v1405, 8.507059e+37
        %v1407 = vand.u32 %v1014, 2147483648
        %v1408 = vor.u32 1.1754944e-38, %v1407
        %v1409 = vsel %vm1406, %v1408, %v1404
        %v1410 = vmul.f32 1.0, %v1409
        %v1411 = vrcp.pop %v1015
        %v1412 = vmul.f32 %v1015, %v1411
        %v1413 = vsub.f32 1.0, %v1412
        %v1414 = vmul.f32 %v1411, %v1413
        %v1415 = vadd.f32 %v1411, %v1414
        %vm1416 = vweird.f32 %v1015
        %vm1417 = vweird.f32 %v1411
        %vm1418 = vmor %vm1416, %vm1417
        %v1419 = vsel %vm1418, %v1411, %v1415
        %v1420 = vand.u32 2147483647, %v1015
        %vm1421 = vcmp.eq.f32.partialorder %v1420, 8.507059e+37
        %v1422 = vand.u32 %v1015, 2147483648
        %v1423 = vor.u32 1.1754944e-38, %v1422
        %v1424 = vsel %vm1421, %v1423, %v1419
        %v1425 = vmul.f32 1.0, %v1424
        %v1426 = vrcp.pop %v1016
        %v1427 = vmul.f32 %v1016, %v1426
        %v1428 = vsub.f32 1.0, %v1427
        %v1429 = vmul.f32 %v1426, %v1428
        %v1430 = vadd.f32 %v1426, %v1429
        %vm1431 = vweird.f32 %v1016
        %vm1432 = vweird.f32 %v1426
        %vm1433 = vmor %vm1431, %vm1432
        %v1434 = vsel %vm1433, %v1426, %v1430
        %v1435 = vand.u32 2147483647, %v1016
        %vm1436 = vcmp.eq.f32.partialorder %v1435, 8.507059e+37
        %v1437 = vand.u32 %v1016, 2147483648
        %v1438 = vor.u32 1.1754944e-38, %v1437
        %v1439 = vsel %vm1436, %v1438, %v1434
        %v1440 = vmul.f32 1.0, %v1439
        %v1441 = vrcp.pop %v1017
        %v1442 = vmul.f32 %v1017, %v1441
        %v1443 = vsub.f32 1.0, %v1442
        %v1444 = vmul.f32 %v1441, %v1443
        %v1445 = vadd.f32 %v1441, %v1444
        %vm1446 = vweird.f32 %v1017
        %vm1447 = vweird.f32 %v1441
        %vm1448 = vmor %vm1446, %vm1447
        %v1449 = vsel %vm1448, %v1441, %v1445
        %v1450 = vand.u32 2147483647, %v1017
        %vm1451 = vcmp.eq.f32.partialorder %v1450, 8.507059e+37
        %v1452 = vand.u32 %v1017, 2147483648
        %v1453 = vor.u32 1.1754944e-38, %v1452
        %v1454 = vsel %vm1451, %v1453, %v1449
        %v1455 = vmul.f32 1.0, %v1454
        %v1456 = vrcp.pop %v1018
        %v1457 = vmul.f32 %v1018, %v1456
        %v1458 = vsub.f32 1.0, %v1457
        %v1459 = vmul.f32 %v1456, %v1458
        %v1460 = vadd.f32 %v1456, %v1459
        %vm1461 = vweird.f32 %v1018
        %vm1462 = vweird.f32 %v1456
        %vm1463 = vmor %vm1461, %vm1462
        %v1464 = vsel %vm1463, %v1456, %v1460
        %v1465 = vand.u32 2147483647, %v1018
        %vm1466 = vcmp.eq.f32.partialorder %v1465, 8.507059e+37
        %v1467 = vand.u32 %v1018, 2147483648
        %v1468 = vor.u32 1.1754944e-38, %v1467
        %v1469 = vsel %vm1466, %v1468, %v1464
        %v1470 = vmul.f32 1.0, %v1469
        %v1471 = vrcp.pop %v1019
        %v1472 = vmul.f32 %v1019, %v1471
        %v1473 = vsub.f32 1.0, %v1472
        %v1474 = vmul.f32 %v1471, %v1473
        %v1475 = vadd.f32 %v1471, %v1474
        %vm1476 = vweird.f32 %v1019
        %vm1477 = vweird.f32 %v1471
        %vm1478 = vmor %vm1476, %vm1477
        %v1479 = vsel %vm1478, %v1471, %v1475
        %v1480 = vand.u32 2147483647, %v1019
        %vm1481 = vcmp.eq.f32.partialorder %v1480, 8.507059e+37
        %v1482 = vand.u32 %v1019, 2147483648
        %v1483 = vor.u32 1.1754944e-38, %v1482
        %v1484 = vsel %vm1481, %v1483, %v1479
        %v1485 = vmul.f32 1.0, %v1484
        %v1486 = vrcp.pop %v1020
        %v1487 = vmul.f32 %v1020, %v1486
        %v1488 = vsub.f32 1.0, %v1487
        %v1489 = vmul.f32 %v1486, %v1488
        %v1490 = vadd.f32 %v1486, %v1489
        %vm1491 = vweird.f32 %v1020
        %vm1492 = vweird.f32 %v1486
        %vm1493 = vmor %vm1491, %vm1492
        %v1494 = vsel %vm1493, %v1486, %v1490
        %v1495 = vand.u32 2147483647, %v1020
        %vm1496 = vcmp.eq.f32.partialorder %v1495, 8.507059e+37
        %v1497 = vand.u32 %v1020, 2147483648
        %v1498 = vor.u32 1.1754944e-38, %v1497
        %v1499 = vsel %vm1496, %v1498, %v1494
        %v1500 = vmul.f32 1.0, %v1499
        %v1501 = vmul.f32 %v861, %v1035
        %v1502 = vmul.f32 %v862, %v1050
        %v1503 = vmul.f32 %v863, %v1065
        %v1504 = vmul.f32 %v864, %v1080
        %v1505 = vmul.f32 %v865, %v1095
        %v1506 = vmul.f32 %v866, %v1110
        %v1507 = vmul.f32 %v867, %v1125
        %v1508 = vmul.f32 %v868, %v1140
        %v1509 = vmul.f32 %v869, %v1155
        %v1510 = vmul.f32 %v870, %v1170
        %v1511 = vmul.f32 %v871, %v1185
        %v1512 = vmul.f32 %v872, %v1200
        %v1513 = vmul.f32 %v873, %v1215
        %v1514 = vmul.f32 %v874, %v1230
        %v1515 = vmul.f32 %v875, %v1245
        %v1516 = vmul.f32 %v876, %v1260
        %v1517 = vmul.f32 %v877, %v1275
        %v1518 = vmul.f32 %v878, %v1290
        %v1519 = vmul.f32 %v879, %v1305
        %v1520 = vmul.f32 %v880, %v1320
        %v1521 = vmul.f32 %v881, %v1335
        %v1522 = vmul.f32 %v882, %v1350
        %v1523 = vmul.f32 %v883, %v1365
        %v1524 = vmul.f32 %v884, %v1380
        %v1525 = vmul.f32 %v885, %v1395
        %v1526 = vmul.f32 %v886, %v1410
        %v1527 = vmul.f32 %v887, %v1425
        %v1528 = vmul.f32 %v888, %v1440
        %v1529 = vmul.f32 %v889, %v1455
        %v1530 = vmul.f32 %v890, %v1470
        %v1531 = vmul.f32 %v891, %v1485
        %v1532 = vmul.f32 %v892, %v1500
        %vm1564 = vcmask 1040384
        %v1565 = vrot.slane 0.0, 7
        %v1566 = vsel %vm1564, %v1565, %v1565
        %v1567 = vrot.slane %v1501, 7
        %v1568 = vrot.slane %v1502, 7
        %v1569 = vsel %vm1564, %v1567, %v1568
        %v1570 = vrot.slane %v1503, 7
        %v1571 = vrot.slane %v1504, 7
        %v1572 = vsel %vm1564, %v1570, %v1571
        %v1573 = vrot.slane %v1505, 7
        %v1574 = vrot.slane %v1506, 7
        %v1575 = vsel %vm1564, %v1573, %v1574
        %v1576 = vrot.slane %v1507, 7
        %v1577 = vrot.slane %v1508, 7
        %v1578 = vsel %vm1564, %v1576, %v1577
        %v1579 = vrot.slane %v1509, 7
        %v1580 = vrot.slane %v1510, 7
        %v1581 = vsel %vm1564, %v1579, %v1580
        %v1582 = vrot.slane %v1511, 7
        %v1583 = vrot.slane %v1512, 7
        %v1584 = vsel %vm1564, %v1582, %v1583
        %v1585 = vrot.slane %v1513, 7
        %v1586 = vrot.slane %v1514, 7
        %v1587 = vsel %vm1564, %v1585, %v1586
        %v1588 = vrot.slane %v1515, 7
        %v1589 = vrot.slane %v1516, 7
        %v1590 = vsel %vm1564, %v1588, %v1589
        %v1591 = vrot.slane %v1517, 7
        %v1592 = vrot.slane %v1518, 7
        %v1593 = vsel %vm1564, %v1591, %v1592
        %v1594 = vrot.slane %v1519, 7
        %v1595 = vrot.slane %v1520, 7
        %v1596 = vsel %vm1564, %v1594, %v1595
        %v1597 = vrot.slane %v1521, 7
        %v1598 = vrot.slane %v1522, 7
        %v1599 = vsel %vm1564, %v1597, %v1598
        %v1600 = vrot.slane %v1523, 7
        %v1601 = vrot.slane %v1524, 7
        %v1602 = vsel %vm1564, %v1600, %v1601
        %v1603 = vrot.slane %v1525, 7
        %v1604 = vrot.slane %v1526, 7
        %v1605 = vsel %vm1564, %v1603, %v1604
        %v1606 = vrot.slane %v1527, 7
        %v1607 = vrot.slane %v1528, 7
        %v1608 = vsel %vm1564, %v1606, %v1607
        %v1609 = vrot.slane %v1529, 7
        %v1610 = vrot.slane %v1530, 7
        %v1611 = vsel %vm1564, %v1609, %v1610
        %v1644 = vsel %vm1564, 0.0, %v1565
        %v1645 = vsel %vm1564, 0.0, %v1567
        %v1646 = vsel %vm1564, 0.0, %v1570
        %v1647 = vsel %vm1564, 0.0, %v1573
        %v1648 = vsel %vm1564, 0.0, %v1576
        %v1649 = vsel %vm1564, 0.0, %v1579
        %v1650 = vsel %vm1564, 0.0, %v1582
        %v1651 = vsel %vm1564, 0.0, %v1585
        %v1652 = vsel %vm1564, 0.0, %v1588
        %v1653 = vsel %vm1564, 0.0, %v1591
        %v1654 = vsel %vm1564, 0.0, %v1594
        %v1655 = vsel %vm1564, 0.0, %v1597
        %v1656 = vsel %vm1564, 0.0, %v1600
        %v1657 = vsel %vm1564, 0.0, %v1603
        %v1658 = vsel %vm1564, 0.0, %v1606
        %v1659 = vsel %vm1564, 0.0, %v1609
        %vm1660 = vcmask 1046528
        %v1661 = vrot.slane 0.0, 1
        %v1662 = vsel %vm1660, %v1661, %v1661
        %v1663 = vrot.slane %v1501, 1
        %v1664 = vrot.slane %v1502, 1
        %v1665 = vsel %vm1660, %v1663, %v1664
        %v1666 = vrot.slane %v1503, 1
        %v1667 = vrot.slane %v1504, 1
        %v1668 = vsel %vm1660, %v1666, %v1667
        %v1669 = vrot.slane %v1505, 1
        %v1670 = vrot.slane %v1506, 1
        %v1671 = vsel %vm1660, %v1669, %v1670
        %v1672 = vrot.slane %v1507, 1
        %v1673 = vrot.slane %v1508, 1
        %v1674 = vsel %vm1660, %v1672, %v1673
        %v1675 = vrot.slane %v1509, 1
        %v1676 = vrot.slane %v1510, 1
        %v1677 = vsel %vm1660, %v1675, %v1676
        %v1678 = vrot.slane %v1511, 1
        %v1679 = vrot.slane %v1512, 1
        %v1680 = vsel %vm1660, %v1678, %v1679
        %v1681 = vrot.slane %v1513, 1
        %v1682 = vrot.slane %v1514, 1
        %v1683 = vsel %vm1660, %v1681, %v1682
        %v1684 = vrot.slane %v1515, 1
        %v1685 = vrot.slane %v1516, 1
        %v1686 = vsel %vm1660, %v1684, %v1685
        %v1687 = vrot.slane %v1517, 1
        %v1688 = vrot.slane %v1518, 1
        %v1689 = vsel %vm1660, %v1687, %v1688
        %v1690 = vrot.slane %v1519, 1
        %v1691 = vrot.slane %v1520, 1
        %v1692 = vsel %vm1660, %v1690, %v1691
        %v1693 = vrot.slane %v1521, 1
        %v1694 = vrot.slane %v1522, 1
        %v1695 = vsel %vm1660, %v1693, %v1694
        %v1696 = vrot.slane %v1523, 1
        %v1697 = vrot.slane %v1524, 1
        %v1698 = vsel %vm1660, %v1696, %v1697
        %v1699 = vrot.slane %v1525, 1
        %v1700 = vrot.slane %v1526, 1
        %v1701 = vsel %vm1660, %v1699, %v1700
        %v1702 = vrot.slane %v1527, 1
        %v1703 = vrot.slane %v1528, 1
        %v1704 = vsel %vm1660, %v1702, %v1703
        %v1705 = vrot.slane %v1529, 1
        %v1706 = vrot.slane %v1530, 1
        %v1707 = vsel %vm1660, %v1705, %v1706
        %v1724 = vsel %vm1660, %v1661, 0.0
        %v1725 = vsel %vm1660, %v1664, 0.0
        %v1726 = vsel %vm1660, %v1667, 0.0
        %v1727 = vsel %vm1660, %v1670, 0.0
        %v1728 = vsel %vm1660, %v1673, 0.0
        %v1729 = vsel %vm1660, %v1676, 0.0
        %v1730 = vsel %vm1660, %v1679, 0.0
        %v1731 = vsel %vm1660, %v1682, 0.0
        %v1732 = vsel %vm1660, %v1685, 0.0
        %v1733 = vsel %vm1660, %v1688, 0.0
        %v1734 = vsel %vm1660, %v1691, 0.0
        %v1735 = vsel %vm1660, %v1694, 0.0
        %v1736 = vsel %vm1660, %v1697, 0.0
        %v1737 = vsel %vm1660, %v1700, 0.0
        %v1738 = vsel %vm1660, %v1703, 0.0
        %v1739 = vsel %vm1660, %v1706, 0.0
        %v1742 = vrot.slane %v1531, 7
        %v1743 = vrot.slane %v1532, 7
        %v1744 = vsel %vm1564, %v1742, %v1743
        %v1746 = vsel %vm1564, 0.0, %v1742
        %v1747 = vrot.slane %v1531, 1
        %v1748 = vrot.slane %v1532, 1
        %v1749 = vsel %vm1660, %v1747, %v1748
        %v1751 = vsel %vm1660, %v1748, 0.0
        %1752 = vrot.lane.b32.xlu0 0.0, 8
        %v1753 = vpop.permute.xlu0 %1752
        %1754 = vrot.lane.b32.xlu0 %v1501, 8
        %v1755 = vpop.permute.xlu0 %1754
        %1756 = vrot.lane.b32.xlu0 %v1502, 8
        %v1757 = vpop.permute.xlu0 %1756
        %1758 = vrot.lane.b32.xlu0 %v1503, 8
        %v1759 = vpop.permute.xlu0 %1758
        %1760 = vrot.lane.b32.xlu0 %v1504, 8
        %v1761 = vpop.permute.xlu0 %1760
        %1762 = vrot.lane.b32.xlu0 %v1505, 8
        %v1763 = vpop.permute.xlu0 %1762
        %1764 = vrot.lane.b32.xlu0 %v1506, 8
        %v1765 = vpop.permute.xlu0 %1764
        %1766 = vrot.lane.b32.xlu0 %v1507, 8
        %v1767 = vpop.permute.xlu0 %1766
        %1768 = vrot.lane.b32.xlu0 %v1508, 8
        %v1769 = vpop.permute.xlu0 %1768
        %1770 = vrot.lane.b32.xlu0 %v1509, 8
        %v1771 = vpop.permute.xlu0 %1770
        %1772 = vrot.lane.b32.xlu0 %v1510, 8
        %v1773 = vpop.permute.xlu0 %1772
        %1774 = vrot.lane.b32.xlu0 %v1511, 8
        %v1775 = vpop.permute.xlu0 %1774
        %1776 = vrot.lane.b32.xlu0 %v1512, 8
        %v1777 = vpop.permute.xlu0 %1776
        %1778 = vrot.lane.b32.xlu0 %v1513, 8
        %v1779 = vpop.permute.xlu0 %1778
        %1780 = vrot.lane.b32.xlu0 %v1514, 8
        %v1781 = vpop.permute.xlu0 %1780
        %1782 = vrot.lane.b32.xlu0 %v1515, 8
        %v1783 = vpop.permute.xlu0 %1782
        %1784 = vrot.lane.b32.xlu0 %v1516, 8
        %v1785 = vpop.permute.xlu0 %1784
        %1786 = vrot.lane.b32.xlu0 %v1517, 8
        %v1787 = vpop.permute.xlu0 %1786
        %1788 = vrot.lane.b32.xlu0 %v1518, 8
        %v1789 = vpop.permute.xlu0 %1788
        %1790 = vrot.lane.b32.xlu0 %v1519, 8
        %v1791 = vpop.permute.xlu0 %1790
        %1792 = vrot.lane.b32.xlu0 %v1520, 8
        %v1793 = vpop.permute.xlu0 %1792
        %1794 = vrot.lane.b32.xlu0 %v1521, 8
        %v1795 = vpop.permute.xlu0 %1794
        %1796 = vrot.lane.b32.xlu0 %v1522, 8
        %v1797 = vpop.permute.xlu0 %1796
        %1798 = vrot.lane.b32.xlu0 %v1523, 8
        %v1799 = vpop.permute.xlu0 %1798
        %1800 = vrot.lane.b32.xlu0 %v1524, 8
        %v1801 = vpop.permute.xlu0 %1800
        %1802 = vrot.lane.b32.xlu0 %v1525, 8
        %v1803 = vpop.permute.xlu0 %1802
        %1804 = vrot.lane.b32.xlu0 %v1526, 8
        %v1805 = vpop.permute.xlu0 %1804
        %1806 = vrot.lane.b32.xlu0 %v1527, 8
        %v1807 = vpop.permute.xlu0 %1806
        %1808 = vrot.lane.b32.xlu0 %v1528, 8
        %v1809 = vpop.permute.xlu0 %1808
        %1810 = vrot.lane.b32.xlu0 %v1529, 8
        %v1811 = vpop.permute.xlu0 %1810
        %1812 = vrot.lane.b32.xlu0 %v1530, 8
        %v1813 = vpop.permute.xlu0 %1812
        %1861 = vrot.lane.b32.xlu0 %v1662, 16
        %v1862 = vpop.permute.xlu0 %1861
        %1863 = vrot.lane.b32.xlu0 %v1724, 16
        %v1864 = vpop.permute.xlu0 %1863
        %1865 = vrot.lane.b32.xlu0 %v1665, 16
        %v1866 = vpop.permute.xlu0 %1865
        %1867 = vrot.lane.b32.xlu0 %v1725, 16
        %v1868 = vpop.permute.xlu0 %1867
        %1869 = vrot.lane.b32.xlu0 %v1668, 16
        %v1870 = vpop.permute.xlu0 %1869
        %1871 = vrot.lane.b32.xlu0 %v1726, 16
        %v1872 = vpop.permute.xlu0 %1871
        %1873 = vrot.lane.b32.xlu0 %v1671, 16
        %v1874 = vpop.permute.xlu0 %1873
        %1875 = vrot.lane.b32.xlu0 %v1727, 16
        %v1876 = vpop.permute.xlu0 %1875
        %1877 = vrot.lane.b32.xlu0 %v1674, 16
        %v1878 = vpop.permute.xlu0 %1877
        %1879 = vrot.lane.b32.xlu0 %v1728, 16
        %v1880 = vpop.permute.xlu0 %1879
        %1881 = vrot.lane.b32.xlu0 %v1677, 16
        %v1882 = vpop.permute.xlu0 %1881
        %1883 = vrot.lane.b32.xlu0 %v1729, 16
        %v1884 = vpop.permute.xlu0 %1883
        %1885 = vrot.lane.b32.xlu0 %v1680, 16
        %v1886 = vpop.permute.xlu0 %1885
        %1887 = vrot.lane.b32.xlu0 %v1730, 16
        %v1888 = vpop.permute.xlu0 %1887
        %1889 = vrot.lane.b32.xlu0 %v1683, 16
        %v1890 = vpop.permute.xlu0 %1889
        %1891 = vrot.lane.b32.xlu0 %v1731, 16
        %v1892 = vpop.permute.xlu0 %1891
        %1893 = vrot.lane.b32.xlu0 %v1686, 16
        %v1894 = vpop.permute.xlu0 %1893
        %1895 = vrot.lane.b32.xlu0 %v1732, 16
        %v1896 = vpop.permute.xlu0 %1895
        %1897 = vrot.lane.b32.xlu0 %v1689, 16
        %v1898 = vpop.permute.xlu0 %1897
        %1899 = vrot.lane.b32.xlu0 %v1733, 16
        %v1900 = vpop.permute.xlu0 %1899
        %1901 = vrot.lane.b32.xlu0 %v1692, 16
        %v1902 = vpop.permute.xlu0 %1901
        %1903 = vrot.lane.b32.xlu0 %v1734, 16
        %v1904 = vpop.permute.xlu0 %1903
        %1905 = vrot.lane.b32.xlu0 %v1695, 16
        %v1906 = vpop.permute.xlu0 %1905
        %1907 = vrot.lane.b32.xlu0 %v1735, 16
        %v1908 = vpop.permute.xlu0 %1907
        %1909 = vrot.lane.b32.xlu0 %v1698, 16
        %v1910 = vpop.permute.xlu0 %1909
        %1911 = vrot.lane.b32.xlu0 %v1736, 16
        %v1912 = vpop.permute.xlu0 %1911
        %1913 = vrot.lane.b32.xlu0 %v1701, 16
        %v1914 = vpop.permute.xlu0 %1913
        %1915 = vrot.lane.b32.xlu0 %v1737, 16
        %v1916 = vpop.permute.xlu0 %1915
        %1917 = vrot.lane.b32.xlu0 %v1704, 16
        %v1918 = vpop.permute.xlu0 %1917
        %1919 = vrot.lane.b32.xlu0 %v1738, 16
        %v1920 = vpop.permute.xlu0 %1919
        %1921 = vrot.lane.b32.xlu0 %v1707, 16
        %v1922 = vpop.permute.xlu0 %1921
        %1923 = vrot.lane.b32.xlu0 %v1739, 16
        %v1924 = vpop.permute.xlu0 %1923
        %1973 = vrot.lane.b32.xlu0 %v1645, 24
        %v1974 = vpop.permute.xlu0 %1973
        %1975 = vrot.lane.b32.xlu0 %v1569, 24
        %v1976 = vpop.permute.xlu0 %1975
        %1977 = vrot.lane.b32.xlu0 %v1646, 24
        %v1978 = vpop.permute.xlu0 %1977
        %1979 = vrot.lane.b32.xlu0 %v1572, 24
        %v1980 = vpop.permute.xlu0 %1979
        %1981 = vrot.lane.b32.xlu0 %v1647, 24
        %v1982 = vpop.permute.xlu0 %1981
        %1983 = vrot.lane.b32.xlu0 %v1575, 24
        %v1984 = vpop.permute.xlu0 %1983
        %1985 = vrot.lane.b32.xlu0 %v1648, 24
        %v1986 = vpop.permute.xlu0 %1985
        %1987 = vrot.lane.b32.xlu0 %v1578, 24
        %v1988 = vpop.permute.xlu0 %1987
        %1989 = vrot.lane.b32.xlu0 %v1649, 24
        %v1990 = vpop.permute.xlu0 %1989
        %1991 = vrot.lane.b32.xlu0 %v1581, 24
        %v1992 = vpop.permute.xlu0 %1991
        %1993 = vrot.lane.b32.xlu0 %v1650, 24
        %v1994 = vpop.permute.xlu0 %1993
        %1995 = vrot.lane.b32.xlu0 %v1584, 24
        %v1996 = vpop.permute.xlu0 %1995
        %1997 = vrot.lane.b32.xlu0 %v1651, 24
        %v1998 = vpop.permute.xlu0 %1997
        %1999 = vrot.lane.b32.xlu0 %v1587, 24
        %v2000 = vpop.permute.xlu0 %1999
        %2001 = vrot.lane.b32.xlu0 %v1652, 24
        %v2002 = vpop.permute.xlu0 %2001
        %2003 = vrot.lane.b32.xlu0 %v1590, 24
        %v2004 = vpop.permute.xlu0 %2003
        %2005 = vrot.lane.b32.xlu0 %v1653, 24
        %v2006 = vpop.permute.xlu0 %2005
        %2007 = vrot.lane.b32.xlu0 %v1593, 24
        %v2008 = vpop.permute.xlu0 %2007
        %2009 = vrot.lane.b32.xlu0 %v1654, 24
        %v2010 = vpop.permute.xlu0 %2009
        %2011 = vrot.lane.b32.xlu0 %v1596, 24
        %v2012 = vpop.permute.xlu0 %2011
        %2013 = vrot.lane.b32.xlu0 %v1655, 24
        %v2014 = vpop.permute.xlu0 %2013
        %2015 = vrot.lane.b32.xlu0 %v1599, 24
        %v2016 = vpop.permute.xlu0 %2015
        %2017 = vrot.lane.b32.xlu0 %v1656, 24
        %v2018 = vpop.permute.xlu0 %2017
        %2019 = vrot.lane.b32.xlu0 %v1602, 24
        %v2020 = vpop.permute.xlu0 %2019
        %2021 = vrot.lane.b32.xlu0 %v1657, 24
        %v2022 = vpop.permute.xlu0 %2021
        %2023 = vrot.lane.b32.xlu0 %v1605, 24
        %v2024 = vpop.permute.xlu0 %2023
        %2025 = vrot.lane.b32.xlu0 %v1658, 24
        %v2026 = vpop.permute.xlu0 %2025
        %2027 = vrot.lane.b32.xlu0 %v1608, 24
        %v2028 = vpop.permute.xlu0 %2027
        %2029 = vrot.lane.b32.xlu0 %v1659, 24
        %v2030 = vpop.permute.xlu0 %2029
        %2031 = vrot.lane.b32.xlu0 %v1611, 24
        %v2032 = vpop.permute.xlu0 %2031
        %2033 = vrot.lane.b32.xlu0 %v1746, 24
        %v2034 = vpop.permute.xlu0 %2033
        %2035 = vrot.lane.b32.xlu0 %v1744, 24
        %v2036 = vpop.permute.xlu0 %2035
        %2069 = vrot.lane.b32.xlu0 %v1501, 32
        %v2070 = vpop.permute.xlu0 %2069
        %2071 = vrot.lane.b32.xlu0 %v1502, 32
        %v2072 = vpop.permute.xlu0 %2071
        %2073 = vrot.lane.b32.xlu0 %v1503, 32
        %v2074 = vpop.permute.xlu0 %2073
        %2075 = vrot.lane.b32.xlu0 %v1504, 32
        %v2076 = vpop.permute.xlu0 %2075
        %2077 = vrot.lane.b32.xlu0 %v1505, 32
        %v2078 = vpop.permute.xlu0 %2077
        %2079 = vrot.lane.b32.xlu0 %v1506, 32
        %v2080 = vpop.permute.xlu0 %2079
        %2081 = vrot.lane.b32.xlu0 %v1507, 32
        %v2082 = vpop.permute.xlu0 %2081
        %2083 = vrot.lane.b32.xlu0 %v1508, 32
        %v2084 = vpop.permute.xlu0 %2083
        %2085 = vrot.lane.b32.xlu0 %v1509, 32
        %v2086 = vpop.permute.xlu0 %2085
        %2087 = vrot.lane.b32.xlu0 %v1510, 32
        %v2088 = vpop.permute.xlu0 %2087
        %2089 = vrot.lane.b32.xlu0 %v1511, 32
        %v2090 = vpop.permute.xlu0 %2089
        %2091 = vrot.lane.b32.xlu0 %v1512, 32
        %v2092 = vpop.permute.xlu0 %2091
        %2093 = vrot.lane.b32.xlu0 %v1513, 32
        %v2094 = vpop.permute.xlu0 %2093
        %2095 = vrot.lane.b32.xlu0 %v1514, 32
        %v2096 = vpop.permute.xlu0 %2095
        %2097 = vrot.lane.b32.xlu0 %v1515, 32
        %v2098 = vpop.permute.xlu0 %2097
        %2099 = vrot.lane.b32.xlu0 %v1516, 32
        %v2100 = vpop.permute.xlu0 %2099
        %2101 = vrot.lane.b32.xlu0 %v1517, 32
        %v2102 = vpop.permute.xlu0 %2101
        %2103 = vrot.lane.b32.xlu0 %v1518, 32
        %v2104 = vpop.permute.xlu0 %2103
        %2105 = vrot.lane.b32.xlu0 %v1519, 32
        %v2106 = vpop.permute.xlu0 %2105
        %2107 = vrot.lane.b32.xlu0 %v1520, 32
        %v2108 = vpop.permute.xlu0 %2107
        %2109 = vrot.lane.b32.xlu0 %v1521, 32
        %v2110 = vpop.permute.xlu0 %2109
        %2111 = vrot.lane.b32.xlu0 %v1522, 32
        %v2112 = vpop.permute.xlu0 %2111
        %2113 = vrot.lane.b32.xlu0 %v1523, 32
        %v2114 = vpop.permute.xlu0 %2113
        %2115 = vrot.lane.b32.xlu0 %v1524, 32
        %v2116 = vpop.permute.xlu0 %2115
        %2117 = vrot.lane.b32.xlu0 %v1525, 32
        %v2118 = vpop.permute.xlu0 %2117
        %2119 = vrot.lane.b32.xlu0 %v1526, 32
        %v2120 = vpop.permute.xlu0 %2119
        %2121 = vrot.lane.b32.xlu0 %v1527, 32
        %v2122 = vpop.permute.xlu0 %2121
        %2123 = vrot.lane.b32.xlu0 %v1528, 32
        %v2124 = vpop.permute.xlu0 %2123
        %2125 = vrot.lane.b32.xlu0 %v1529, 32
        %v2126 = vpop.permute.xlu0 %2125
        %2127 = vrot.lane.b32.xlu0 %v1530, 32
        %v2128 = vpop.permute.xlu0 %2127
        %2129 = vrot.lane.b32.xlu0 %v1531, 32
        %v2130 = vpop.permute.xlu0 %2129
        %2131 = vrot.lane.b32.xlu0 %v1532, 32
        %v2132 = vpop.permute.xlu0 %2131
        %2166 = vrot.lane.b32.xlu0 %v1665, 40
        %v2167 = vpop.permute.xlu0 %2166
        %2168 = vrot.lane.b32.xlu0 %v1725, 40
        %v2169 = vpop.permute.xlu0 %2168
        %2170 = vrot.lane.b32.xlu0 %v1668, 40
        %v2171 = vpop.permute.xlu0 %2170
        %2172 = vrot.lane.b32.xlu0 %v1726, 40
        %v2173 = vpop.permute.xlu0 %2172
        %2174 = vrot.lane.b32.xlu0 %v1671, 40
        %v2175 = vpop.permute.xlu0 %2174
        %2176 = vrot.lane.b32.xlu0 %v1727, 40
        %v2177 = vpop.permute.xlu0 %2176
        %2178 = vrot.lane.b32.xlu0 %v1674, 40
        %v2179 = vpop.permute.xlu0 %2178
        %2180 = vrot.lane.b32.xlu0 %v1728, 40
        %v2181 = vpop.permute.xlu0 %2180
        %2182 = vrot.lane.b32.xlu0 %v1677, 40
        %v2183 = vpop.permute.xlu0 %2182
        %2184 = vrot.lane.b32.xlu0 %v1729, 40
        %v2185 = vpop.permute.xlu0 %2184
        %2186 = vrot.lane.b32.xlu0 %v1680, 40
        %v2187 = vpop.permute.xlu0 %2186
        %2188 = vrot.lane.b32.xlu0 %v1730, 40
        %v2189 = vpop.permute.xlu0 %2188
        %2190 = vrot.lane.b32.xlu0 %v1683, 40
        %v2191 = vpop.permute.xlu0 %2190
        %2192 = vrot.lane.b32.xlu0 %v1731, 40
        %v2193 = vpop.permute.xlu0 %2192
        %2194 = vrot.lane.b32.xlu0 %v1686, 40
        %v2195 = vpop.permute.xlu0 %2194
        %2196 = vrot.lane.b32.xlu0 %v1732, 40
        %v2197 = vpop.permute.xlu0 %2196
        %2198 = vrot.lane.b32.xlu0 %v1689, 40
        %v2199 = vpop.permute.xlu0 %2198
        %2200 = vrot.lane.b32.xlu0 %v1733, 40
        %v2201 = vpop.permute.xlu0 %2200
        %2202 = vrot.lane.b32.xlu0 %v1692, 40
        %v2203 = vpop.permute.xlu0 %2202
        %2204 = vrot.lane.b32.xlu0 %v1734, 40
        %v2205 = vpop.permute.xlu0 %2204
        %2206 = vrot.lane.b32.xlu0 %v1695, 40
        %v2207 = vpop.permute.xlu0 %2206
        %2208 = vrot.lane.b32.xlu0 %v1735, 40
        %v2209 = vpop.permute.xlu0 %2208
        %2210 = vrot.lane.b32.xlu0 %v1698, 40
        %v2211 = vpop.permute.xlu0 %2210
        %2212 = vrot.lane.b32.xlu0 %v1736, 40
        %v2213 = vpop.permute.xlu0 %2212
        %2214 = vrot.lane.b32.xlu0 %v1701, 40
        %v2215 = vpop.permute.xlu0 %2214
        %2216 = vrot.lane.b32.xlu0 %v1737, 40
        %v2217 = vpop.permute.xlu0 %2216
        %2218 = vrot.lane.b32.xlu0 %v1704, 40
        %v2219 = vpop.permute.xlu0 %2218
        %2220 = vrot.lane.b32.xlu0 %v1738, 40
        %v2221 = vpop.permute.xlu0 %2220
        %2222 = vrot.lane.b32.xlu0 %v1707, 40
        %v2223 = vpop.permute.xlu0 %2222
        %2224 = vrot.lane.b32.xlu0 %v1739, 40
        %v2225 = vpop.permute.xlu0 %2224
        %2226 = vrot.lane.b32.xlu0 %v1749, 40
        %v2227 = vpop.permute.xlu0 %2226
        %2228 = vrot.lane.b32.xlu0 %v1751, 40
        %v2229 = vpop.permute.xlu0 %2228
        %2263 = vrot.lane.b32.xlu0 %v1646, 48
        %v2264 = vpop.permute.xlu0 %2263
        %2265 = vrot.lane.b32.xlu0 %v1572, 48
        %v2266 = vpop.permute.xlu0 %2265
        %2267 = vrot.lane.b32.xlu0 %v1647, 48
        %v2268 = vpop.permute.xlu0 %2267
        %2269 = vrot.lane.b32.xlu0 %v1575, 48
        %v2270 = vpop.permute.xlu0 %2269
        %2271 = vrot.lane.b32.xlu0 %v1648, 48
        %v2272 = vpop.permute.xlu0 %2271
        %2273 = vrot.lane.b32.xlu0 %v1578, 48
        %v2274 = vpop.permute.xlu0 %2273
        %2275 = vrot.lane.b32.xlu0 %v1649, 48
        %v2276 = vpop.permute.xlu0 %2275
        %2277 = vrot.lane.b32.xlu0 %v1581, 48
        %v2278 = vpop.permute.xlu0 %2277
        %2279 = vrot.lane.b32.xlu0 %v1650, 48
        %v2280 = vpop.permute.xlu0 %2279
        %2281 = vrot.lane.b32.xlu0 %v1584, 48
        %v2282 = vpop.permute.xlu0 %2281
        %2283 = vrot.lane.b32.xlu0 %v1651, 48
        %v2284 = vpop.permute.xlu0 %2283
        %2285 = vrot.lane.b32.xlu0 %v1587, 48
        %v2286 = vpop.permute.xlu0 %2285
        %2287 = vrot.lane.b32.xlu0 %v1652, 48
        %v2288 = vpop.permute.xlu0 %2287
        %2289 = vrot.lane.b32.xlu0 %v1590, 48
        %v2290 = vpop.permute.xlu0 %2289
        %2291 = vrot.lane.b32.xlu0 %v1653, 48
        %v2292 = vpop.permute.xlu0 %2291
        %2293 = vrot.lane.b32.xlu0 %v1593, 48
        %v2294 = vpop.permute.xlu0 %2293
        %2295 = vrot.lane.b32.xlu0 %v1654, 48
        %v2296 = vpop.permute.xlu0 %2295
        %2297 = vrot.lane.b32.xlu0 %v1596, 48
        %v2298 = vpop.permute.xlu0 %2297
        %2299 = vrot.lane.b32.xlu0 %v1655, 48
        %v2300 = vpop.permute.xlu0 %2299
        %2301 = vrot.lane.b32.xlu0 %v1599, 48
        %v2302 = vpop.permute.xlu0 %2301
        %2303 = vrot.lane.b32.xlu0 %v1656, 48
        %v2304 = vpop.permute.xlu0 %2303
        %2305 = vrot.lane.b32.xlu0 %v1602, 48
        %v2306 = vpop.permute.xlu0 %2305
        %2307 = vrot.lane.b32.xlu0 %v1657, 48
        %v2308 = vpop.permute.xlu0 %2307
        %2309 = vrot.lane.b32.xlu0 %v1605, 48
        %v2310 = vpop.permute.xlu0 %2309
        %2311 = vrot.lane.b32.xlu0 %v1658, 48
        %v2312 = vpop.permute.xlu0 %2311
        %2313 = vrot.lane.b32.xlu0 %v1608, 48
        %v2314 = vpop.permute.xlu0 %2313
        %2315 = vrot.lane.b32.xlu0 %v1659, 48
        %v2316 = vpop.permute.xlu0 %2315
        %2317 = vrot.lane.b32.xlu0 %v1611, 48
        %v2318 = vpop.permute.xlu0 %2317
        %2319 = vrot.lane.b32.xlu0 %v1746, 48
        %v2320 = vpop.permute.xlu0 %2319
        %2321 = vrot.lane.b32.xlu0 %v1744, 48
        %v2322 = vpop.permute.xlu0 %2321
        %2323 = vrot.lane.b32.xlu0 %v1644, 48
        %v2324 = vpop.permute.xlu0 %2323
        %2325 = vrot.lane.b32.xlu0 %v1566, 48
        %v2326 = vpop.permute.xlu0 %2325
        %2359 = vrot.lane.b32.xlu0 %v1503, 56
        %v2360 = vpop.permute.xlu0 %2359
        %2361 = vrot.lane.b32.xlu0 %v1504, 56
        %v2362 = vpop.permute.xlu0 %2361
        %2363 = vrot.lane.b32.xlu0 %v1505, 56
        %v2364 = vpop.permute.xlu0 %2363
        %2365 = vrot.lane.b32.xlu0 %v1506, 56
        %v2366 = vpop.permute.xlu0 %2365
        %2367 = vrot.lane.b32.xlu0 %v1507, 56
        %v2368 = vpop.permute.xlu0 %2367
        %2369 = vrot.lane.b32.xlu0 %v1508, 56
        %v2370 = vpop.permute.xlu0 %2369
        %2371 = vrot.lane.b32.xlu0 %v1509, 56
        %v2372 = vpop.permute.xlu0 %2371
        %2373 = vrot.lane.b32.xlu0 %v1510, 56
        %v2374 = vpop.permute.xlu0 %2373
        %2375 = vrot.lane.b32.xlu0 %v1511, 56
        %v2376 = vpop.permute.xlu0 %2375
        %2377 = vrot.lane.b32.xlu0 %v1512, 56
        %v2378 = vpop.permute.xlu0 %2377
        %2379 = vrot.lane.b32.xlu0 %v1513, 56
        %v2380 = vpop.permute.xlu0 %2379
        %2381 = vrot.lane.b32.xlu0 %v1514, 56
        %v2382 = vpop.permute.xlu0 %2381
        %2383 = vrot.lane.b32.xlu0 %v1515, 56
        %v2384 = vpop.permute.xlu0 %2383
        %2385 = vrot.lane.b32.xlu0 %v1516, 56
        %v2386 = vpop.permute.xlu0 %2385
        %2387 = vrot.lane.b32.xlu0 %v1517, 56
        %v2388 = vpop.permute.xlu0 %2387
        %2389 = vrot.lane.b32.xlu0 %v1518, 56
        %v2390 = vpop.permute.xlu0 %2389
        %2391 = vrot.lane.b32.xlu0 %v1519, 56
        %v2392 = vpop.permute.xlu0 %2391
        %2393 = vrot.lane.b32.xlu0 %v1520, 56
        %v2394 = vpop.permute.xlu0 %2393
        %2395 = vrot.lane.b32.xlu0 %v1521, 56
        %v2396 = vpop.permute.xlu0 %2395
        %2397 = vrot.lane.b32.xlu0 %v1522, 56
        %v2398 = vpop.permute.xlu0 %2397
        %2399 = vrot.lane.b32.xlu0 %v1523, 56
        %v2400 = vpop.permute.xlu0 %2399
        %2401 = vrot.lane.b32.xlu0 %v1524, 56
        %v2402 = vpop.permute.xlu0 %2401
        %2403 = vrot.lane.b32.xlu0 %v1525, 56
        %v2404 = vpop.permute.xlu0 %2403
        %2405 = vrot.lane.b32.xlu0 %v1526, 56
        %v2406 = vpop.permute.xlu0 %2405
        %2407 = vrot.lane.b32.xlu0 %v1527, 56
        %v2408 = vpop.permute.xlu0 %2407
        %2409 = vrot.lane.b32.xlu0 %v1528, 56
        %v2410 = vpop.permute.xlu0 %2409
        %2411 = vrot.lane.b32.xlu0 %v1529, 56
        %v2412 = vpop.permute.xlu0 %2411
        %2413 = vrot.lane.b32.xlu0 %v1530, 56
        %v2414 = vpop.permute.xlu0 %2413
        %2415 = vrot.lane.b32.xlu0 %v1531, 56
        %v2416 = vpop.permute.xlu0 %2415
        %2417 = vrot.lane.b32.xlu0 %v1532, 56
        %v2418 = vpop.permute.xlu0 %2417
        %2419 = vrot.lane.b32.xlu0 0.0, 56
        %v2420 = vpop.permute.xlu0 %2419
        %2452 = vrot.lane.b32.xlu0 %v1668, 64
        %v2453 = vpop.permute.xlu0 %2452
        %2454 = vrot.lane.b32.xlu0 %v1726, 64
        %v2455 = vpop.permute.xlu0 %2454
        %2456 = vrot.lane.b32.xlu0 %v1671, 64
        %v2457 = vpop.permute.xlu0 %2456
        %2458 = vrot.lane.b32.xlu0 %v1727, 64
        %v2459 = vpop.permute.xlu0 %2458
        %2460 = vrot.lane.b32.xlu0 %v1674, 64
        %v2461 = vpop.permute.xlu0 %2460
        %2462 = vrot.lane.b32.xlu0 %v1728, 64
        %v2463 = vpop.permute.xlu0 %2462
        %2464 = vrot.lane.b32.xlu0 %v1677, 64
        %v2465 = vpop.permute.xlu0 %2464
        %2466 = vrot.lane.b32.xlu0 %v1729, 64
        %v2467 = vpop.permute.xlu0 %2466
        %2468 = vrot.lane.b32.xlu0 %v1680, 64
        %v2469 = vpop.permute.xlu0 %2468
        %2470 = vrot.lane.b32.xlu0 %v1730, 64
        %v2471 = vpop.permute.xlu0 %2470
        %2472 = vrot.lane.b32.xlu0 %v1683, 64
        %v2473 = vpop.permute.xlu0 %2472
        %2474 = vrot.lane.b32.xlu0 %v1731, 64
        %v2475 = vpop.permute.xlu0 %2474
        %2476 = vrot.lane.b32.xlu0 %v1686, 64
        %v2477 = vpop.permute.xlu0 %2476
        %2478 = vrot.lane.b32.xlu0 %v1732, 64
        %v2479 = vpop.permute.xlu0 %2478
        %2480 = vrot.lane.b32.xlu0 %v1689, 64
        %v2481 = vpop.permute.xlu0 %2480
        %2482 = vrot.lane.b32.xlu0 %v1733, 64
        %v2483 = vpop.permute.xlu0 %2482
        %2484 = vrot.lane.b32.xlu0 %v1692, 64
        %v2485 = vpop.permute.xlu0 %2484
        %2486 = vrot.lane.b32.xlu0 %v1734, 64
        %v2487 = vpop.permute.xlu0 %2486
        %2488 = vrot.lane.b32.xlu0 %v1695, 64
        %v2489 = vpop.permute.xlu0 %2488
        %2490 = vrot.lane.b32.xlu0 %v1735, 64
        %v2491 = vpop.permute.xlu0 %2490
        %2492 = vrot.lane.b32.xlu0 %v1698, 64
        %v2493 = vpop.permute.xlu0 %2492
        %2494 = vrot.lane.b32.xlu0 %v1736, 64
        %v2495 = vpop.permute.xlu0 %2494
        %2496 = vrot.lane.b32.xlu0 %v1701, 64
        %v2497 = vpop.permute.xlu0 %2496
        %2498 = vrot.lane.b32.xlu0 %v1737, 64
        %v2499 = vpop.permute.xlu0 %2498
        %2500 = vrot.lane.b32.xlu0 %v1704, 64
        %v2501 = vpop.permute.xlu0 %2500
        %2502 = vrot.lane.b32.xlu0 %v1738, 64
        %v2503 = vpop.permute.xlu0 %2502
        %2504 = vrot.lane.b32.xlu0 %v1707, 64
        %v2505 = vpop.permute.xlu0 %2504
        %2506 = vrot.lane.b32.xlu0 %v1739, 64
        %v2507 = vpop.permute.xlu0 %2506
        %2508 = vrot.lane.b32.xlu0 %v1749, 64
        %v2509 = vpop.permute.xlu0 %2508
        %2510 = vrot.lane.b32.xlu0 %v1751, 64
        %v2511 = vpop.permute.xlu0 %2510
        %2512 = vrot.lane.b32.xlu0 %v1662, 64
        %v2513 = vpop.permute.xlu0 %2512
        %2514 = vrot.lane.b32.xlu0 %v1724, 64
        %v2515 = vpop.permute.xlu0 %2514
        %v2548 = vsel %vm528, %v1644, %v1753
        %v2549 = vsel %vm528, %v1566, %v1753
        %v2550 = vsel %vm528, %v1645, %v1755
        %v2551 = vsel %vm528, %v1569, %v1757
        %v2552 = vsel %vm528, %v1646, %v1759
        %v2553 = vsel %vm528, %v1572, %v1761
        %v2554 = vsel %vm528, %v1647, %v1763
        %v2555 = vsel %vm528, %v1575, %v1765
        %v2556 = vsel %vm528, %v1648, %v1767
        %v2557 = vsel %vm528, %v1578, %v1769
        %v2558 = vsel %vm528, %v1649, %v1771
        %v2559 = vsel %vm528, %v1581, %v1773
        %v2560 = vsel %vm528, %v1650, %v1775
        %v2561 = vsel %vm528, %v1584, %v1777
        %v2562 = vsel %vm528, %v1651, %v1779
        %v2563 = vsel %vm528, %v1587, %v1781
        %v2564 = vsel %vm528, %v1652, %v1783
        %v2565 = vsel %vm528, %v1590, %v1785
        %v2566 = vsel %vm528, %v1653, %v1787
        %v2567 = vsel %vm528, %v1593, %v1789
        %v2568 = vsel %vm528, %v1654, %v1791
        %v2569 = vsel %vm528, %v1596, %v1793
        %v2570 = vsel %vm528, %v1655, %v1795
        %v2571 = vsel %vm528, %v1599, %v1797
        %v2572 = vsel %vm528, %v1656, %v1799
        %v2573 = vsel %vm528, %v1602, %v1801
        %v2574 = vsel %vm528, %v1657, %v1803
        %v2575 = vsel %vm528, %v1605, %v1805
        %v2576 = vsel %vm528, %v1658, %v1807
        %v2577 = vsel %vm528, %v1608, %v1809
        %v2578 = vsel %vm528, %v1659, %v1811
        %v2579 = vsel %vm528, %v1611, %v1813
        %vm2580 = vcmask 130048
        %v2581 = vsel %vm2580, %v2548, %v1862
        %v2582 = vsel %vm2580, %v2549, %v1864
        %v2583 = vsel %vm2580, %v2550, %v1866
        %v2584 = vsel %vm2580, %v2551, %v1868
        %v2585 = vsel %vm2580, %v2552, %v1870
        %v2586 = vsel %vm2580, %v2553, %v1872
        %v2587 = vsel %vm2580, %v2554, %v1874
        %v2588 = vsel %vm2580, %v2555, %v1876
        %v2589 = vsel %vm2580, %v2556, %v1878
        %v2590 = vsel %vm2580, %v2557, %v1880
        %v2591 = vsel %vm2580, %v2558, %v1882
        %v2592 = vsel %vm2580, %v2559, %v1884
        %v2593 = vsel %vm2580, %v2560, %v1886
        %v2594 = vsel %vm2580, %v2561, %v1888
        %v2595 = vsel %vm2580, %v2562, %v1890
        %v2596 = vsel %vm2580, %v2563, %v1892
        %v2597 = vsel %vm2580, %v2564, %v1894
        %v2598 = vsel %vm2580, %v2565, %v1896
        %v2599 = vsel %vm2580, %v2566, %v1898
        %v2600 = vsel %vm2580, %v2567, %v1900
        %v2601 = vsel %vm2580, %v2568, %v1902
        %v2602 = vsel %vm2580, %v2569, %v1904
        %v2603 = vsel %vm2580, %v2570, %v1906
        %v2604 = vsel %vm2580, %v2571, %v1908
        %v2605 = vsel %vm2580, %v2572, %v1910
        %v2606 = vsel %vm2580, %v2573, %v1912
        %v2607 = vsel %vm2580, %v2574, %v1914
        %v2608 = vsel %vm2580, %v2575, %v1916
        %v2609 = vsel %vm2580, %v2576, %v1918
        %v2610 = vsel %vm2580, %v2577, %v1920
        %v2611 = vsel %vm2580, %v2578, %v1922
        %v2612 = vsel %vm2580, %v2579, %v1924
        %vm2613 = vcmask 195584
        %v2614 = vsel %vm2613, %v2581, %v1974
        %v2615 = vsel %vm2613, %v2582, %v1976
        %v2616 = vsel %vm2613, %v2583, %v1978
        %v2617 = vsel %vm2613, %v2584, %v1980
        %v2618 = vsel %vm2613, %v2585, %v1982
        %v2619 = vsel %vm2613, %v2586, %v1984
        %v2620 = vsel %vm2613, %v2587, %v1986
        %v2621 = vsel %vm2613, %v2588, %v1988
        %v2622 = vsel %vm2613, %v2589, %v1990
        %v2623 = vsel %vm2613, %v2590, %v1992
        %v2624 = vsel %vm2613, %v2591, %v1994
        %v2625 = vsel %vm2613, %v2592, %v1996
        %v2626 = vsel %vm2613, %v2593, %v1998
        %v2627 = vsel %vm2613, %v2594, %v2000
        %v2628 = vsel %vm2613, %v2595, %v2002
        %v2629 = vsel %vm2613, %v2596, %v2004
        %v2630 = vsel %vm2613, %v2597, %v2006
        %v2631 = vsel %vm2613, %v2598, %v2008
        %v2632 = vsel %vm2613, %v2599, %v2010
        %v2633 = vsel %vm2613, %v2600, %v2012
        %v2634 = vsel %vm2613, %v2601, %v2014
        %v2635 = vsel %vm2613, %v2602, %v2016
        %v2636 = vsel %vm2613, %v2603, %v2018
        %v2637 = vsel %vm2613, %v2604, %v2020
        %v2638 = vsel %vm2613, %v2605, %v2022
        %v2639 = vsel %vm2613, %v2606, %v2024
        %v2640 = vsel %vm2613, %v2607, %v2026
        %v2641 = vsel %vm2613, %v2608, %v2028
        %v2642 = vsel %vm2613, %v2609, %v2030
        %v2643 = vsel %vm2613, %v2610, %v2032
        %v2644 = vsel %vm2613, %v2611, %v2034
        %v2645 = vsel %vm2613, %v2612, %v2036
        %vm2646 = vcmask 261120
        %v2647 = vsel %vm2646, %v2614, %v2070
        %v2648 = vsel %vm2646, %v2615, %v2072
        %v2649 = vsel %vm2646, %v2616, %v2074
        %v2650 = vsel %vm2646, %v2617, %v2076
        %v2651 = vsel %vm2646, %v2618, %v2078
        %v2652 = vsel %vm2646, %v2619, %v2080
        %v2653 = vsel %vm2646, %v2620, %v2082
        %v2654 = vsel %vm2646, %v2621, %v2084
        %v2655 = vsel %vm2646, %v2622, %v2086
        %v2656 = vsel %vm2646, %v2623, %v2088
        %v2657 = vsel %vm2646, %v2624, %v2090
        %v2658 = vsel %vm2646, %v2625, %v2092
        %v2659 = vsel %vm2646, %v2626, %v2094
        %v2660 = vsel %vm2646, %v2627, %v2096
        %v2661 = vsel %vm2646, %v2628, %v2098
        %v2662 = vsel %vm2646, %v2629, %v2100
        %v2663 = vsel %vm2646, %v2630, %v2102
        %v2664 = vsel %vm2646, %v2631, %v2104
        %v2665 = vsel %vm2646, %v2632, %v2106
        %v2666 = vsel %vm2646, %v2633, %v2108
        %v2667 = vsel %vm2646, %v2634, %v2110
        %v2668 = vsel %vm2646, %v2635, %v2112
        %v2669 = vsel %vm2646, %v2636, %v2114
        %v2670 = vsel %vm2646, %v2637, %v2116
        %v2671 = vsel %vm2646, %v2638, %v2118
        %v2672 = vsel %vm2646, %v2639, %v2120
        %v2673 = vsel %vm2646, %v2640, %v2122
        %v2674 = vsel %vm2646, %v2641, %v2124
        %v2675 = vsel %vm2646, %v2642, %v2126
        %v2676 = vsel %vm2646, %v2643, %v2128
        %v2677 = vsel %vm2646, %v2644, %v2130
        %v2678 = vsel %vm2646, %v2645, %v2132
        %vm2679 = vcmask 326656
        %v2680 = vsel %vm2679, %v2647, %v2167
        %v2681 = vsel %vm2679, %v2648, %v2169
        %v2682 = vsel %vm2679, %v2649, %v2171
        %v2683 = vsel %vm2679, %v2650, %v2173
        %v2684 = vsel %vm2679, %v2651, %v2175
        %v2685 = vsel %vm2679, %v2652, %v2177
        %v2686 = vsel %vm2679, %v2653, %v2179
        %v2687 = vsel %vm2679, %v2654, %v2181
        %v2688 = vsel %vm2679, %v2655, %v2183
        %v2689 = vsel %vm2679, %v2656, %v2185
        %v2690 = vsel %vm2679, %v2657, %v2187
        %v2691 = vsel %vm2679, %v2658, %v2189
        %v2692 = vsel %vm2679, %v2659, %v2191
        %v2693 = vsel %vm2679, %v2660, %v2193
        %v2694 = vsel %vm2679, %v2661, %v2195
        %v2695 = vsel %vm2679, %v2662, %v2197
        %v2696 = vsel %vm2679, %v2663, %v2199
        %v2697 = vsel %vm2679, %v2664, %v2201
        %v2698 = vsel %vm2679, %v2665, %v2203
        %v2699 = vsel %vm2679, %v2666, %v2205
        %v2700 = vsel %vm2679, %v2667, %v2207
        %v2701 = vsel %vm2679, %v2668, %v2209
        %v2702 = vsel %vm2679, %v2669, %v2211
        %v2703 = vsel %vm2679, %v2670, %v2213
        %v2704 = vsel %vm2679, %v2671, %v2215
        %v2705 = vsel %vm2679, %v2672, %v2217
        %v2706 = vsel %vm2679, %v2673, %v2219
        %v2707 = vsel %vm2679, %v2674, %v2221
        %v2708 = vsel %vm2679, %v2675, %v2223
        %v2709 = vsel %vm2679, %v2676, %v2225
        %v2710 = vsel %vm2679, %v2677, %v2227
        %v2711 = vsel %vm2679, %v2678, %v2229
        %vm2712 = vcmask 392192
        %v2713 = vsel %vm2712, %v2680, %v2264
        %v2714 = vsel %vm2712, %v2681, %v2266
        %v2715 = vsel %vm2712, %v2682, %v2268
        %v2716 = vsel %vm2712, %v2683, %v2270
        %v2717 = vsel %vm2712, %v2684, %v2272
        %v2718 = vsel %vm2712, %v2685, %v2274
        %v2719 = vsel %vm2712, %v2686, %v2276
        %v2720 = vsel %vm2712, %v2687, %v2278
        %v2721 = vsel %vm2712, %v2688, %v2280
        %v2722 = vsel %vm2712, %v2689, %v2282
        %v2723 = vsel %vm2712, %v2690, %v2284
        %v2724 = vsel %vm2712, %v2691, %v2286
        %v2725 = vsel %vm2712, %v2692, %v2288
        %v2726 = vsel %vm2712, %v2693, %v2290
        %v2727 = vsel %vm2712, %v2694, %v2292
        %v2728 = vsel %vm2712, %v2695, %v2294
        %v2729 = vsel %vm2712, %v2696, %v2296
        %v2730 = vsel %vm2712, %v2697, %v2298
        %v2731 = vsel %vm2712, %v2698, %v2300
        %v2732 = vsel %vm2712, %v2699, %v2302
        %v2733 = vsel %vm2712, %v2700, %v2304
        %v2734 = vsel %vm2712, %v2701, %v2306
        %v2735 = vsel %vm2712, %v2702, %v2308
        %v2736 = vsel %vm2712, %v2703, %v2310
        %v2737 = vsel %vm2712, %v2704, %v2312
        %v2738 = vsel %vm2712, %v2705, %v2314
        %v2739 = vsel %vm2712, %v2706, %v2316
        %v2740 = vsel %vm2712, %v2707, %v2318
        %v2741 = vsel %vm2712, %v2708, %v2320
        %v2742 = vsel %vm2712, %v2709, %v2322
        %v2743 = vsel %vm2712, %v2710, %v2324
        %v2744 = vsel %vm2712, %v2711, %v2326
        %vm2745 = vcmask 457728
        %v2746 = vsel %vm2745, %v2713, %v2360
        %v2747 = vsel %vm2745, %v2714, %v2362
        %v2748 = vsel %vm2745, %v2715, %v2364
        %v2749 = vsel %vm2745, %v2716, %v2366
        %v2750 = vsel %vm2745, %v2717, %v2368
        %v2751 = vsel %vm2745, %v2718, %v2370
        %v2752 = vsel %vm2745, %v2719, %v2372
        %v2753 = vsel %vm2745, %v2720, %v2374
        %v2754 = vsel %vm2745, %v2721, %v2376
        %v2755 = vsel %vm2745, %v2722, %v2378
        %v2756 = vsel %vm2745, %v2723, %v2380
        %v2757 = vsel %vm2745, %v2724, %v2382
        %v2758 = vsel %vm2745, %v2725, %v2384
        %v2759 = vsel %vm2745, %v2726, %v2386
        %v2760 = vsel %vm2745, %v2727, %v2388
        %v2761 = vsel %vm2745, %v2728, %v2390
        %v2762 = vsel %vm2745, %v2729, %v2392
        %v2763 = vsel %vm2745, %v2730, %v2394
        %v2764 = vsel %vm2745, %v2731, %v2396
        %v2765 = vsel %vm2745, %v2732, %v2398
        %v2766 = vsel %vm2745, %v2733, %v2400
        %v2767 = vsel %vm2745, %v2734, %v2402
        %v2768 = vsel %vm2745, %v2735, %v2404
        %v2769 = vsel %vm2745, %v2736, %v2406
        %v2770 = vsel %vm2745, %v2737, %v2408
        %v2771 = vsel %vm2745, %v2738, %v2410
        %v2772 = vsel %vm2745, %v2739, %v2412
        %v2773 = vsel %vm2745, %v2740, %v2414
        %v2774 = vsel %vm2745, %v2741, %v2416
        %v2775 = vsel %vm2745, %v2742, %v2418
        %v2776 = vsel %vm2745, %v2743, %v2420
        %v2777 = vsel %vm2745, %v2744, %v2420
        %vm2778 = vcmask 523264
        %v2779 = vsel %vm2778, %v2746, %v2453
        %v2780 = vsel %vm2778, %v2747, %v2455
        %v2781 = vsel %vm2778, %v2748, %v2457
        %v2782 = vsel %vm2778, %v2749, %v2459
        %v2783 = vsel %vm2778, %v2750, %v2461
        %v2784 = vsel %vm2778, %v2751, %v2463
        %v2785 = vsel %vm2778, %v2752, %v2465
        %v2786 = vsel %vm2778, %v2753, %v2467
        %v2787 = vsel %vm2778, %v2754, %v2469
        %v2788 = vsel %vm2778, %v2755, %v2471
        %v2789 = vsel %vm2778, %v2756, %v2473
        %v2790 = vsel %vm2778, %v2757, %v2475
        %v2791 = vsel %vm2778, %v2758, %v2477
        %v2792 = vsel %vm2778, %v2759, %v2479
        %v2793 = vsel %vm2778, %v2760, %v2481
        %v2794 = vsel %vm2778, %v2761, %v2483
        %v2795 = vsel %vm2778, %v2762, %v2485
        %v2796 = vsel %vm2778, %v2763, %v2487
        %v2797 = vsel %vm2778, %v2764, %v2489
        %v2798 = vsel %vm2778, %v2765, %v2491
        %v2799 = vsel %vm2778, %v2766, %v2493
        %v2800 = vsel %vm2778, %v2767, %v2495
        %v2801 = vsel %vm2778, %v2768, %v2497
        %v2802 = vsel %vm2778, %v2769, %v2499
        %v2803 = vsel %vm2778, %v2770, %v2501
        %v2804 = vsel %vm2778, %v2771, %v2503
        %v2805 = vsel %vm2778, %v2772, %v2505
        %v2806 = vsel %vm2778, %v2773, %v2507
        %v2807 = vsel %vm2778, %v2774, %v2509
        %v2808 = vsel %vm2778, %v2775, %v2511
        %v2809 = vsel %vm2778, %v2776, %v2513
        %v2810 = vsel %vm2778, %v2777, %v2515
        %v2811 = vld [vmem:[%s4] sm:$0xff]
        %v2812 = vld [vmem:[%s4 + $0x8] sm:$0xff]
        %v2813 = vld [vmem:[%s4 + $0x10] sm:$0xff]
        %v2814 = vld [vmem:[%s4 + $0x18] sm:$0xff]
        %v2815 = vld [vmem:[%s4 + $0x20] sm:$0xff]
        %v2816 = vld [vmem:[%s4 + $0x28] sm:$0xff]
        %v2817 = vld [vmem:[%s4 + $0x30] sm:$0xff]
        %v2818 = vld [vmem:[%s4 + $0x38] sm:$0xff]
        %v2819 = vld [vmem:[%s4 + $0x40] sm:$0xff]
        %v2820 = vld [vmem:[%s5] sm:$0x1]
        %v2822 = vperm.slane %v2820, 0
        %vm2824 = vcmask 588800
        %v2826 = vsel %vm2824, %v2779, 0
        %v2829 = vsel %vm2824, %v2780, 0
        %v2832 = vsel %vm2824, %v2781, 0
        %v2835 = vsel %vm2824, %v2782, 0
        %v2838 = vsel %vm2824, %v2783, 0
        %v2841 = vsel %vm2824, %v2784, 0
        %v2844 = vsel %vm2824, %v2785, 0
        %v2847 = vsel %vm2824, %v2786, 0
        %v2850 = vsel %vm2824, %v2787, 0
        %v2853 = vsel %vm2824, %v2788, 0
        %v2856 = vsel %vm2824, %v2789, 0
        %v2859 = vsel %vm2824, %v2790, 0
        %v2862 = vsel %vm2824, %v2791, 0
        %v2865 = vsel %vm2824, %v2792, 0
        %v2868 = vsel %vm2824, %v2793, 0
        %v2871 = vsel %vm2824, %v2794, 0
        %v2874 = vsel %vm2824, %v2795, 0
        %v2877 = vsel %vm2824, %v2796, 0
        %v2880 = vsel %vm2824, %v2797, 0
        %v2883 = vsel %vm2824, %v2798, 0
        %v2886 = vsel %vm2824, %v2799, 0
        %v2889 = vsel %vm2824, %v2800, 0
        %v2892 = vsel %vm2824, %v2801, 0
        %v2895 = vsel %vm2824, %v2802, 0
        %v2898 = vsel %vm2824, %v2803, 0
        %v2901 = vsel %vm2824, %v2804, 0
        %v2904 = vsel %vm2824, %v2805, 0
        %v2907 = vsel %vm2824, %v2806, 0
        %v2910 = vsel %vm2824, %v2807, 0
        %v2913 = vsel %vm2824, %v2808, 0
        %v2916 = vsel %vm2824, %v2809, 0
        %v2919 = vsel %vm2824, %v2810, 0
        %2921 = vmatpush.msra.mxu0 0.0
        %2922 = vmatpush.msra.mxu0 0.0
        %2923 = vmatpush.msra.mxu0 0.0
        %2924 = vmatpush.msra.mxu0 0.0
        %2925 = vmatpush.msra.mxu0 0.0
        %2926 = vmatpush.msra.mxu0 0.0
        %2927 = vmatpush.msra.mxu0 0.0
        %2928 = vmatpush.msra.mxu0 %v2819
        %2929 = vmatpush.msra.mxu0 %v2818
        %2930 = vmatpush.msra.mxu0 %v2817
        %2931 = vmatpush.msra.mxu0 %v2816
        %2932 = vmatpush.msra.mxu0 %v2815
        %2933 = vmatpush.msra.mxu0 %v2814
        %2934 = vmatpush.msra.mxu0 %v2813
        %2935 = vmatpush.msra.mxu0 %v2812
        %2936 = vmatpush.msra.mxu0 %v2811
        %2937 = vmatmul.f32.gmra.mxu0 %v2826
        %v2938 = vpop.f32.mrf.mxu0
        %v2939 = vadd.f32 %v2822, %v2938
        %2940 = vmatmul.f32.gmra.mxu0 %v2829
        %v2941 = vpop.f32.mrf.mxu0
        %v2942 = vadd.f32 %v2822, %v2941
        %2943 = vmatmul.f32.gmra.mxu0 %v2832
        %v2944 = vpop.f32.mrf.mxu0
        %v2945 = vadd.f32 %v2822, %v2944
        %2946 = vmatmul.f32.gmra.mxu0 %v2835
        %v2947 = vpop.f32.mrf.mxu0
        %v2948 = vadd.f32 %v2822, %v2947
        %2949 = vmatmul.f32.gmra.mxu0 %v2838
        %v2950 = vpop.f32.mrf.mxu0
        %v2951 = vadd.f32 %v2822, %v2950
        %2952 = vmatmul.f32.gmra.mxu0 %v2841
        %v2953 = vpop.f32.mrf.mxu0
        %v2954 = vadd.f32 %v2822, %v2953
        %2955 = vmatmul.f32.gmra.mxu0 %v2844
        %v2956 = vpop.f32.mrf.mxu0
        %v2957 = vadd.f32 %v2822, %v2956
        %2958 = vmatmul.f32.gmra.mxu0 %v2847
        %v2959 = vpop.f32.mrf.mxu0
        %v2960 = vadd.f32 %v2822, %v2959
        %2961 = vmatmul.f32.gmra.mxu0 %v2850
        %v2962 = vpop.f32.mrf.mxu0
        %v2963 = vadd.f32 %v2822, %v2962
        %2964 = vmatmul.f32.gmra.mxu0 %v2853
        %v2965 = vpop.f32.mrf.mxu0
        %v2966 = vadd.f32 %v2822, %v2965
        %2967 = vmatmul.f32.gmra.mxu0 %v2856
        %v2968 = vpop.f32.mrf.mxu0
        %v2969 = vadd.f32 %v2822, %v2968
        %2970 = vmatmul.f32.gmra.mxu0 %v2859
        %v2971 = vpop.f32.mrf.mxu0
        %v2972 = vadd.f32 %v2822, %v2971
        %2973 = vmatmul.f32.gmra.mxu0 %v2862
        %v2974 = vpop.f32.mrf.mxu0
        %v2975 = vadd.f32 %v2822, %v2974
        %2976 = vmatmul.f32.gmra.mxu0 %v2865
        %v2977 = vpop.f32.mrf.mxu0
        %v2978 = vadd.f32 %v2822, %v2977
        %2979 = vmatmul.f32.gmra.mxu0 %v2868
        %v2980 = vpop.f32.mrf.mxu0
        %v2981 = vadd.f32 %v2822, %v2980
        %2982 = vmatmul.f32.gmra.mxu0 %v2871
        %v2983 = vpop.f32.mrf.mxu0
        %v2984 = vadd.f32 %v2822, %v2983
        %2985 = vmatmul.f32.gmra.mxu0 %v2874
        %v2986 = vpop.f32.mrf.mxu0
        %v2987 = vadd.f32 %v2822, %v2986
        %2988 = vmatmul.f32.gmra.mxu0 %v2877
        %v2989 = vpop.f32.mrf.mxu0
        %v2990 = vadd.f32 %v2822, %v2989
        %2991 = vmatmul.f32.gmra.mxu0 %v2880
        %v2992 = vpop.f32.mrf.mxu0
        %v2993 = vadd.f32 %v2822, %v2992
        %2994 = vmatmul.f32.gmra.mxu0 %v2883
        %v2995 = vpop.f32.mrf.mxu0
        %v2996 = vadd.f32 %v2822, %v2995
        %2997 = vmatmul.f32.gmra.mxu0 %v2886
        %v2998 = vpop.f32.mrf.mxu0
        %v2999 = vadd.f32 %v2822, %v2998
        %3000 = vmatmul.f32.gmra.mxu0 %v2889
        %v3001 = vpop.f32.mrf.mxu0
        %v3002 = vadd.f32 %v2822, %v3001
        %3003 = vmatmul.f32.gmra.mxu0 %v2892
        %v3004 = vpop.f32.mrf.mxu0
        %v3005 = vadd.f32 %v2822, %v3004
        %3006 = vmatmul.f32.gmra.mxu0 %v2895
        %v3007 = vpop.f32.mrf.mxu0
        %v3008 = vadd.f32 %v2822, %v3007
        %3009 = vmatmul.f32.gmra.mxu0 %v2898
        %v3010 = vpop.f32.mrf.mxu0
        %v3011 = vadd.f32 %v2822, %v3010
        %3012 = vmatmul.f32.gmra.mxu0 %v2901
        %v3013 = vpop.f32.mrf.mxu0
        %v3014 = vadd.f32 %v2822, %v3013
        %3015 = vmatmul.f32.gmra.mxu0 %v2904
        %v3016 = vpop.f32.mrf.mxu0
        %v3017 = vadd.f32 %v2822, %v3016
        %3018 = vmatmul.f32.gmra.mxu0 %v2907
        %v3019 = vpop.f32.mrf.mxu0
        %v3020 = vadd.f32 %v2822, %v3019
        %3021 = vmatmul.f32.gmra.mxu0 %v2910
        %v3022 = vpop.f32.mrf.mxu0
        %v3023 = vadd.f32 %v2822, %v3022
        %3024 = vmatmul.f32.gmra.mxu0 %v2913
        %v3025 = vpop.f32.mrf.mxu0
        %v3026 = vadd.f32 %v2822, %v3025
        %3027 = vmatmul.f32.gmra.mxu0 %v2916
        %v3028 = vpop.f32.mrf.mxu0
        %v3029 = vadd.f32 %v2822, %v3028
        %3030 = vmatmul.f32.gmra.mxu0 %v2919
        %v3031 = vpop.f32.mrf.mxu0
        %v3032 = vadd.f32 %v2822, %v3031
        %3033 = vdwg.mxu0
        %v3034 = vld [vmem:[%s6] sm:$0xff]
        %v3035 = vld [vmem:[%s6 + $0x8] sm:$0xff]
        %v3036 = vld [vmem:[%s7] sm:$0x1]
        %v3037 = vld [vmem:[%s8] sm:$0x1]
        %v3038 = vsel %vm2580, %v2939, 0.0
        %v3039 = vsel %vm2580, %v2942, 0.0
        %v3040 = vadd.f32 %v3038, %v3039
        %v3041 = vsel %vm2580, %v2945, 0.0
        %v3042 = vadd.f32 %v3040, %v3041
        %v3043 = vsel %vm2580, %v2948, 0.0
        %v3044 = vadd.f32 %v3042, %v3043
        %v3045 = vsel %vm2580, %v2951, 0.0
        %v3046 = vadd.f32 %v3044, %v3045
        %v3047 = vsel %vm2580, %v2954, 0.0
        %v3048 = vadd.f32 %v3046, %v3047
        %v3049 = vsel %vm2580, %v2957, 0.0
        %v3050 = vadd.f32 %v3048, %v3049
        %v3051 = vsel %vm2580, %v2960, 0.0
        %v3052 = vadd.f32 %v3050, %v3051
        %v3053 = vsel %vm2580, %v2963, 0.0
        %v3054 = vadd.f32 %v3052, %v3053
        %v3055 = vsel %vm2580, %v2966, 0.0
        %v3056 = vadd.f32 %v3054, %v3055
        %v3057 = vsel %vm2580, %v2969, 0.0
        %v3058 = vadd.f32 %v3056, %v3057
        %v3059 = vsel %vm2580, %v2972, 0.0
        %v3060 = vadd.f32 %v3058, %v3059
        %v3061 = vsel %vm2580, %v2975, 0.0
        %v3062 = vadd.f32 %v3060, %v3061
        %v3063 = vsel %vm2580, %v2978, 0.0
        %v3064 = vadd.f32 %v3062, %v3063
        %v3065 = vsel %vm2580, %v2981, 0.0
        %v3066 = vadd.f32 %v3064, %v3065
        %v3067 = vsel %vm2580, %v2984, 0.0
        %v3068 = vadd.f32 %v3066, %v3067
        %v3069 = vsel %vm2580, %v2987, 0.0
        %v3070 = vadd.f32 %v3068, %v3069
        %v3071 = vsel %vm2580, %v2990, 0.0
        %v3072 = vadd.f32 %v3070, %v3071
        %v3073 = vsel %vm2580, %v2993, 0.0
        %v3074 = vadd.f32 %v3072, %v3073
        %v3075 = vsel %vm2580, %v2996, 0.0
        %v3076 = vadd.f32 %v3074, %v3075
        %v3077 = vsel %vm2580, %v2999, 0.0
        %v3078 = vadd.f32 %v3076, %v3077
        %v3079 = vsel %vm2580, %v3002, 0.0
        %v3080 = vadd.f32 %v3078, %v3079
        %v3081 = vsel %vm2580, %v3005, 0.0
        %v3082 = vadd.f32 %v3080, %v3081
        %v3083 = vsel %vm2580, %v3008, 0.0
        %v3084 = vadd.f32 %v3082, %v3083
        %v3085 = vsel %vm2580, %v3011, 0.0
        %v3086 = vadd.f32 %v3084, %v3085
        %v3087 = vsel %vm2580, %v3014, 0.0
        %v3088 = vadd.f32 %v3086, %v3087
        %v3089 = vsel %vm2580, %v3017, 0.0
        %v3090 = vadd.f32 %v3088, %v3089
        %v3091 = vsel %vm2580, %v3020, 0.0
        %v3092 = vadd.f32 %v3090, %v3091
        %v3093 = vsel %vm2580, %v3023, 0.0
        %v3094 = vadd.f32 %v3092, %v3093
        %v3095 = vsel %vm2580, %v3026, 0.0
        %v3096 = vadd.f32 %v3094, %v3095
        %v3097 = vsel %vm2580, %v3029, 0.0
        %v3098 = vadd.f32 %v3096, %v3097
        %v3099 = vsel %vm2580, %v3032, 0.0
        %v3100 = vadd.f32 %v3098, %v3099
        %v3101 = vrot.slane %v3100, 4
        %v3102 = vadd.f32 %v3100, %v3101
        %v3103 = vrot.slane %v3102, 2
        %v3104 = vadd.f32 %v3102, %v3103
        %v3105 = vrot.slane %v3104, 1
        %v3106 = vadd.f32 %v3104, %v3105
        %v3108 = vsel %vm2580, %v3106, 0
        %3110 = vmatpush.msra.mxu0 0.0
        %3111 = vmatpush.msra.mxu0 0.0
        %3112 = vmatpush.msra.mxu0 0.0
        %3113 = vmatpush.msra.mxu0 0.0
        %3114 = vmatpush.msra.mxu0 0.0
        %3115 = vmatpush.msra.mxu0 0.0
        %3116 = vmatpush.msra.mxu0 0.0
        %3117 = vmatpush.msra.mxu0 0.0
        %3118 = vmatpush.msra.mxu0 0.0
        %3119 = vmatpush.msra.mxu0 0.0
        %3120 = vmatpush.msra.mxu0 0.0
        %3121 = vmatpush.msra.mxu0 0.0
        %3122 = vmatpush.msra.mxu0 0.0
        %3123 = vmatpush.msra.mxu0 0.0
        %3124 = vmatpush.msra.mxu0 %v3035
        %3125 = vmatpush.msra.mxu0 %v3034
        %3126 = vmatmul.f32.gmra.mxu0 %v3108
        %v3127 = vpop.f32.mrf.mxu0
        %v3128 = vadd.f32 0.0, %v3127
        %3129 = vdwg.mxu0
        %v3130 = vperm.slane %v3128, 0
        %v3131 = vsub.f32 %v2939, %v3130
        %v3132 = vsub.f32 %v2942, %v3130
        %v3133 = vsub.f32 %v2945, %v3130
        %v3134 = vsub.f32 %v2948, %v3130
        %v3135 = vsub.f32 %v2951, %v3130
        %v3136 = vsub.f32 %v2954, %v3130
        %v3137 = vsub.f32 %v2957, %v3130
        %v3138 = vsub.f32 %v2960, %v3130
        %v3139 = vsub.f32 %v2963, %v3130
        %v3140 = vsub.f32 %v2966, %v3130
        %v3141 = vsub.f32 %v2969, %v3130
        %v3142 = vsub.f32 %v2972, %v3130
        %v3143 = vsub.f32 %v2975, %v3130
        %v3144 = vsub.f32 %v2978, %v3130
        %v3145 = vsub.f32 %v2981, %v3130
        %v3146 = vsub.f32 %v2984, %v3130
        %v3147 = vsub.f32 %v2987, %v3130
        %v3148 = vsub.f32 %v2990, %v3130
        %v3149 = vsub.f32 %v2993, %v3130
        %v3150 = vsub.f32 %v2996, %v3130
        %v3151 = vsub.f32 %v2999, %v3130
        %v3152 = vsub.f32 %v3002, %v3130
        %v3153 = vsub.f32 %v3005, %v3130
        %v3154 = vsub.f32 %v3008, %v3130
        %v3155 = vsub.f32 %v3011, %v3130
        %v3156 = vsub.f32 %v3014, %v3130
        %v3157 = vsub.f32 %v3017, %v3130
        %v3158 = vsub.f32 %v3020, %v3130
        %v3159 = vsub.f32 %v3023, %v3130
        %v3160 = vsub.f32 %v3026, %v3130
        %v3161 = vsub.f32 %v3029, %v3130
        %v3162 = vsub.f32 %v3032, %v3130
        %v3163 = vmul.f32 %v3131, %v3131
        %v3164 = vmul.f32 %v3132, %v3132
        %v3165 = vmul.f32 %v3133, %v3133
        %v3166 = vmul.f32 %v3134, %v3134
        %v3167 = vmul.f32 %v3135, %v3135
        %v3168 = vmul.f32 %v3136, %v3136
        %v3169 = vmul.f32 %v3137, %v3137
        %v3170 = vmul.f32 %v3138, %v3138
        %v3171 = vmul.f32 %v3139, %v3139
        %v3172 = vmul.f32 %v3140, %v3140
        %v3173 = vmul.f32 %v3141, %v3141
        %v3174 = vmul.f32 %v3142, %v3142
        %v3175 = vmul.f32 %v3143, %v3143
        %v3176 = vmul.f32 %v3144, %v3144
        %v3177 = vmul.f32 %v3145, %v3145
        %v3178 = vmul.f32 %v3146, %v3146
        %v3179 = vmul.f32 %v3147, %v3147
        %v3180 = vmul.f32 %v3148, %v3148
        %v3181 = vmul.f32 %v3149, %v3149
        %v3182 = vmul.f32 %v3150, %v3150
        %v3183 = vmul.f32 %v3151, %v3151
        %v3184 = vmul.f32 %v3152, %v3152
        %v3185 = vmul.f32 %v3153, %v3153
        %v3186 = vmul.f32 %v3154, %v3154
        %v3187 = vmul.f32 %v3155, %v3155
        %v3188 = vmul.f32 %v3156, %v3156
        %v3189 = vmul.f32 %v3157, %v3157
        %v3190 = vmul.f32 %v3158, %v3158
        %v3191 = vmul.f32 %v3159, %v3159
        %v3192 = vmul.f32 %v3160, %v3160
        %v3193 = vmul.f32 %v3161, %v3161
        %v3194 = vmul.f32 %v3162, %v3162
        %v3195 = vsel %vm2580, %v3163, 0.0
        %v3196 = vsel %vm2580, %v3164, 0.0
        %v3197 = vadd.f32 %v3195, %v3196
        %v3198 = vsel %vm2580, %v3165, 0.0
        %v3199 = vadd.f32 %v3197, %v3198
        %v3200 = vsel %vm2580, %v3166, 0.0
        %v3201 = vadd.f32 %v3199, %v3200
        %v3202 = vsel %vm2580, %v3167, 0.0
        %v3203 = vadd.f32 %v3201, %v3202
        %v3204 = vsel %vm2580, %v3168, 0.0
        %v3205 = vadd.f32 %v3203, %v3204
        %v3206 = vsel %vm2580, %v3169, 0.0
        %v3207 = vadd.f32 %v3205, %v3206
        %v3208 = vsel %vm2580, %v3170, 0.0
        %v3209 = vadd.f32 %v3207, %v3208
        %v3210 = vsel %vm2580, %v3171, 0.0
        %v3211 = vadd.f32 %v3209, %v3210
        %v3212 = vsel %vm2580, %v3172, 0.0
        %v3213 = vadd.f32 %v3211, %v3212
        %v3214 = vsel %vm2580, %v3173, 0.0
        %v3215 = vadd.f32 %v3213, %v3214
        %v3216 = vsel %vm2580, %v3174, 0.0
        %v3217 = vadd.f32 %v3215, %v3216
        %v3218 = vsel %vm2580, %v3175, 0.0
        %v3219 = vadd.f32 %v3217, %v3218
        %v3220 = vsel %vm2580, %v3176, 0.0
        %v3221 = vadd.f32 %v3219, %v3220
        %v3222 = vsel %vm2580, %v3177, 0.0
        %v3223 = vadd.f32 %v3221, %v3222
        %v3224 = vsel %vm2580, %v3178, 0.0
        %v3225 = vadd.f32 %v3223, %v3224
        %v3226 = vsel %vm2580, %v3179, 0.0
        %v3227 = vadd.f32 %v3225, %v3226
        %v3228 = vsel %vm2580, %v3180, 0.0
        %v3229 = vadd.f32 %v3227, %v3228
        %v3230 = vsel %vm2580, %v3181, 0.0
        %v3231 = vadd.f32 %v3229, %v3230
        %v3232 = vsel %vm2580, %v3182, 0.0
        %v3233 = vadd.f32 %v3231, %v3232
        %v3234 = vsel %vm2580, %v3183, 0.0
        %v3235 = vadd.f32 %v3233, %v3234
        %v3236 = vsel %vm2580, %v3184, 0.0
        %v3237 = vadd.f32 %v3235, %v3236
        %v3238 = vsel %vm2580, %v3185, 0.0
        %v3239 = vadd.f32 %v3237, %v3238
        %v3240 = vsel %vm2580, %v3186, 0.0
        %v3241 = vadd.f32 %v3239, %v3240
        %v3242 = vsel %vm2580, %v3187, 0.0
        %v3243 = vadd.f32 %v3241, %v3242
        %v3244 = vsel %vm2580, %v3188, 0.0
        %v3245 = vadd.f32 %v3243, %v3244
        %v3246 = vsel %vm2580, %v3189, 0.0
        %v3247 = vadd.f32 %v3245, %v3246
        %v3248 = vsel %vm2580, %v3190, 0.0
        %v3249 = vadd.f32 %v3247, %v3248
        %v3250 = vsel %vm2580, %v3191, 0.0
        %v3251 = vadd.f32 %v3249, %v3250
        %v3252 = vsel %vm2580, %v3192, 0.0
        %v3253 = vadd.f32 %v3251, %v3252
        %v3254 = vsel %vm2580, %v3193, 0.0
        %v3255 = vadd.f32 %v3253, %v3254
        %v3256 = vsel %vm2580, %v3194, 0.0
        %v3257 = vadd.f32 %v3255, %v3256
        %v3258 = vrot.slane %v3257, 4
        %v3259 = vadd.f32 %v3257, %v3258
        %v3260 = vrot.slane %v3259, 2
        %v3261 = vadd.f32 %v3259, %v3260
        %v3262 = vrot.slane %v3261, 1
        %v3263 = vadd.f32 %v3261, %v3262
        %v3265 = vsel %vm2580, %v3263, 0
        %3267 = vmatpush.msra.mxu0 0.0
        %3268 = vmatpush.msra.mxu0 0.0
        %3269 = vmatpush.msra.mxu0 0.0
        %3270 = vmatpush.msra.mxu0 0.0
        %3271 = vmatpush.msra.mxu0 0.0
        %3272 = vmatpush.msra.mxu0 0.0
        %3273 = vmatpush.msra.mxu0 0.0
        %3274 = vmatpush.msra.mxu0 0.0
        %3275 = vmatpush.msra.mxu0 0.0
        %3276 = vmatpush.msra.mxu0 0.0
        %3277 = vmatpush.msra.mxu0 0.0
        %3278 = vmatpush.msra.mxu0 0.0
        %3279 = vmatpush.msra.mxu0 0.0
        %3280 = vmatpush.msra.mxu0 0.0
        %3281 = vmatpush.msra.mxu0 %v3035
        %3282 = vmatpush.msra.mxu0 %v3034
        %3283 = vmatmul.f32.gmra.mxu0 %v3265
        %v3284 = vpop.f32.mrf.mxu0
        %v3285 = vadd.f32 0.0, %v3284
        %3286 = vdwg.mxu0
        %v3287 = vmax.f32 %v3285, 0.0
        %v3288 = vadd.f32 %v3287, 1e-06
        %v3289 = vrsqrt.pop %v3288
        %v3290 = vmul.f32 %v3289, %v3288
        %v3291 = vmul.f32 %v3290, %v3289
        %v3292 = vmul.f32 0.5, %v3291
        %v3293 = vsub.f32 1.5, %v3292
        %v3294 = vmul.f32 %v3289, %v3293
        %vm3295 = vweird.f32 %v3288
        %vm3296 = vweird.f32 %v3289
        %vm3297 = vmor %vm3295, %vm3296
        %v3298 = vsel %vm3297, %v3289, %v3294
        %v3299 = vperm.slane %v3298, 0
        %v3300 = vmul.f32 %v3131, %v3299
        %v3301 = vmul.f32 %v3132, %v3299
        %v3302 = vmul.f32 %v3133, %v3299
        %v3303 = vmul.f32 %v3134, %v3299
        %v3304 = vmul.f32 %v3135, %v3299
        %v3305 = vmul.f32 %v3136, %v3299
        %v3306 = vmul.f32 %v3137, %v3299
        %v3307 = vmul.f32 %v3138, %v3299
        %v3308 = vmul.f32 %v3139, %v3299
        %v3309 = vmul.f32 %v3140, %v3299
        %v3310 = vmul.f32 %v3141, %v3299
        %v3311 = vmul.f32 %v3142, %v3299
        %v3312 = vmul.f32 %v3143, %v3299
        %v3313 = vmul.f32 %v3144, %v3299
        %v3314 = vmul.f32 %v3145, %v3299
        %v3315 = vmul.f32 %v3146, %v3299
        %v3316 = vmul.f32 %v3147, %v3299
        %v3317 = vmul.f32 %v3148, %v3299
        %v3318 = vmul.f32 %v3149, %v3299
        %v3319 = vmul.f32 %v3150, %v3299
        %v3320 = vmul.f32 %v3151, %v3299
        %v3321 = vmul.f32 %v3152, %v3299
        %v3322 = vmul.f32 %v3153, %v3299
        %v3323 = vmul.f32 %v3154, %v3299
        %v3324 = vmul.f32 %v3155, %v3299
        %v3325 = vmul.f32 %v3156, %v3299
        %v3326 = vmul.f32 %v3157, %v3299
        %v3327 = vmul.f32 %v3158, %v3299
        %v3328 = vmul.f32 %v3159, %v3299
        %v3329 = vmul.f32 %v3160, %v3299
        %v3330 = vmul.f32 %v3161, %v3299
        %v3331 = vmul.f32 %v3162, %v3299
        %v3333 = vperm.slane %v3036, 0
        %v3335 = vmul.f32 %v3300, %v3333
        %v3336 = vmul.f32 %v3301, %v3333
        %v3337 = vmul.f32 %v3302, %v3333
        %v3338 = vmul.f32 %v3303, %v3333
        %v3339 = vmul.f32 %v3304, %v3333
        %v3340 = vmul.f32 %v3305, %v3333
        %v3341 = vmul.f32 %v3306, %v3333
        %v3342 = vmul.f32 %v3307, %v3333
        %v3343 = vmul.f32 %v3308, %v3333
        %v3344 = vmul.f32 %v3309, %v3333
        %v3345 = vmul.f32 %v3310, %v3333
        %v3346 = vmul.f32 %v3311, %v3333
        %v3347 = vmul.f32 %v3312, %v3333
        %v3348 = vmul.f32 %v3313, %v3333
        %v3349 = vmul.f32 %v3314, %v3333
        %v3350 = vmul.f32 %v3315, %v3333
        %v3351 = vmul.f32 %v3316, %v3333
        %v3352 = vmul.f32 %v3317, %v3333
        %v3353 = vmul.f32 %v3318, %v3333
        %v3354 = vmul.f32 %v3319, %v3333
        %v3355 = vmul.f32 %v3320, %v3333
        %v3356 = vmul.f32 %v3321, %v3333
        %v3357 = vmul.f32 %v3322, %v3333
        %v3358 = vmul.f32 %v3323, %v3333
        %v3359 = vmul.f32 %v3324, %v3333
        %v3360 = vmul.f32 %v3325, %v3333
        %v3361 = vmul.f32 %v3326, %v3333
        %v3362 = vmul.f32 %v3327, %v3333
        %v3363 = vmul.f32 %v3328, %v3333
        %v3364 = vmul.f32 %v3329, %v3333
        %v3365 = vmul.f32 %v3330, %v3333
        %v3366 = vmul.f32 %v3331, %v3333
        %v3368 = vperm.slane %v3037, 0
        %v3370 = vadd.f32 %v3335, %v3368
        %v3371 = vadd.f32 %v3336, %v3368
        %v3372 = vadd.f32 %v3337, %v3368
        %v3373 = vadd.f32 %v3338, %v3368
        %v3374 = vadd.f32 %v3339, %v3368
        %v3375 = vadd.f32 %v3340, %v3368
        %v3376 = vadd.f32 %v3341, %v3368
        %v3377 = vadd.f32 %v3342, %v3368
        %v3378 = vadd.f32 %v3343, %v3368
        %v3379 = vadd.f32 %v3344, %v3368
        %v3380 = vadd.f32 %v3345, %v3368
        %v3381 = vadd.f32 %v3346, %v3368
        %v3382 = vadd.f32 %v3347, %v3368
        %v3383 = vadd.f32 %v3348, %v3368
        %v3384 = vadd.f32 %v3349, %v3368
        %v3385 = vadd.f32 %v3350, %v3368
        %v3386 = vadd.f32 %v3351, %v3368
        %v3387 = vadd.f32 %v3352, %v3368
        %v3388 = vadd.f32 %v3353, %v3368
        %v3389 = vadd.f32 %v3354, %v3368
        %v3390 = vadd.f32 %v3355, %v3368
        %v3391 = vadd.f32 %v3356, %v3368
        %v3392 = vadd.f32 %v3357, %v3368
        %v3393 = vadd.f32 %v3358, %v3368
        %v3394 = vadd.f32 %v3359, %v3368
        %v3395 = vadd.f32 %v3360, %v3368
        %v3396 = vadd.f32 %v3361, %v3368
        %v3397 = vadd.f32 %v3362, %v3368
        %v3398 = vadd.f32 %v3363, %v3368
        %v3399 = vadd.f32 %v3364, %v3368
        %v3400 = vadd.f32 %v3365, %v3368
        %v3401 = vadd.f32 %v3366, %v3368
        %v3402 = vxor.u32 %v3370, 2147483648
        %v3403 = vxor.u32 %v3371, 2147483648
        %v3404 = vxor.u32 %v3372, 2147483648
        %v3405 = vxor.u32 %v3373, 2147483648
        %v3406 = vxor.u32 %v3374, 2147483648
        %v3407 = vxor.u32 %v3375, 2147483648
        %v3408 = vxor.u32 %v3376, 2147483648
        %v3409 = vxor.u32 %v3377, 2147483648
        %v3410 = vxor.u32 %v3378, 2147483648
        %v3411 = vxor.u32 %v3379, 2147483648
        %v3412 = vxor.u32 %v3380, 2147483648
        %v3413 = vxor.u32 %v3381, 2147483648
        %v3414 = vxor.u32 %v3382, 2147483648
        %v3415 = vxor.u32 %v3383, 2147483648
        %v3416 = vxor.u32 %v3384, 2147483648
        %v3417 = vxor.u32 %v3385, 2147483648
        %v3418 = vxor.u32 %v3386, 2147483648
        %v3419 = vxor.u32 %v3387, 2147483648
        %v3420 = vxor.u32 %v3388, 2147483648
        %v3421 = vxor.u32 %v3389, 2147483648
        %v3422 = vxor.u32 %v3390, 2147483648
        %v3423 = vxor.u32 %v3391, 2147483648
        %v3424 = vxor.u32 %v3392, 2147483648
        %v3425 = vxor.u32 %v3393, 2147483648
        %v3426 = vxor.u32 %v3394, 2147483648
        %v3427 = vxor.u32 %v3395, 2147483648
        %v3428 = vxor.u32 %v3396, 2147483648
        %v3429 = vxor.u32 %v3397, 2147483648
        %v3430 = vxor.u32 %v3398, 2147483648
        %v3431 = vxor.u32 %v3399, 2147483648
        %v3432 = vxor.u32 %v3400, 2147483648
        %v3433 = vxor.u32 %v3401, 2147483648
        %v3434 = vmul.f32 %v3402, 1.442695
        %v3435 = vpow.pop %v3434
        %v3436 = vmul.f32 %v3403, 1.442695
        %v3437 = vpow.pop %v3436
        %v3438 = vmul.f32 %v3404, 1.442695
        %v3439 = vpow.pop %v3438
        %v3440 = vmul.f32 %v3405, 1.442695
        %v3441 = vpow.pop %v3440
        %v3442 = vmul.f32 %v3406, 1.442695
        %v3443 = vpow.pop %v3442
        %v3444 = vmul.f32 %v3407, 1.442695
        %v3445 = vpow.pop %v3444
        %v3446 = vmul.f32 %v3408, 1.442695
        %v3447 = vpow.pop %v3446
        %v3448 = vmul.f32 %v3409, 1.442695
        %v3449 = vpow.pop %v3448
        %v3450 = vmul.f32 %v3410, 1.442695
        %v3451 = vpow.pop %v3450
        %v3452 = vmul.f32 %v3411, 1.442695
        %v3453 = vpow.pop %v3452
        %v3454 = vmul.f32 %v3412, 1.442695
        %v3455 = vpow.pop %v3454
        %v3456 = vmul.f32 %v3413, 1.442695
        %v3457 = vpow.pop %v3456
        %v3458 = vmul.f32 %v3414, 1.442695
        %v3459 = vpow.pop %v3458
        %v3460 = vmul.f32 %v3415, 1.442695
        %v3461 = vpow.pop %v3460
        %v3462 = vmul.f32 %v3416, 1.442695
        %v3463 = vpow.pop %v3462
        %v3464 = vmul.f32 %v3417, 1.442695
        %v3465 = vpow.pop %v3464
        %v3466 = vmul.f32 %v3418, 1.442695
        %v3467 = vpow.pop %v3466
        %v3468 = vmul.f32 %v3419, 1.442695
        %v3469 = vpow.pop %v3468
        %v3470 = vmul.f32 %v3420, 1.442695
        %v3471 = vpow.pop %v3470
        %v3472 = vmul.f32 %v3421, 1.442695
        %v3473 = vpow.pop %v3472
        %v3474 = vmul.f32 %v3422, 1.442695
        %v3475 = vpow.pop %v3474
        %v3476 = vmul.f32 %v3423, 1.442695
        %v3477 = vpow.pop %v3476
        %v3478 = vmul.f32 %v3424, 1.442695
        %v3479 = vpow.pop %v3478
        %v3480 = vmul.f32 %v3425, 1.442695
        %v3481 = vpow.pop %v3480
        %v3482 = vmul.f32 %v3426, 1.442695
        %v3483 = vpow.pop %v3482
        %v3484 = vmul.f32 %v3427, 1.442695
        %v3485 = vpow.pop %v3484
        %v3486 = vmul.f32 %v3428, 1.442695
        %v3487 = vpow.pop %v3486
        %v3488 = vmul.f32 %v3429, 1.442695
        %v3489 = vpow.pop %v3488
        %v3490 = vmul.f32 %v3430, 1.442695
        %v3491 = vpow.pop %v3490
        %v3492 = vmul.f32 %v3431, 1.442695
        %v3493 = vpow.pop %v3492
        %v3494 = vmul.f32 %v3432, 1.442695
        %v3495 = vpow.pop %v3494
        %v3496 = vmul.f32 %v3433, 1.442695
        %v3497 = vpow.pop %v3496
        %v3498 = vadd.f32 %v3435, 1.0
        %v3499 = vadd.f32 %v3437, 1.0
        %v3500 = vadd.f32 %v3439, 1.0
        %v3501 = vadd.f32 %v3441, 1.0
        %v3502 = vadd.f32 %v3443, 1.0
        %v3503 = vadd.f32 %v3445, 1.0
        %v3504 = vadd.f32 %v3447, 1.0
        %v3505 = vadd.f32 %v3449, 1.0
        %v3506 = vadd.f32 %v3451, 1.0
        %v3507 = vadd.f32 %v3453, 1.0
        %v3508 = vadd.f32 %v3455, 1.0
        %v3509 = vadd.f32 %v3457, 1.0
        %v3510 = vadd.f32 %v3459, 1.0
        %v3511 = vadd.f32 %v3461, 1.0
        %v3512 = vadd.f32 %v3463, 1.0
        %v3513 = vadd.f32 %v3465, 1.0
        %v3514 = vadd.f32 %v3467, 1.0
        %v3515 = vadd.f32 %v3469, 1.0
        %v3516 = vadd.f32 %v3471, 1.0
        %v3517 = vadd.f32 %v3473, 1.0
        %v3518 = vadd.f32 %v3475, 1.0
        %v3519 = vadd.f32 %v3477, 1.0
        %v3520 = vadd.f32 %v3479, 1.0
        %v3521 = vadd.f32 %v3481, 1.0
        %v3522 = vadd.f32 %v3483, 1.0
        %v3523 = vadd.f32 %v3485, 1.0
        %v3524 = vadd.f32 %v3487, 1.0
        %v3525 = vadd.f32 %v3489, 1.0
        %v3526 = vadd.f32 %v3491, 1.0
        %v3527 = vadd.f32 %v3493, 1.0
        %v3528 = vadd.f32 %v3495, 1.0
        %v3529 = vadd.f32 %v3497, 1.0
        %v3530 = vrcp.pop %v3498
        %v3531 = vmul.f32 %v3498, %v3530
        %v3532 = vsub.f32 1.0, %v3531
        %v3533 = vmul.f32 %v3530, %v3532
        %v3534 = vadd.f32 %v3530, %v3533
        %vm3535 = vweird.f32 %v3498
        %vm3536 = vweird.f32 %v3530
        %vm3537 = vmor %vm3535, %vm3536
        %v3538 = vsel %vm3537, %v3530, %v3534
        %v3539 = vand.u32 2147483647, %v3498
        %vm3540 = vcmp.eq.f32.partialorder %v3539, 8.507059e+37
        %v3541 = vand.u32 %v3498, 2147483648
        %v3542 = vor.u32 1.1754944e-38, %v3541
        %v3543 = vsel %vm3540, %v3542, %v3538
        %v3544 = vmul.f32 1.0, %v3543
        %v3545 = vrcp.pop %v3499
        %v3546 = vmul.f32 %v3499, %v3545
        %v3547 = vsub.f32 1.0, %v3546
        %v3548 = vmul.f32 %v3545, %v3547
        %v3549 = vadd.f32 %v3545, %v3548
        %vm3550 = vweird.f32 %v3499
        %vm3551 = vweird.f32 %v3545
        %vm3552 = vmor %vm3550, %vm3551
        %v3553 = vsel %vm3552, %v3545, %v3549
        %v3554 = vand.u32 2147483647, %v3499
        %vm3555 = vcmp.eq.f32.partialorder %v3554, 8.507059e+37
        %v3556 = vand.u32 %v3499, 2147483648
        %v3557 = vor.u32 1.1754944e-38, %v3556
        %v3558 = vsel %vm3555, %v3557, %v3553
        %v3559 = vmul.f32 1.0, %v3558
        %v3560 = vrcp.pop %v3500
        %v3561 = vmul.f32 %v3500, %v3560
        %v3562 = vsub.f32 1.0, %v3561
        %v3563 = vmul.f32 %v3560, %v3562
        %v3564 = vadd.f32 %v3560, %v3563
        %vm3565 = vweird.f32 %v3500
        %vm3566 = vweird.f32 %v3560
        %vm3567 = vmor %vm3565, %vm3566
        %v3568 = vsel %vm3567, %v3560, %v3564
        %v3569 = vand.u32 2147483647, %v3500
        %vm3570 = vcmp.eq.f32.partialorder %v3569, 8.507059e+37
        %v3571 = vand.u32 %v3500, 2147483648
        %v3572 = vor.u32 1.1754944e-38, %v3571
        %v3573 = vsel %vm3570, %v3572, %v3568
        %v3574 = vmul.f32 1.0, %v3573
        %v3575 = vrcp.pop %v3501
        %v3576 = vmul.f32 %v3501, %v3575
        %v3577 = vsub.f32 1.0, %v3576
        %v3578 = vmul.f32 %v3575, %v3577
        %v3579 = vadd.f32 %v3575, %v3578
        %vm3580 = vweird.f32 %v3501
        %vm3581 = vweird.f32 %v3575
        %vm3582 = vmor %vm3580, %vm3581
        %v3583 = vsel %vm3582, %v3575, %v3579
        %v3584 = vand.u32 2147483647, %v3501
        %vm3585 = vcmp.eq.f32.partialorder %v3584, 8.507059e+37
        %v3586 = vand.u32 %v3501, 2147483648
        %v3587 = vor.u32 1.1754944e-38, %v3586
        %v3588 = vsel %vm3585, %v3587, %v3583
        %v3589 = vmul.f32 1.0, %v3588
        %v3590 = vrcp.pop %v3502
        %v3591 = vmul.f32 %v3502, %v3590
        %v3592 = vsub.f32 1.0, %v3591
        %v3593 = vmul.f32 %v3590, %v3592
        %v3594 = vadd.f32 %v3590, %v3593
        %vm3595 = vweird.f32 %v3502
        %vm3596 = vweird.f32 %v3590
        %vm3597 = vmor %vm3595, %vm3596
        %v3598 = vsel %vm3597, %v3590, %v3594
        %v3599 = vand.u32 2147483647, %v3502
        %vm3600 = vcmp.eq.f32.partialorder %v3599, 8.507059e+37
        %v3601 = vand.u32 %v3502, 2147483648
        %v3602 = vor.u32 1.1754944e-38, %v3601
        %v3603 = vsel %vm3600, %v3602, %v3598
        %v3604 = vmul.f32 1.0, %v3603
        %v3605 = vrcp.pop %v3503
        %v3606 = vmul.f32 %v3503, %v3605
        %v3607 = vsub.f32 1.0, %v3606
        %v3608 = vmul.f32 %v3605, %v3607
        %v3609 = vadd.f32 %v3605, %v3608
        %vm3610 = vweird.f32 %v3503
        %vm3611 = vweird.f32 %v3605
        %vm3612 = vmor %vm3610, %vm3611
        %v3613 = vsel %vm3612, %v3605, %v3609
        %v3614 = vand.u32 2147483647, %v3503
        %vm3615 = vcmp.eq.f32.partialorder %v3614, 8.507059e+37
        %v3616 = vand.u32 %v3503, 2147483648
        %v3617 = vor.u32 1.1754944e-38, %v3616
        %v3618 = vsel %vm3615, %v3617, %v3613
        %v3619 = vmul.f32 1.0, %v3618
        %v3620 = vrcp.pop %v3504
        %v3621 = vmul.f32 %v3504, %v3620
        %v3622 = vsub.f32 1.0, %v3621
        %v3623 = vmul.f32 %v3620, %v3622
        %v3624 = vadd.f32 %v3620, %v3623
        %vm3625 = vweird.f32 %v3504
        %vm3626 = vweird.f32 %v3620
        %vm3627 = vmor %vm3625, %vm3626
        %v3628 = vsel %vm3627, %v3620, %v3624
        %v3629 = vand.u32 2147483647, %v3504
        %vm3630 = vcmp.eq.f32.partialorder %v3629, 8.507059e+37
        %v3631 = vand.u32 %v3504, 2147483648
        %v3632 = vor.u32 1.1754944e-38, %v3631
        %v3633 = vsel %vm3630, %v3632, %v3628
        %v3634 = vmul.f32 1.0, %v3633
        %v3635 = vrcp.pop %v3505
        %v3636 = vmul.f32 %v3505, %v3635
        %v3637 = vsub.f32 1.0, %v3636
        %v3638 = vmul.f32 %v3635, %v3637
        %v3639 = vadd.f32 %v3635, %v3638
        %vm3640 = vweird.f32 %v3505
        %vm3641 = vweird.f32 %v3635
        %vm3642 = vmor %vm3640, %vm3641
        %v3643 = vsel %vm3642, %v3635, %v3639
        %v3644 = vand.u32 2147483647, %v3505
        %vm3645 = vcmp.eq.f32.partialorder %v3644, 8.507059e+37
        %v3646 = vand.u32 %v3505, 2147483648
        %v3647 = vor.u32 1.1754944e-38, %v3646
        %v3648 = vsel %vm3645, %v3647, %v3643
        %v3649 = vmul.f32 1.0, %v3648
        %v3650 = vrcp.pop %v3506
        %v3651 = vmul.f32 %v3506, %v3650
        %v3652 = vsub.f32 1.0, %v3651
        %v3653 = vmul.f32 %v3650, %v3652
        %v3654 = vadd.f32 %v3650, %v3653
        %vm3655 = vweird.f32 %v3506
        %vm3656 = vweird.f32 %v3650
        %vm3657 = vmor %vm3655, %vm3656
        %v3658 = vsel %vm3657, %v3650, %v3654
        %v3659 = vand.u32 2147483647, %v3506
        %vm3660 = vcmp.eq.f32.partialorder %v3659, 8.507059e+37
        %v3661 = vand.u32 %v3506, 2147483648
        %v3662 = vor.u32 1.1754944e-38, %v3661
        %v3663 = vsel %vm3660, %v3662, %v3658
        %v3664 = vmul.f32 1.0, %v3663
        %v3665 = vrcp.pop %v3507
        %v3666 = vmul.f32 %v3507, %v3665
        %v3667 = vsub.f32 1.0, %v3666
        %v3668 = vmul.f32 %v3665, %v3667
        %v3669 = vadd.f32 %v3665, %v3668
        %vm3670 = vweird.f32 %v3507
        %vm3671 = vweird.f32 %v3665
        %vm3672 = vmor %vm3670, %vm3671
        %v3673 = vsel %vm3672, %v3665, %v3669
        %v3674 = vand.u32 2147483647, %v3507
        %vm3675 = vcmp.eq.f32.partialorder %v3674, 8.507059e+37
        %v3676 = vand.u32 %v3507, 2147483648
        %v3677 = vor.u32 1.1754944e-38, %v3676
        %v3678 = vsel %vm3675, %v3677, %v3673
        %v3679 = vmul.f32 1.0, %v3678
        %v3680 = vrcp.pop %v3508
        %v3681 = vmul.f32 %v3508, %v3680
        %v3682 = vsub.f32 1.0, %v3681
        %v3683 = vmul.f32 %v3680, %v3682
        %v3684 = vadd.f32 %v3680, %v3683
        %vm3685 = vweird.f32 %v3508
        %vm3686 = vweird.f32 %v3680
        %vm3687 = vmor %vm3685, %vm3686
        %v3688 = vsel %vm3687, %v3680, %v3684
        %v3689 = vand.u32 2147483647, %v3508
        %vm3690 = vcmp.eq.f32.partialorder %v3689, 8.507059e+37
        %v3691 = vand.u32 %v3508, 2147483648
        %v3692 = vor.u32 1.1754944e-38, %v3691
        %v3693 = vsel %vm3690, %v3692, %v3688
        %v3694 = vmul.f32 1.0, %v3693
        %v3695 = vrcp.pop %v3509
        %v3696 = vmul.f32 %v3509, %v3695
        %v3697 = vsub.f32 1.0, %v3696
        %v3698 = vmul.f32 %v3695, %v3697
        %v3699 = vadd.f32 %v3695, %v3698
        %vm3700 = vweird.f32 %v3509
        %vm3701 = vweird.f32 %v3695
        %vm3702 = vmor %vm3700, %vm3701
        %v3703 = vsel %vm3702, %v3695, %v3699
        %v3704 = vand.u32 2147483647, %v3509
        %vm3705 = vcmp.eq.f32.partialorder %v3704, 8.507059e+37
        %v3706 = vand.u32 %v3509, 2147483648
        %v3707 = vor.u32 1.1754944e-38, %v3706
        %v3708 = vsel %vm3705, %v3707, %v3703
        %v3709 = vmul.f32 1.0, %v3708
        %v3710 = vrcp.pop %v3510
        %v3711 = vmul.f32 %v3510, %v3710
        %v3712 = vsub.f32 1.0, %v3711
        %v3713 = vmul.f32 %v3710, %v3712
        %v3714 = vadd.f32 %v3710, %v3713
        %vm3715 = vweird.f32 %v3510
        %vm3716 = vweird.f32 %v3710
        %vm3717 = vmor %vm3715, %vm3716
        %v3718 = vsel %vm3717, %v3710, %v3714
        %v3719 = vand.u32 2147483647, %v3510
        %vm3720 = vcmp.eq.f32.partialorder %v3719, 8.507059e+37
        %v3721 = vand.u32 %v3510, 2147483648
        %v3722 = vor.u32 1.1754944e-38, %v3721
        %v3723 = vsel %vm3720, %v3722, %v3718
        %v3724 = vmul.f32 1.0, %v3723
        %v3725 = vrcp.pop %v3511
        %v3726 = vmul.f32 %v3511, %v3725
        %v3727 = vsub.f32 1.0, %v3726
        %v3728 = vmul.f32 %v3725, %v3727
        %v3729 = vadd.f32 %v3725, %v3728
        %vm3730 = vweird.f32 %v3511
        %vm3731 = vweird.f32 %v3725
        %vm3732 = vmor %vm3730, %vm3731
        %v3733 = vsel %vm3732, %v3725, %v3729
        %v3734 = vand.u32 2147483647, %v3511
        %vm3735 = vcmp.eq.f32.partialorder %v3734, 8.507059e+37
        %v3736 = vand.u32 %v3511, 2147483648
        %v3737 = vor.u32 1.1754944e-38, %v3736
        %v3738 = vsel %vm3735, %v3737, %v3733
        %v3739 = vmul.f32 1.0, %v3738
        %v3740 = vrcp.pop %v3512
        %v3741 = vmul.f32 %v3512, %v3740
        %v3742 = vsub.f32 1.0, %v3741
        %v3743 = vmul.f32 %v3740, %v3742
        %v3744 = vadd.f32 %v3740, %v3743
        %vm3745 = vweird.f32 %v3512
        %vm3746 = vweird.f32 %v3740
        %vm3747 = vmor %vm3745, %vm3746
        %v3748 = vsel %vm3747, %v3740, %v3744
        %v3749 = vand.u32 2147483647, %v3512
        %vm3750 = vcmp.eq.f32.partialorder %v3749, 8.507059e+37
        %v3751 = vand.u32 %v3512, 2147483648
        %v3752 = vor.u32 1.1754944e-38, %v3751
        %v3753 = vsel %vm3750, %v3752, %v3748
        %v3754 = vmul.f32 1.0, %v3753
        %v3755 = vrcp.pop %v3513
        %v3756 = vmul.f32 %v3513, %v3755
        %v3757 = vsub.f32 1.0, %v3756
        %v3758 = vmul.f32 %v3755, %v3757
        %v3759 = vadd.f32 %v3755, %v3758
        %vm3760 = vweird.f32 %v3513
        %vm3761 = vweird.f32 %v3755
        %vm3762 = vmor %vm3760, %vm3761
        %v3763 = vsel %vm3762, %v3755, %v3759
        %v3764 = vand.u32 2147483647, %v3513
        %vm3765 = vcmp.eq.f32.partialorder %v3764, 8.507059e+37
        %v3766 = vand.u32 %v3513, 2147483648
        %v3767 = vor.u32 1.1754944e-38, %v3766
        %v3768 = vsel %vm3765, %v3767, %v3763
        %v3769 = vmul.f32 1.0, %v3768
        %v3770 = vrcp.pop %v3514
        %v3771 = vmul.f32 %v3514, %v3770
        %v3772 = vsub.f32 1.0, %v3771
        %v3773 = vmul.f32 %v3770, %v3772
        %v3774 = vadd.f32 %v3770, %v3773
        %vm3775 = vweird.f32 %v3514
        %vm3776 = vweird.f32 %v3770
        %vm3777 = vmor %vm3775, %vm3776
        %v3778 = vsel %vm3777, %v3770, %v3774
        %v3779 = vand.u32 2147483647, %v3514
        %vm3780 = vcmp.eq.f32.partialorder %v3779, 8.507059e+37
        %v3781 = vand.u32 %v3514, 2147483648
        %v3782 = vor.u32 1.1754944e-38, %v3781
        %v3783 = vsel %vm3780, %v3782, %v3778
        %v3784 = vmul.f32 1.0, %v3783
        %v3785 = vrcp.pop %v3515
        %v3786 = vmul.f32 %v3515, %v3785
        %v3787 = vsub.f32 1.0, %v3786
        %v3788 = vmul.f32 %v3785, %v3787
        %v3789 = vadd.f32 %v3785, %v3788
        %vm3790 = vweird.f32 %v3515
        %vm3791 = vweird.f32 %v3785
        %vm3792 = vmor %vm3790, %vm3791
        %v3793 = vsel %vm3792, %v3785, %v3789
        %v3794 = vand.u32 2147483647, %v3515
        %vm3795 = vcmp.eq.f32.partialorder %v3794, 8.507059e+37
        %v3796 = vand.u32 %v3515, 2147483648
        %v3797 = vor.u32 1.1754944e-38, %v3796
        %v3798 = vsel %vm3795, %v3797, %v3793
        %v3799 = vmul.f32 1.0, %v3798
        %v3800 = vrcp.pop %v3516
        %v3801 = vmul.f32 %v3516, %v3800
        %v3802 = vsub.f32 1.0, %v3801
        %v3803 = vmul.f32 %v3800, %v3802
        %v3804 = vadd.f32 %v3800, %v3803
        %vm3805 = vweird.f32 %v3516
        %vm3806 = vweird.f32 %v3800
        %vm3807 = vmor %vm3805, %vm3806
        %v3808 = vsel %vm3807, %v3800, %v3804
        %v3809 = vand.u32 2147483647, %v3516
        %vm3810 = vcmp.eq.f32.partialorder %v3809, 8.507059e+37
        %v3811 = vand.u32 %v3516, 2147483648
        %v3812 = vor.u32 1.1754944e-38, %v3811
        %v3813 = vsel %vm3810, %v3812, %v3808
        %v3814 = vmul.f32 1.0, %v3813
        %v3815 = vrcp.pop %v3517
        %v3816 = vmul.f32 %v3517, %v3815
        %v3817 = vsub.f32 1.0, %v3816
        %v3818 = vmul.f32 %v3815, %v3817
        %v3819 = vadd.f32 %v3815, %v3818
        %vm3820 = vweird.f32 %v3517
        %vm3821 = vweird.f32 %v3815
        %vm3822 = vmor %vm3820, %vm3821
        %v3823 = vsel %vm3822, %v3815, %v3819
        %v3824 = vand.u32 2147483647, %v3517
        %vm3825 = vcmp.eq.f32.partialorder %v3824, 8.507059e+37
        %v3826 = vand.u32 %v3517, 2147483648
        %v3827 = vor.u32 1.1754944e-38, %v3826
        %v3828 = vsel %vm3825, %v3827, %v3823
        %v3829 = vmul.f32 1.0, %v3828
        %v3830 = vrcp.pop %v3518
        %v3831 = vmul.f32 %v3518, %v3830
        %v3832 = vsub.f32 1.0, %v3831
        %v3833 = vmul.f32 %v3830, %v3832
        %v3834 = vadd.f32 %v3830, %v3833
        %vm3835 = vweird.f32 %v3518
        %vm3836 = vweird.f32 %v3830
        %vm3837 = vmor %vm3835, %vm3836
        %v3838 = vsel %vm3837, %v3830, %v3834
        %v3839 = vand.u32 2147483647, %v3518
        %vm3840 = vcmp.eq.f32.partialorder %v3839, 8.507059e+37
        %v3841 = vand.u32 %v3518, 2147483648
        %v3842 = vor.u32 1.1754944e-38, %v3841
        %v3843 = vsel %vm3840, %v3842, %v3838
        %v3844 = vmul.f32 1.0, %v3843
        %v3845 = vrcp.pop %v3519
        %v3846 = vmul.f32 %v3519, %v3845
        %v3847 = vsub.f32 1.0, %v3846
        %v3848 = vmul.f32 %v3845, %v3847
        %v3849 = vadd.f32 %v3845, %v3848
        %vm3850 = vweird.f32 %v3519
        %vm3851 = vweird.f32 %v3845
        %vm3852 = vmor %vm3850, %vm3851
        %v3853 = vsel %vm3852, %v3845, %v3849
        %v3854 = vand.u32 2147483647, %v3519
        %vm3855 = vcmp.eq.f32.partialorder %v3854, 8.507059e+37
        %v3856 = vand.u32 %v3519, 2147483648
        %v3857 = vor.u32 1.1754944e-38, %v3856
        %v3858 = vsel %vm3855, %v3857, %v3853
        %v3859 = vmul.f32 1.0, %v3858
        %v3860 = vrcp.pop %v3520
        %v3861 = vmul.f32 %v3520, %v3860
        %v3862 = vsub.f32 1.0, %v3861
        %v3863 = vmul.f32 %v3860, %v3862
        %v3864 = vadd.f32 %v3860, %v3863
        %vm3865 = vweird.f32 %v3520
        %vm3866 = vweird.f32 %v3860
        %vm3867 = vmor %vm3865, %vm3866
        %v3868 = vsel %vm3867, %v3860, %v3864
        %v3869 = vand.u32 2147483647, %v3520
        %vm3870 = vcmp.eq.f32.partialorder %v3869, 8.507059e+37
        %v3871 = vand.u32 %v3520, 2147483648
        %v3872 = vor.u32 1.1754944e-38, %v3871
        %v3873 = vsel %vm3870, %v3872, %v3868
        %v3874 = vmul.f32 1.0, %v3873
        %v3875 = vrcp.pop %v3521
        %v3876 = vmul.f32 %v3521, %v3875
        %v3877 = vsub.f32 1.0, %v3876
        %v3878 = vmul.f32 %v3875, %v3877
        %v3879 = vadd.f32 %v3875, %v3878
        %vm3880 = vweird.f32 %v3521
        %vm3881 = vweird.f32 %v3875
        %vm3882 = vmor %vm3880, %vm3881
        %v3883 = vsel %vm3882, %v3875, %v3879
        %v3884 = vand.u32 2147483647, %v3521
        %vm3885 = vcmp.eq.f32.partialorder %v3884, 8.507059e+37
        %v3886 = vand.u32 %v3521, 2147483648
        %v3887 = vor.u32 1.1754944e-38, %v3886
        %v3888 = vsel %vm3885, %v3887, %v3883
        %v3889 = vmul.f32 1.0, %v3888
        %v3890 = vrcp.pop %v3522
        %v3891 = vmul.f32 %v3522, %v3890
        %v3892 = vsub.f32 1.0, %v3891
        %v3893 = vmul.f32 %v3890, %v3892
        %v3894 = vadd.f32 %v3890, %v3893
        %vm3895 = vweird.f32 %v3522
        %vm3896 = vweird.f32 %v3890
        %vm3897 = vmor %vm3895, %vm3896
        %v3898 = vsel %vm3897, %v3890, %v3894
        %v3899 = vand.u32 2147483647, %v3522
        %vm3900 = vcmp.eq.f32.partialorder %v3899, 8.507059e+37
        %v3901 = vand.u32 %v3522, 2147483648
        %v3902 = vor.u32 1.1754944e-38, %v3901
        %v3903 = vsel %vm3900, %v3902, %v3898
        %v3904 = vmul.f32 1.0, %v3903
        %v3905 = vrcp.pop %v3523
        %v3906 = vmul.f32 %v3523, %v3905
        %v3907 = vsub.f32 1.0, %v3906
        %v3908 = vmul.f32 %v3905, %v3907
        %v3909 = vadd.f32 %v3905, %v3908
        %vm3910 = vweird.f32 %v3523
        %vm3911 = vweird.f32 %v3905
        %vm3912 = vmor %vm3910, %vm3911
        %v3913 = vsel %vm3912, %v3905, %v3909
        %v3914 = vand.u32 2147483647, %v3523
        %vm3915 = vcmp.eq.f32.partialorder %v3914, 8.507059e+37
        %v3916 = vand.u32 %v3523, 2147483648
        %v3917 = vor.u32 1.1754944e-38, %v3916
        %v3918 = vsel %vm3915, %v3917, %v3913
        %v3919 = vmul.f32 1.0, %v3918
        %v3920 = vrcp.pop %v3524
        %v3921 = vmul.f32 %v3524, %v3920
        %v3922 = vsub.f32 1.0, %v3921
        %v3923 = vmul.f32 %v3920, %v3922
        %v3924 = vadd.f32 %v3920, %v3923
        %vm3925 = vweird.f32 %v3524
        %vm3926 = vweird.f32 %v3920
        %vm3927 = vmor %vm3925, %vm3926
        %v3928 = vsel %vm3927, %v3920, %v3924
        %v3929 = vand.u32 2147483647, %v3524
        %vm3930 = vcmp.eq.f32.partialorder %v3929, 8.507059e+37
        %v3931 = vand.u32 %v3524, 2147483648
        %v3932 = vor.u32 1.1754944e-38, %v3931
        %v3933 = vsel %vm3930, %v3932, %v3928
        %v3934 = vmul.f32 1.0, %v3933
        %v3935 = vrcp.pop %v3525
        %v3936 = vmul.f32 %v3525, %v3935
        %v3937 = vsub.f32 1.0, %v3936
        %v3938 = vmul.f32 %v3935, %v3937
        %v3939 = vadd.f32 %v3935, %v3938
        %vm3940 = vweird.f32 %v3525
        %vm3941 = vweird.f32 %v3935
        %vm3942 = vmor %vm3940, %vm3941
        %v3943 = vsel %vm3942, %v3935, %v3939
        %v3944 = vand.u32 2147483647, %v3525
        %vm3945 = vcmp.eq.f32.partialorder %v3944, 8.507059e+37
        %v3946 = vand.u32 %v3525, 2147483648
        %v3947 = vor.u32 1.1754944e-38, %v3946
        %v3948 = vsel %vm3945, %v3947, %v3943
        %v3949 = vmul.f32 1.0, %v3948
        %v3950 = vrcp.pop %v3526
        %v3951 = vmul.f32 %v3526, %v3950
        %v3952 = vsub.f32 1.0, %v3951
        %v3953 = vmul.f32 %v3950, %v3952
        %v3954 = vadd.f32 %v3950, %v3953
        %vm3955 = vweird.f32 %v3526
        %vm3956 = vweird.f32 %v3950
        %vm3957 = vmor %vm3955, %vm3956
        %v3958 = vsel %vm3957, %v3950, %v3954
        %v3959 = vand.u32 2147483647, %v3526
        %vm3960 = vcmp.eq.f32.partialorder %v3959, 8.507059e+37
        %v3961 = vand.u32 %v3526, 2147483648
        %v3962 = vor.u32 1.1754944e-38, %v3961
        %v3963 = vsel %vm3960, %v3962, %v3958
        %v3964 = vmul.f32 1.0, %v3963
        %v3965 = vrcp.pop %v3527
        %v3966 = vmul.f32 %v3527, %v3965
        %v3967 = vsub.f32 1.0, %v3966
        %v3968 = vmul.f32 %v3965, %v3967
        %v3969 = vadd.f32 %v3965, %v3968
        %vm3970 = vweird.f32 %v3527
        %vm3971 = vweird.f32 %v3965
        %vm3972 = vmor %vm3970, %vm3971
        %v3973 = vsel %vm3972, %v3965, %v3969
        %v3974 = vand.u32 2147483647, %v3527
        %vm3975 = vcmp.eq.f32.partialorder %v3974, 8.507059e+37
        %v3976 = vand.u32 %v3527, 2147483648
        %v3977 = vor.u32 1.1754944e-38, %v3976
        %v3978 = vsel %vm3975, %v3977, %v3973
        %v3979 = vmul.f32 1.0, %v3978
        %v3980 = vrcp.pop %v3528
        %v3981 = vmul.f32 %v3528, %v3980
        %v3982 = vsub.f32 1.0, %v3981
        %v3983 = vmul.f32 %v3980, %v3982
        %v3984 = vadd.f32 %v3980, %v3983
        %vm3985 = vweird.f32 %v3528
        %vm3986 = vweird.f32 %v3980
        %vm3987 = vmor %vm3985, %vm3986
        %v3988 = vsel %vm3987, %v3980, %v3984
        %v3989 = vand.u32 2147483647, %v3528
        %vm3990 = vcmp.eq.f32.partialorder %v3989, 8.507059e+37
        %v3991 = vand.u32 %v3528, 2147483648
        %v3992 = vor.u32 1.1754944e-38, %v3991
        %v3993 = vsel %vm3990, %v3992, %v3988
        %v3994 = vmul.f32 1.0, %v3993
        %v3995 = vrcp.pop %v3529
        %v3996 = vmul.f32 %v3529, %v3995
        %v3997 = vsub.f32 1.0, %v3996
        %v3998 = vmul.f32 %v3995, %v3997
        %v3999 = vadd.f32 %v3995, %v3998
        %vm4000 = vweird.f32 %v3529
        %vm4001 = vweird.f32 %v3995
        %vm4002 = vmor %vm4000, %vm4001
        %v4003 = vsel %vm4002, %v3995, %v3999
        %v4004 = vand.u32 2147483647, %v3529
        %vm4005 = vcmp.eq.f32.partialorder %v4004, 8.507059e+37
        %v4006 = vand.u32 %v3529, 2147483648
        %v4007 = vor.u32 1.1754944e-38, %v4006
        %v4008 = vsel %vm4005, %v4007, %v4003
        %v4009 = vmul.f32 1.0, %v4008
        %v4010 = vmul.f32 %v3370, %v3544
        %v4011 = vmul.f32 %v3371, %v3559
        %v4012 = vmul.f32 %v3372, %v3574
        %v4013 = vmul.f32 %v3373, %v3589
        %v4014 = vmul.f32 %v3374, %v3604
        %v4015 = vmul.f32 %v3375, %v3619
        %v4016 = vmul.f32 %v3376, %v3634
        %v4017 = vmul.f32 %v3377, %v3649
        %v4018 = vmul.f32 %v3378, %v3664
        %v4019 = vmul.f32 %v3379, %v3679
        %v4020 = vmul.f32 %v3380, %v3694
        %v4021 = vmul.f32 %v3381, %v3709
        %v4022 = vmul.f32 %v3382, %v3724
        %v4023 = vmul.f32 %v3383, %v3739
        %v4024 = vmul.f32 %v3384, %v3754
        %v4025 = vmul.f32 %v3385, %v3769
        %v4026 = vmul.f32 %v3386, %v3784
        %v4027 = vmul.f32 %v3387, %v3799
        %v4028 = vmul.f32 %v3388, %v3814
        %v4029 = vmul.f32 %v3389, %v3829
        %v4030 = vmul.f32 %v3390, %v3844
        %v4031 = vmul.f32 %v3391, %v3859
        %v4032 = vmul.f32 %v3392, %v3874
        %v4033 = vmul.f32 %v3393, %v3889
        %v4034 = vmul.f32 %v3394, %v3904
        %v4035 = vmul.f32 %v3395, %v3919
        %v4036 = vmul.f32 %v3396, %v3934
        %v4037 = vmul.f32 %v3397, %v3949
        %v4038 = vmul.f32 %v3398, %v3964
        %v4039 = vmul.f32 %v3399, %v3979
        %v4040 = vmul.f32 %v3400, %v3994
        %v4041 = vmul.f32 %v3401, %v4009
        %v4072 = vrot.slane %v4010, 7
        %v4073 = vrot.slane %v4011, 7
        %v4074 = vsel %vm1564, %v4072, %v4073
        %v4075 = vrot.slane %v4012, 7
        %v4076 = vrot.slane %v4013, 7
        %v4077 = vsel %vm1564, %v4075, %v4076
        %v4078 = vrot.slane %v4014, 7
        %v4079 = vrot.slane %v4015, 7
        %v4080 = vsel %vm1564, %v4078, %v4079
        %v4081 = vrot.slane %v4016, 7
        %v4082 = vrot.slane %v4017, 7
        %v4083 = vsel %vm1564, %v4081, %v4082
        %v4084 = vrot.slane %v4018, 7
        %v4085 = vrot.slane %v4019, 7
        %v4086 = vsel %vm1564, %v4084, %v4085
        %v4087 = vrot.slane %v4020, 7
        %v4088 = vrot.slane %v4021, 7
        %v4089 = vsel %vm1564, %v4087, %v4088
        %v4090 = vrot.slane %v4022, 7
        %v4091 = vrot.slane %v4023, 7
        %v4092 = vsel %vm1564, %v4090, %v4091
        %v4093 = vrot.slane %v4024, 7
        %v4094 = vrot.slane %v4025, 7
        %v4095 = vsel %vm1564, %v4093, %v4094
        %v4096 = vrot.slane %v4026, 7
        %v4097 = vrot.slane %v4027, 7
        %v4098 = vsel %vm1564, %v4096, %v4097
        %v4099 = vrot.slane %v4028, 7
        %v4100 = vrot.slane %v4029, 7
        %v4101 = vsel %vm1564, %v4099, %v4100
        %v4102 = vrot.slane %v4030, 7
        %v4103 = vrot.slane %v4031, 7
        %v4104 = vsel %vm1564, %v4102, %v4103
        %v4105 = vrot.slane %v4032, 7
        %v4106 = vrot.slane %v4033, 7
        %v4107 = vsel %vm1564, %v4105, %v4106
        %v4108 = vrot.slane %v4034, 7
        %v4109 = vrot.slane %v4035, 7
        %v4110 = vsel %vm1564, %v4108, %v4109
        %v4111 = vrot.slane %v4036, 7
        %v4112 = vrot.slane %v4037, 7
        %v4113 = vsel %vm1564, %v4111, %v4112
        %v4114 = vrot.slane %v4038, 7
        %v4115 = vrot.slane %v4039, 7
        %v4116 = vsel %vm1564, %v4114, %v4115
        %v4147 = vsel %vm1564, 0.0, %v4072
        %v4148 = vsel %vm1564, 0.0, %v4075
        %v4149 = vsel %vm1564, 0.0, %v4078
        %v4150 = vsel %vm1564, 0.0, %v4081
        %v4151 = vsel %vm1564, 0.0, %v4084
        %v4152 = vsel %vm1564, 0.0, %v4087
        %v4153 = vsel %vm1564, 0.0, %v4090
        %v4154 = vsel %vm1564, 0.0, %v4093
        %v4155 = vsel %vm1564, 0.0, %v4096
        %v4156 = vsel %vm1564, 0.0, %v4099
        %v4157 = vsel %vm1564, 0.0, %v4102
        %v4158 = vsel %vm1564, 0.0, %v4105
        %v4159 = vsel %vm1564, 0.0, %v4108
        %v4160 = vsel %vm1564, 0.0, %v4111
        %v4161 = vsel %vm1564, 0.0, %v4114
        %v4162 = vrot.slane %v4010, 1
        %v4163 = vrot.slane %v4011, 1
        %v4164 = vsel %vm1660, %v4162, %v4163
        %v4165 = vrot.slane %v4012, 1
        %v4166 = vrot.slane %v4013, 1
        %v4167 = vsel %vm1660, %v4165, %v4166
        %v4168 = vrot.slane %v4014, 1
        %v4169 = vrot.slane %v4015, 1
        %v4170 = vsel %vm1660, %v4168, %v4169
        %v4171 = vrot.slane %v4016, 1
        %v4172 = vrot.slane %v4017, 1
        %v4173 = vsel %vm1660, %v4171, %v4172
        %v4174 = vrot.slane %v4018, 1
        %v4175 = vrot.slane %v4019, 1
        %v4176 = vsel %vm1660, %v4174, %v4175
        %v4177 = vrot.slane %v4020, 1
        %v4178 = vrot.slane %v4021, 1
        %v4179 = vsel %vm1660, %v4177, %v4178
        %v4180 = vrot.slane %v4022, 1
        %v4181 = vrot.slane %v4023, 1
        %v4182 = vsel %vm1660, %v4180, %v4181
        %v4183 = vrot.slane %v4024, 1
        %v4184 = vrot.slane %v4025, 1
        %v4185 = vsel %vm1660, %v4183, %v4184
        %v4186 = vrot.slane %v4026, 1
        %v4187 = vrot.slane %v4027, 1
        %v4188 = vsel %vm1660, %v4186, %v4187
        %v4189 = vrot.slane %v4028, 1
        %v4190 = vrot.slane %v4029, 1
        %v4191 = vsel %vm1660, %v4189, %v4190
        %v4192 = vrot.slane %v4030, 1
        %v4193 = vrot.slane %v4031, 1
        %v4194 = vsel %vm1660, %v4192, %v4193
        %v4195 = vrot.slane %v4032, 1
        %v4196 = vrot.slane %v4033, 1
        %v4197 = vsel %vm1660, %v4195, %v4196
        %v4198 = vrot.slane %v4034, 1
        %v4199 = vrot.slane %v4035, 1
        %v4200 = vsel %vm1660, %v4198, %v4199
        %v4201 = vrot.slane %v4036, 1
        %v4202 = vrot.slane %v4037, 1
        %v4203 = vsel %vm1660, %v4201, %v4202
        %v4204 = vrot.slane %v4038, 1
        %v4205 = vrot.slane %v4039, 1
        %v4206 = vsel %vm1660, %v4204, %v4205
        %v4222 = vsel %vm1660, %v4163, 0.0
        %v4223 = vsel %vm1660, %v4166, 0.0
        %v4224 = vsel %vm1660, %v4169, 0.0
        %v4225 = vsel %vm1660, %v4172, 0.0
        %v4226 = vsel %vm1660, %v4175, 0.0
        %v4227 = vsel %vm1660, %v4178, 0.0
        %v4228 = vsel %vm1660, %v4181, 0.0
        %v4229 = vsel %vm1660, %v4184, 0.0
        %v4230 = vsel %vm1660, %v4187, 0.0
        %v4231 = vsel %vm1660, %v4190, 0.0
        %v4232 = vsel %vm1660, %v4193, 0.0
        %v4233 = vsel %vm1660, %v4196, 0.0
        %v4234 = vsel %vm1660, %v4199, 0.0
        %v4235 = vsel %vm1660, %v4202, 0.0
        %v4236 = vsel %vm1660, %v4205, 0.0
        %v4239 = vrot.slane %v4040, 7
        %v4240 = vrot.slane %v4041, 7
        %v4241 = vsel %vm1564, %v4239, %v4240
        %v4243 = vsel %vm1564, 0.0, %v4239
        %v4244 = vrot.slane %v4040, 1
        %v4245 = vrot.slane %v4041, 1
        %v4246 = vsel %vm1660, %v4244, %v4245
        %v4248 = vsel %vm1660, %v4245, 0.0
        %4249 = vrot.lane.b32.xlu0 0.0, 16
        %v4250 = vpop.permute.xlu0 %4249
        %4251 = vrot.lane.b32.xlu0 %v4010, 16
        %v4252 = vpop.permute.xlu0 %4251
        %4253 = vrot.lane.b32.xlu0 %v4011, 16
        %v4254 = vpop.permute.xlu0 %4253
        %4255 = vrot.lane.b32.xlu0 %v4012, 16
        %v4256 = vpop.permute.xlu0 %4255
        %4257 = vrot.lane.b32.xlu0 %v4013, 16
        %v4258 = vpop.permute.xlu0 %4257
        %4259 = vrot.lane.b32.xlu0 %v4014, 16
        %v4260 = vpop.permute.xlu0 %4259
        %4261 = vrot.lane.b32.xlu0 %v4015, 16
        %v4262 = vpop.permute.xlu0 %4261
        %4263 = vrot.lane.b32.xlu0 %v4016, 16
        %v4264 = vpop.permute.xlu0 %4263
        %4265 = vrot.lane.b32.xlu0 %v4017, 16
        %v4266 = vpop.permute.xlu0 %4265
        %4267 = vrot.lane.b32.xlu0 %v4018, 16
        %v4268 = vpop.permute.xlu0 %4267
        %4269 = vrot.lane.b32.xlu0 %v4019, 16
        %v4270 = vpop.permute.xlu0 %4269
        %4271 = vrot.lane.b32.xlu0 %v4020, 16
        %v4272 = vpop.permute.xlu0 %4271
        %4273 = vrot.lane.b32.xlu0 %v4021, 16
        %v4274 = vpop.permute.xlu0 %4273
        %4275 = vrot.lane.b32.xlu0 %v4022, 16
        %v4276 = vpop.permute.xlu0 %4275
        %4277 = vrot.lane.b32.xlu0 %v4023, 16
        %v4278 = vpop.permute.xlu0 %4277
        %4279 = vrot.lane.b32.xlu0 %v4024, 16
        %v4280 = vpop.permute.xlu0 %4279
        %4281 = vrot.lane.b32.xlu0 %v4025, 16
        %v4282 = vpop.permute.xlu0 %4281
        %4283 = vrot.lane.b32.xlu0 %v4026, 16
        %v4284 = vpop.permute.xlu0 %4283
        %4285 = vrot.lane.b32.xlu0 %v4027, 16
        %v4286 = vpop.permute.xlu0 %4285
        %4287 = vrot.lane.b32.xlu0 %v4028, 16
        %v4288 = vpop.permute.xlu0 %4287
        %4289 = vrot.lane.b32.xlu0 %v4029, 16
        %v4290 = vpop.permute.xlu0 %4289
        %4291 = vrot.lane.b32.xlu0 %v4030, 16
        %v4292 = vpop.permute.xlu0 %4291
        %4293 = vrot.lane.b32.xlu0 %v4031, 16
        %v4294 = vpop.permute.xlu0 %4293
        %4295 = vrot.lane.b32.xlu0 %v4032, 16
        %v4296 = vpop.permute.xlu0 %4295
        %4297 = vrot.lane.b32.xlu0 %v4033, 16
        %v4298 = vpop.permute.xlu0 %4297
        %4299 = vrot.lane.b32.xlu0 %v4034, 16
        %v4300 = vpop.permute.xlu0 %4299
        %4301 = vrot.lane.b32.xlu0 %v4035, 16
        %v4302 = vpop.permute.xlu0 %4301
        %4303 = vrot.lane.b32.xlu0 %v4036, 16
        %v4304 = vpop.permute.xlu0 %4303
        %4305 = vrot.lane.b32.xlu0 %v4037, 16
        %v4306 = vpop.permute.xlu0 %4305
        %4307 = vrot.lane.b32.xlu0 %v4038, 16
        %v4308 = vpop.permute.xlu0 %4307
        %4309 = vrot.lane.b32.xlu0 %v4039, 16
        %v4310 = vpop.permute.xlu0 %4309
        %4357 = vrot.lane.b32.xlu0 %v1662, 32
        %v4358 = vpop.permute.xlu0 %4357
        %4359 = vrot.lane.b32.xlu0 %v1724, 32
        %v4360 = vpop.permute.xlu0 %4359
        %4361 = vrot.lane.b32.xlu0 %v4164, 32
        %v4362 = vpop.permute.xlu0 %4361
        %4363 = vrot.lane.b32.xlu0 %v4222, 32
        %v4364 = vpop.permute.xlu0 %4363
        %4365 = vrot.lane.b32.xlu0 %v4167, 32
        %v4366 = vpop.permute.xlu0 %4365
        %4367 = vrot.lane.b32.xlu0 %v4223, 32
        %v4368 = vpop.permute.xlu0 %4367
        %4369 = vrot.lane.b32.xlu0 %v4170, 32
        %v4370 = vpop.permute.xlu0 %4369
        %4371 = vrot.lane.b32.xlu0 %v4224, 32
        %v4372 = vpop.permute.xlu0 %4371
        %4373 = vrot.lane.b32.xlu0 %v4173, 32
        %v4374 = vpop.permute.xlu0 %4373
        %4375 = vrot.lane.b32.xlu0 %v4225, 32
        %v4376 = vpop.permute.xlu0 %4375
        %4377 = vrot.lane.b32.xlu0 %v4176, 32
        %v4378 = vpop.permute.xlu0 %4377
        %4379 = vrot.lane.b32.xlu0 %v4226, 32
        %v4380 = vpop.permute.xlu0 %4379
        %4381 = vrot.lane.b32.xlu0 %v4179, 32
        %v4382 = vpop.permute.xlu0 %4381
        %4383 = vrot.lane.b32.xlu0 %v4227, 32
        %v4384 = vpop.permute.xlu0 %4383
        %4385 = vrot.lane.b32.xlu0 %v4182, 32
        %v4386 = vpop.permute.xlu0 %4385
        %4387 = vrot.lane.b32.xlu0 %v4228, 32
        %v4388 = vpop.permute.xlu0 %4387
        %4389 = vrot.lane.b32.xlu0 %v4185, 32
        %v4390 = vpop.permute.xlu0 %4389
        %4391 = vrot.lane.b32.xlu0 %v4229, 32
        %v4392 = vpop.permute.xlu0 %4391
        %4393 = vrot.lane.b32.xlu0 %v4188, 32
        %v4394 = vpop.permute.xlu0 %4393
        %4395 = vrot.lane.b32.xlu0 %v4230, 32
        %v4396 = vpop.permute.xlu0 %4395
        %4397 = vrot.lane.b32.xlu0 %v4191, 32
        %v4398 = vpop.permute.xlu0 %4397
        %4399 = vrot.lane.b32.xlu0 %v4231, 32
        %v4400 = vpop.permute.xlu0 %4399
        %4401 = vrot.lane.b32.xlu0 %v4194, 32
        %v4402 = vpop.permute.xlu0 %4401
        %4403 = vrot.lane.b32.xlu0 %v4232, 32
        %v4404 = vpop.permute.xlu0 %4403
        %4405 = vrot.lane.b32.xlu0 %v4197, 32
        %v4406 = vpop.permute.xlu0 %4405
        %4407 = vrot.lane.b32.xlu0 %v4233, 32
        %v4408 = vpop.permute.xlu0 %4407
        %4409 = vrot.lane.b32.xlu0 %v4200, 32
        %v4410 = vpop.permute.xlu0 %4409
        %4411 = vrot.lane.b32.xlu0 %v4234, 32
        %v4412 = vpop.permute.xlu0 %4411
        %4413 = vrot.lane.b32.xlu0 %v4203, 32
        %v4414 = vpop.permute.xlu0 %4413
        %4415 = vrot.lane.b32.xlu0 %v4235, 32
        %v4416 = vpop.permute.xlu0 %4415
        %4417 = vrot.lane.b32.xlu0 %v4206, 32
        %v4418 = vpop.permute.xlu0 %4417
        %4419 = vrot.lane.b32.xlu0 %v4236, 32
        %v4420 = vpop.permute.xlu0 %4419
        %4469 = vrot.lane.b32.xlu0 %v4147, 48
        %v4470 = vpop.permute.xlu0 %4469
        %4471 = vrot.lane.b32.xlu0 %v4074, 48
        %v4472 = vpop.permute.xlu0 %4471
        %4473 = vrot.lane.b32.xlu0 %v4148, 48
        %v4474 = vpop.permute.xlu0 %4473
        %4475 = vrot.lane.b32.xlu0 %v4077, 48
        %v4476 = vpop.permute.xlu0 %4475
        %4477 = vrot.lane.b32.xlu0 %v4149, 48
        %v4478 = vpop.permute.xlu0 %4477
        %4479 = vrot.lane.b32.xlu0 %v4080, 48
        %v4480 = vpop.permute.xlu0 %4479
        %4481 = vrot.lane.b32.xlu0 %v4150, 48
        %v4482 = vpop.permute.xlu0 %4481
        %4483 = vrot.lane.b32.xlu0 %v4083, 48
        %v4484 = vpop.permute.xlu0 %4483
        %4485 = vrot.lane.b32.xlu0 %v4151, 48
        %v4486 = vpop.permute.xlu0 %4485
        %4487 = vrot.lane.b32.xlu0 %v4086, 48
        %v4488 = vpop.permute.xlu0 %4487
        %4489 = vrot.lane.b32.xlu0 %v4152, 48
        %v4490 = vpop.permute.xlu0 %4489
        %4491 = vrot.lane.b32.xlu0 %v4089, 48
        %v4492 = vpop.permute.xlu0 %4491
        %4493 = vrot.lane.b32.xlu0 %v4153, 48
        %v4494 = vpop.permute.xlu0 %4493
        %4495 = vrot.lane.b32.xlu0 %v4092, 48
        %v4496 = vpop.permute.xlu0 %4495
        %4497 = vrot.lane.b32.xlu0 %v4154, 48
        %v4498 = vpop.permute.xlu0 %4497
        %4499 = vrot.lane.b32.xlu0 %v4095, 48
        %v4500 = vpop.permute.xlu0 %4499
        %4501 = vrot.lane.b32.xlu0 %v4155, 48
        %v4502 = vpop.permute.xlu0 %4501
        %4503 = vrot.lane.b32.xlu0 %v4098, 48
        %v4504 = vpop.permute.xlu0 %4503
        %4505 = vrot.lane.b32.xlu0 %v4156, 48
        %v4506 = vpop.permute.xlu0 %4505
        %4507 = vrot.lane.b32.xlu0 %v4101, 48
        %v4508 = vpop.permute.xlu0 %4507
        %4509 = vrot.lane.b32.xlu0 %v4157, 48
        %v4510 = vpop.permute.xlu0 %4509
        %4511 = vrot.lane.b32.xlu0 %v4104, 48
        %v4512 = vpop.permute.xlu0 %4511
        %4513 = vrot.lane.b32.xlu0 %v4158, 48
        %v4514 = vpop.permute.xlu0 %4513
        %4515 = vrot.lane.b32.xlu0 %v4107, 48
        %v4516 = vpop.permute.xlu0 %4515
        %4517 = vrot.lane.b32.xlu0 %v4159, 48
        %v4518 = vpop.permute.xlu0 %4517
        %4519 = vrot.lane.b32.xlu0 %v4110, 48
        %v4520 = vpop.permute.xlu0 %4519
        %4521 = vrot.lane.b32.xlu0 %v4160, 48
        %v4522 = vpop.permute.xlu0 %4521
        %4523 = vrot.lane.b32.xlu0 %v4113, 48
        %v4524 = vpop.permute.xlu0 %4523
        %4525 = vrot.lane.b32.xlu0 %v4161, 48
        %v4526 = vpop.permute.xlu0 %4525
        %4527 = vrot.lane.b32.xlu0 %v4116, 48
        %v4528 = vpop.permute.xlu0 %4527
        %4529 = vrot.lane.b32.xlu0 %v4243, 48
        %v4530 = vpop.permute.xlu0 %4529
        %4531 = vrot.lane.b32.xlu0 %v4241, 48
        %v4532 = vpop.permute.xlu0 %4531
        %4565 = vrot.lane.b32.xlu0 %v4010, 64
        %v4566 = vpop.permute.xlu0 %4565
        %4567 = vrot.lane.b32.xlu0 %v4011, 64
        %v4568 = vpop.permute.xlu0 %4567
        %4569 = vrot.lane.b32.xlu0 %v4012, 64
        %v4570 = vpop.permute.xlu0 %4569
        %4571 = vrot.lane.b32.xlu0 %v4013, 64
        %v4572 = vpop.permute.xlu0 %4571
        %4573 = vrot.lane.b32.xlu0 %v4014, 64
        %v4574 = vpop.permute.xlu0 %4573
        %4575 = vrot.lane.b32.xlu0 %v4015, 64
        %v4576 = vpop.permute.xlu0 %4575
        %4577 = vrot.lane.b32.xlu0 %v4016, 64
        %v4578 = vpop.permute.xlu0 %4577
        %4579 = vrot.lane.b32.xlu0 %v4017, 64
        %v4580 = vpop.permute.xlu0 %4579
        %4581 = vrot.lane.b32.xlu0 %v4018, 64
        %v4582 = vpop.permute.xlu0 %4581
        %4583 = vrot.lane.b32.xlu0 %v4019, 64
        %v4584 = vpop.permute.xlu0 %4583
        %4585 = vrot.lane.b32.xlu0 %v4020, 64
        %v4586 = vpop.permute.xlu0 %4585
        %4587 = vrot.lane.b32.xlu0 %v4021, 64
        %v4588 = vpop.permute.xlu0 %4587
        %4589 = vrot.lane.b32.xlu0 %v4022, 64
        %v4590 = vpop.permute.xlu0 %4589
        %4591 = vrot.lane.b32.xlu0 %v4023, 64
        %v4592 = vpop.permute.xlu0 %4591
        %4593 = vrot.lane.b32.xlu0 %v4024, 64
        %v4594 = vpop.permute.xlu0 %4593
        %4595 = vrot.lane.b32.xlu0 %v4025, 64
        %v4596 = vpop.permute.xlu0 %4595
        %4597 = vrot.lane.b32.xlu0 %v4026, 64
        %v4598 = vpop.permute.xlu0 %4597
        %4599 = vrot.lane.b32.xlu0 %v4027, 64
        %v4600 = vpop.permute.xlu0 %4599
        %4601 = vrot.lane.b32.xlu0 %v4028, 64
        %v4602 = vpop.permute.xlu0 %4601
        %4603 = vrot.lane.b32.xlu0 %v4029, 64
        %v4604 = vpop.permute.xlu0 %4603
        %4605 = vrot.lane.b32.xlu0 %v4030, 64
        %v4606 = vpop.permute.xlu0 %4605
        %4607 = vrot.lane.b32.xlu0 %v4031, 64
        %v4608 = vpop.permute.xlu0 %4607
        %4609 = vrot.lane.b32.xlu0 %v4032, 64
        %v4610 = vpop.permute.xlu0 %4609
        %4611 = vrot.lane.b32.xlu0 %v4033, 64
        %v4612 = vpop.permute.xlu0 %4611
        %4613 = vrot.lane.b32.xlu0 %v4034, 64
        %v4614 = vpop.permute.xlu0 %4613
        %4615 = vrot.lane.b32.xlu0 %v4035, 64
        %v4616 = vpop.permute.xlu0 %4615
        %4617 = vrot.lane.b32.xlu0 %v4036, 64
        %v4618 = vpop.permute.xlu0 %4617
        %4619 = vrot.lane.b32.xlu0 %v4037, 64
        %v4620 = vpop.permute.xlu0 %4619
        %4621 = vrot.lane.b32.xlu0 %v4038, 64
        %v4622 = vpop.permute.xlu0 %4621
        %4623 = vrot.lane.b32.xlu0 %v4039, 64
        %v4624 = vpop.permute.xlu0 %4623
        %4625 = vrot.lane.b32.xlu0 %v4040, 64
        %v4626 = vpop.permute.xlu0 %4625
        %4627 = vrot.lane.b32.xlu0 %v4041, 64
        %v4628 = vpop.permute.xlu0 %4627
        %4662 = vrot.lane.b32.xlu0 %v4164, 80
        %v4663 = vpop.permute.xlu0 %4662
        %4664 = vrot.lane.b32.xlu0 %v4222, 80
        %v4665 = vpop.permute.xlu0 %4664
        %4666 = vrot.lane.b32.xlu0 %v4167, 80
        %v4667 = vpop.permute.xlu0 %4666
        %4668 = vrot.lane.b32.xlu0 %v4223, 80
        %v4669 = vpop.permute.xlu0 %4668
        %4670 = vrot.lane.b32.xlu0 %v4170, 80
        %v4671 = vpop.permute.xlu0 %4670
        %4672 = vrot.lane.b32.xlu0 %v4224, 80
        %v4673 = vpop.permute.xlu0 %4672
        %4674 = vrot.lane.b32.xlu0 %v4173, 80
        %v4675 = vpop.permute.xlu0 %4674
        %4676 = vrot.lane.b32.xlu0 %v4225, 80
        %v4677 = vpop.permute.xlu0 %4676
        %4678 = vrot.lane.b32.xlu0 %v4176, 80
        %v4679 = vpop.permute.xlu0 %4678
        %4680 = vrot.lane.b32.xlu0 %v4226, 80
        %v4681 = vpop.permute.xlu0 %4680
        %4682 = vrot.lane.b32.xlu0 %v4179, 80
        %v4683 = vpop.permute.xlu0 %4682
        %4684 = vrot.lane.b32.xlu0 %v4227, 80
        %v4685 = vpop.permute.xlu0 %4684
        %4686 = vrot.lane.b32.xlu0 %v4182, 80
        %v4687 = vpop.permute.xlu0 %4686
        %4688 = vrot.lane.b32.xlu0 %v4228, 80
        %v4689 = vpop.permute.xlu0 %4688
        %4690 = vrot.lane.b32.xlu0 %v4185, 80
        %v4691 = vpop.permute.xlu0 %4690
        %4692 = vrot.lane.b32.xlu0 %v4229, 80
        %v4693 = vpop.permute.xlu0 %4692
        %4694 = vrot.lane.b32.xlu0 %v4188, 80
        %v4695 = vpop.permute.xlu0 %4694
        %4696 = vrot.lane.b32.xlu0 %v4230, 80
        %v4697 = vpop.permute.xlu0 %4696
        %4698 = vrot.lane.b32.xlu0 %v4191, 80
        %v4699 = vpop.permute.xlu0 %4698
        %4700 = vrot.lane.b32.xlu0 %v4231, 80
        %v4701 = vpop.permute.xlu0 %4700
        %4702 = vrot.lane.b32.xlu0 %v4194, 80
        %v4703 = vpop.permute.xlu0 %4702
        %4704 = vrot.lane.b32.xlu0 %v4232, 80
        %v4705 = vpop.permute.xlu0 %4704
        %4706 = vrot.lane.b32.xlu0 %v4197, 80
        %v4707 = vpop.permute.xlu0 %4706
        %4708 = vrot.lane.b32.xlu0 %v4233, 80
        %v4709 = vpop.permute.xlu0 %4708
        %4710 = vrot.lane.b32.xlu0 %v4200, 80
        %v4711 = vpop.permute.xlu0 %4710
        %4712 = vrot.lane.b32.xlu0 %v4234, 80
        %v4713 = vpop.permute.xlu0 %4712
        %4714 = vrot.lane.b32.xlu0 %v4203, 80
        %v4715 = vpop.permute.xlu0 %4714
        %4716 = vrot.lane.b32.xlu0 %v4235, 80
        %v4717 = vpop.permute.xlu0 %4716
        %4718 = vrot.lane.b32.xlu0 %v4206, 80
        %v4719 = vpop.permute.xlu0 %4718
        %4720 = vrot.lane.b32.xlu0 %v4236, 80
        %v4721 = vpop.permute.xlu0 %4720
        %4722 = vrot.lane.b32.xlu0 %v4246, 80
        %v4723 = vpop.permute.xlu0 %4722
        %4724 = vrot.lane.b32.xlu0 %v4248, 80
        %v4725 = vpop.permute.xlu0 %4724
        %4758 = vrot.lane.b32.xlu0 %v4148, 96
        %v4759 = vpop.permute.xlu0 %4758
        %4760 = vrot.lane.b32.xlu0 %v4077, 96
        %v4761 = vpop.permute.xlu0 %4760
        %4762 = vrot.lane.b32.xlu0 %v4149, 96
        %v4763 = vpop.permute.xlu0 %4762
        %4764 = vrot.lane.b32.xlu0 %v4080, 96
        %v4765 = vpop.permute.xlu0 %4764
        %4766 = vrot.lane.b32.xlu0 %v4150, 96
        %v4767 = vpop.permute.xlu0 %4766
        %4768 = vrot.lane.b32.xlu0 %v4083, 96
        %v4769 = vpop.permute.xlu0 %4768
        %4770 = vrot.lane.b32.xlu0 %v4151, 96
        %v4771 = vpop.permute.xlu0 %4770
        %4772 = vrot.lane.b32.xlu0 %v4086, 96
        %v4773 = vpop.permute.xlu0 %4772
        %4774 = vrot.lane.b32.xlu0 %v4152, 96
        %v4775 = vpop.permute.xlu0 %4774
        %4776 = vrot.lane.b32.xlu0 %v4089, 96
        %v4777 = vpop.permute.xlu0 %4776
        %4778 = vrot.lane.b32.xlu0 %v4153, 96
        %v4779 = vpop.permute.xlu0 %4778
        %4780 = vrot.lane.b32.xlu0 %v4092, 96
        %v4781 = vpop.permute.xlu0 %4780
        %4782 = vrot.lane.b32.xlu0 %v4154, 96
        %v4783 = vpop.permute.xlu0 %4782
        %4784 = vrot.lane.b32.xlu0 %v4095, 96
        %v4785 = vpop.permute.xlu0 %4784
        %4786 = vrot.lane.b32.xlu0 %v4155, 96
        %v4787 = vpop.permute.xlu0 %4786
        %4788 = vrot.lane.b32.xlu0 %v4098, 96
        %v4789 = vpop.permute.xlu0 %4788
        %4790 = vrot.lane.b32.xlu0 %v4156, 96
        %v4791 = vpop.permute.xlu0 %4790
        %4792 = vrot.lane.b32.xlu0 %v4101, 96
        %v4793 = vpop.permute.xlu0 %4792
        %4794 = vrot.lane.b32.xlu0 %v4157, 96
        %v4795 = vpop.permute.xlu0 %4794
        %4796 = vrot.lane.b32.xlu0 %v4104, 96
        %v4797 = vpop.permute.xlu0 %4796
        %4798 = vrot.lane.b32.xlu0 %v4158, 96
        %v4799 = vpop.permute.xlu0 %4798
        %4800 = vrot.lane.b32.xlu0 %v4107, 96
        %v4801 = vpop.permute.xlu0 %4800
        %4802 = vrot.lane.b32.xlu0 %v4159, 96
        %v4803 = vpop.permute.xlu0 %4802
        %4804 = vrot.lane.b32.xlu0 %v4110, 96
        %v4805 = vpop.permute.xlu0 %4804
        %4806 = vrot.lane.b32.xlu0 %v4160, 96
        %v4807 = vpop.permute.xlu0 %4806
        %4808 = vrot.lane.b32.xlu0 %v4113, 96
        %v4809 = vpop.permute.xlu0 %4808
        %4810 = vrot.lane.b32.xlu0 %v4161, 96
        %v4811 = vpop.permute.xlu0 %4810
        %4812 = vrot.lane.b32.xlu0 %v4116, 96
        %v4813 = vpop.permute.xlu0 %4812
        %4814 = vrot.lane.b32.xlu0 %v4243, 96
        %v4815 = vpop.permute.xlu0 %4814
        %4816 = vrot.lane.b32.xlu0 %v4241, 96
        %v4817 = vpop.permute.xlu0 %4816
        %4818 = vrot.lane.b32.xlu0 %v1644, 96
        %v4819 = vpop.permute.xlu0 %4818
        %4820 = vrot.lane.b32.xlu0 %v1566, 96
        %v4821 = vpop.permute.xlu0 %4820
        %4854 = vrot.lane.b32.xlu0 %v4012, 112
        %v4855 = vpop.permute.xlu0 %4854
        %4856 = vrot.lane.b32.xlu0 %v4013, 112
        %v4857 = vpop.permute.xlu0 %4856
        %4858 = vrot.lane.b32.xlu0 %v4014, 112
        %v4859 = vpop.permute.xlu0 %4858
        %4860 = vrot.lane.b32.xlu0 %v4015, 112
        %v4861 = vpop.permute.xlu0 %4860
        %4862 = vrot.lane.b32.xlu0 %v4016, 112
        %v4863 = vpop.permute.xlu0 %4862
        %4864 = vrot.lane.b32.xlu0 %v4017, 112
        %v4865 = vpop.permute.xlu0 %4864
        %4866 = vrot.lane.b32.xlu0 %v4018, 112
        %v4867 = vpop.permute.xlu0 %4866
        %4868 = vrot.lane.b32.xlu0 %v4019, 112
        %v4869 = vpop.permute.xlu0 %4868
        %4870 = vrot.lane.b32.xlu0 %v4020, 112
        %v4871 = vpop.permute.xlu0 %4870
        %4872 = vrot.lane.b32.xlu0 %v4021, 112
        %v4873 = vpop.permute.xlu0 %4872
        %4874 = vrot.lane.b32.xlu0 %v4022, 112
        %v4875 = vpop.permute.xlu0 %4874
        %4876 = vrot.lane.b32.xlu0 %v4023, 112
        %v4877 = vpop.permute.xlu0 %4876
        %4878 = vrot.lane.b32.xlu0 %v4024, 112
        %v4879 = vpop.permute.xlu0 %4878
        %4880 = vrot.lane.b32.xlu0 %v4025, 112
        %v4881 = vpop.permute.xlu0 %4880
        %4882 = vrot.lane.b32.xlu0 %v4026, 112
        %v4883 = vpop.permute.xlu0 %4882
        %4884 = vrot.lane.b32.xlu0 %v4027, 112
        %v4885 = vpop.permute.xlu0 %4884
        %4886 = vrot.lane.b32.xlu0 %v4028, 112
        %v4887 = vpop.permute.xlu0 %4886
        %4888 = vrot.lane.b32.xlu0 %v4029, 112
        %v4889 = vpop.permute.xlu0 %4888
        %4890 = vrot.lane.b32.xlu0 %v4030, 112
        %v4891 = vpop.permute.xlu0 %4890
        %4892 = vrot.lane.b32.xlu0 %v4031, 112
        %v4893 = vpop.permute.xlu0 %4892
        %4894 = vrot.lane.b32.xlu0 %v4032, 112
        %v4895 = vpop.permute.xlu0 %4894
        %4896 = vrot.lane.b32.xlu0 %v4033, 112
        %v4897 = vpop.permute.xlu0 %4896
        %4898 = vrot.lane.b32.xlu0 %v4034, 112
        %v4899 = vpop.permute.xlu0 %4898
        %4900 = vrot.lane.b32.xlu0 %v4035, 112
        %v4901 = vpop.permute.xlu0 %4900
        %4902 = vrot.lane.b32.xlu0 %v4036, 112
        %v4903 = vpop.permute.xlu0 %4902
        %4904 = vrot.lane.b32.xlu0 %v4037, 112
        %v4905 = vpop.permute.xlu0 %4904
        %4906 = vrot.lane.b32.xlu0 %v4038, 112
        %v4907 = vpop.permute.xlu0 %4906
        %4908 = vrot.lane.b32.xlu0 %v4039, 112
        %v4909 = vpop.permute.xlu0 %4908
        %4910 = vrot.lane.b32.xlu0 %v4040, 112
        %v4911 = vpop.permute.xlu0 %4910
        %4912 = vrot.lane.b32.xlu0 %v4041, 112
        %v4913 = vpop.permute.xlu0 %4912
        %4914 = vrot.lane.b32.xlu0 0.0, 112
        %v4915 = vpop.permute.xlu0 %4914
        %v4947 = vsel %vm2580, %v1644, %v4250
        %v4948 = vsel %vm2580, %v1566, %v4250
        %v4949 = vsel %vm2580, %v4147, %v4252
        %v4950 = vsel %vm2580, %v4074, %v4254
        %v4951 = vsel %vm2580, %v4148, %v4256
        %v4952 = vsel %vm2580, %v4077, %v4258
        %v4953 = vsel %vm2580, %v4149, %v4260
        %v4954 = vsel %vm2580, %v4080, %v4262
        %v4955 = vsel %vm2580, %v4150, %v4264
        %v4956 = vsel %vm2580, %v4083, %v4266
        %v4957 = vsel %vm2580, %v4151, %v4268
        %v4958 = vsel %vm2580, %v4086, %v4270
        %v4959 = vsel %vm2580, %v4152, %v4272
        %v4960 = vsel %vm2580, %v4089, %v4274
        %v4961 = vsel %vm2580, %v4153, %v4276
        %v4962 = vsel %vm2580, %v4092, %v4278
        %v4963 = vsel %vm2580, %v4154, %v4280
        %v4964 = vsel %vm2580, %v4095, %v4282
        %v4965 = vsel %vm2580, %v4155, %v4284
        %v4966 = vsel %vm2580, %v4098, %v4286
        %v4967 = vsel %vm2580, %v4156, %v4288
        %v4968 = vsel %vm2580, %v4101, %v4290
        %v4969 = vsel %vm2580, %v4157, %v4292
        %v4970 = vsel %vm2580, %v4104, %v4294
        %v4971 = vsel %vm2580, %v4158, %v4296
        %v4972 = vsel %vm2580, %v4107, %v4298
        %v4973 = vsel %vm2580, %v4159, %v4300
        %v4974 = vsel %vm2580, %v4110, %v4302
        %v4975 = vsel %vm2580, %v4160, %v4304
        %v4976 = vsel %vm2580, %v4113, %v4306
        %v4977 = vsel %vm2580, %v4161, %v4308
        %v4978 = vsel %vm2580, %v4116, %v4310
        %v4979 = vsel %vm2646, %v4947, %v4358
        %v4980 = vsel %vm2646, %v4948, %v4360
        %v4981 = vsel %vm2646, %v4949, %v4362
        %v4982 = vsel %vm2646, %v4950, %v4364
        %v4983 = vsel %vm2646, %v4951, %v4366
        %v4984 = vsel %vm2646, %v4952, %v4368
        %v4985 = vsel %vm2646, %v4953, %v4370
        %v4986 = vsel %vm2646, %v4954, %v4372
        %v4987 = vsel %vm2646, %v4955, %v4374
        %v4988 = vsel %vm2646, %v4956, %v4376
        %v4989 = vsel %vm2646, %v4957, %v4378
        %v4990 = vsel %vm2646, %v4958, %v4380
        %v4991 = vsel %vm2646, %v4959, %v4382
        %v4992 = vsel %vm2646, %v4960, %v4384
        %v4993 = vsel %vm2646, %v4961, %v4386
        %v4994 = vsel %vm2646, %v4962, %v4388
        %v4995 = vsel %vm2646, %v4963, %v4390
        %v4996 = vsel %vm2646, %v4964, %v4392
        %v4997 = vsel %vm2646, %v4965, %v4394
        %v4998 = vsel %vm2646, %v4966, %v4396
        %v4999 = vsel %vm2646, %v4967, %v4398
        %v5000 = vsel %vm2646, %v4968, %v4400
        %v5001 = vsel %vm2646, %v4969, %v4402
        %v5002 = vsel %vm2646, %v4970, %v4404
        %v5003 = vsel %vm2646, %v4971, %v4406
        %v5004 = vsel %vm2646, %v4972, %v4408
        %v5005 = vsel %vm2646, %v4973, %v4410
        %v5006 = vsel %vm2646, %v4974, %v4412
        %v5007 = vsel %vm2646, %v4975, %v4414
        %v5008 = vsel %vm2646, %v4976, %v4416
        %v5009 = vsel %vm2646, %v4977, %v4418
        %v5010 = vsel %vm2646, %v4978, %v4420
        %v5011 = vsel %vm2712, %v4979, %v4470
        %v5012 = vsel %vm2712, %v4980, %v4472
        %v5013 = vsel %vm2712, %v4981, %v4474
        %v5014 = vsel %vm2712, %v4982, %v4476
        %v5015 = vsel %vm2712, %v4983, %v4478
        %v5016 = vsel %vm2712, %v4984, %v4480
        %v5017 = vsel %vm2712, %v4985, %v4482
        %v5018 = vsel %vm2712, %v4986, %v4484
        %v5019 = vsel %vm2712, %v4987, %v4486
        %v5020 = vsel %vm2712, %v4988, %v4488
        %v5021 = vsel %vm2712, %v4989, %v4490
        %v5022 = vsel %vm2712, %v4990, %v4492
        %v5023 = vsel %vm2712, %v4991, %v4494
        %v5024 = vsel %vm2712, %v4992, %v4496
        %v5025 = vsel %vm2712, %v4993, %v4498
        %v5026 = vsel %vm2712, %v4994, %v4500
        %v5027 = vsel %vm2712, %v4995, %v4502
        %v5028 = vsel %vm2712, %v4996, %v4504
        %v5029 = vsel %vm2712, %v4997, %v4506
        %v5030 = vsel %vm2712, %v4998, %v4508
        %v5031 = vsel %vm2712, %v4999, %v4510
        %v5032 = vsel %vm2712, %v5000, %v4512
        %v5033 = vsel %vm2712, %v5001, %v4514
        %v5034 = vsel %vm2712, %v5002, %v4516
        %v5035 = vsel %vm2712, %v5003, %v4518
        %v5036 = vsel %vm2712, %v5004, %v4520
        %v5037 = vsel %vm2712, %v5005, %v4522
        %v5038 = vsel %vm2712, %v5006, %v4524
        %v5039 = vsel %vm2712, %v5007, %v4526
        %v5040 = vsel %vm2712, %v5008, %v4528
        %v5041 = vsel %vm2712, %v5009, %v4530
        %v5042 = vsel %vm2712, %v5010, %v4532
        %v5043 = vsel %vm2778, %v5011, %v4566
        %v5044 = vsel %vm2778, %v5012, %v4568
        %v5045 = vsel %vm2778, %v5013, %v4570
        %v5046 = vsel %vm2778, %v5014, %v4572
        %v5047 = vsel %vm2778, %v5015, %v4574
        %v5048 = vsel %vm2778, %v5016, %v4576
        %v5049 = vsel %vm2778, %v5017, %v4578
        %v5050 = vsel %vm2778, %v5018, %v4580
        %v5051 = vsel %vm2778, %v5019, %v4582
        %v5052 = vsel %vm2778, %v5020, %v4584
        %v5053 = vsel %vm2778, %v5021, %v4586
        %v5054 = vsel %vm2778, %v5022, %v4588
        %v5055 = vsel %vm2778, %v5023, %v4590
        %v5056 = vsel %vm2778, %v5024, %v4592
        %v5057 = vsel %vm2778, %v5025, %v4594
        %v5058 = vsel %vm2778, %v5026, %v4596
        %v5059 = vsel %vm2778, %v5027, %v4598
        %v5060 = vsel %vm2778, %v5028, %v4600
        %v5061 = vsel %vm2778, %v5029, %v4602
        %v5062 = vsel %vm2778, %v5030, %v4604
        %v5063 = vsel %vm2778, %v5031, %v4606
        %v5064 = vsel %vm2778, %v5032, %v4608
        %v5065 = vsel %vm2778, %v5033, %v4610
        %v5066 = vsel %vm2778, %v5034, %v4612
        %v5067 = vsel %vm2778, %v5035, %v4614
        %v5068 = vsel %vm2778, %v5036, %v4616
        %v5069 = vsel %vm2778, %v5037, %v4618
        %v5070 = vsel %vm2778, %v5038, %v4620
        %v5071 = vsel %vm2778, %v5039, %v4622
        %v5072 = vsel %vm2778, %v5040, %v4624
        %v5073 = vsel %vm2778, %v5041, %v4626
        %v5074 = vsel %vm2778, %v5042, %v4628
        %vm5075 = vcmask 654336
        %v5076 = vsel %vm5075, %v5043, %v4663
        %v5077 = vsel %vm5075, %v5044, %v4665
        %v5078 = vsel %vm5075, %v5045, %v4667
        %v5079 = vsel %vm5075, %v5046, %v4669
        %v5080 = vsel %vm5075, %v5047, %v4671
        %v5081 = vsel %vm5075, %v5048, %v4673
        %v5082 = vsel %vm5075, %v5049, %v4675
        %v5083 = vsel %vm5075, %v5050, %v4677
        %v5084 = vsel %vm5075, %v5051, %v4679
        %v5085 = vsel %vm5075, %v5052, %v4681
        %v5086 = vsel %vm5075, %v5053, %v4683
        %v5087 = vsel %vm5075, %v5054, %v4685
        %v5088 = vsel %vm5075, %v5055, %v4687
        %v5089 = vsel %vm5075, %v5056, %v4689
        %v5090 = vsel %vm5075, %v5057, %v4691
        %v5091 = vsel %vm5075, %v5058, %v4693
        %v5092 = vsel %vm5075, %v5059, %v4695
        %v5093 = vsel %vm5075, %v5060, %v4697
        %v5094 = vsel %vm5075, %v5061, %v4699
        %v5095 = vsel %vm5075, %v5062, %v4701
        %v5096 = vsel %vm5075, %v5063, %v4703
        %v5097 = vsel %vm5075, %v5064, %v4705
        %v5098 = vsel %vm5075, %v5065, %v4707
        %v5099 = vsel %vm5075, %v5066, %v4709
        %v5100 = vsel %vm5075, %v5067, %v4711
        %v5101 = vsel %vm5075, %v5068, %v4713
        %v5102 = vsel %vm5075, %v5069, %v4715
        %v5103 = vsel %vm5075, %v5070, %v4717
        %v5104 = vsel %vm5075, %v5071, %v4719
        %v5105 = vsel %vm5075, %v5072, %v4721
        %v5106 = vsel %vm5075, %v5073, %v4723
        %v5107 = vsel %vm5075, %v5074, %v4725
        %vm5108 = vcmask 785408
        %v5109 = vsel %vm5108, %v5076, %v4759
        %v5110 = vsel %vm5108, %v5077, %v4761
        %v5111 = vsel %vm5108, %v5078, %v4763
        %v5112 = vsel %vm5108, %v5079, %v4765
        %v5113 = vsel %vm5108, %v5080, %v4767
        %v5114 = vsel %vm5108, %v5081, %v4769
        %v5115 = vsel %vm5108, %v5082, %v4771
        %v5116 = vsel %vm5108, %v5083, %v4773
        %v5117 = vsel %vm5108, %v5084, %v4775
        %v5118 = vsel %vm5108, %v5085, %v4777
        %v5119 = vsel %vm5108, %v5086, %v4779
        %v5120 = vsel %vm5108, %v5087, %v4781
        %v5121 = vsel %vm5108, %v5088, %v4783
        %v5122 = vsel %vm5108, %v5089, %v4785
        %v5123 = vsel %vm5108, %v5090, %v4787
        %v5124 = vsel %vm5108, %v5091, %v4789
        %v5125 = vsel %vm5108, %v5092, %v4791
        %v5126 = vsel %vm5108, %v5093, %v4793
        %v5127 = vsel %vm5108, %v5094, %v4795
        %v5128 = vsel %vm5108, %v5095, %v4797
        %v5129 = vsel %vm5108, %v5096, %v4799
        %v5130 = vsel %vm5108, %v5097, %v4801
        %v5131 = vsel %vm5108, %v5098, %v4803
        %v5132 = vsel %vm5108, %v5099, %v4805
        %v5133 = vsel %vm5108, %v5100, %v4807
        %v5134 = vsel %vm5108, %v5101, %v4809
        %v5135 = vsel %vm5108, %v5102, %v4811
        %v5136 = vsel %vm5108, %v5103, %v4813
        %v5137 = vsel %vm5108, %v5104, %v4815
        %v5138 = vsel %vm5108, %v5105, %v4817
        %v5139 = vsel %vm5108, %v5106, %v4819
        %v5140 = vsel %vm5108, %v5107, %v4821
        %vm5141 = vcmask 916480
        %v5142 = vsel %vm5141, %v5109, %v4855
        %v5143 = vsel %vm5141, %v5110, %v4857
        %v5144 = vsel %vm5141, %v5111, %v4859
        %v5145 = vsel %vm5141, %v5112, %v4861
        %v5146 = vsel %vm5141, %v5113, %v4863
        %v5147 = vsel %vm5141, %v5114, %v4865
        %v5148 = vsel %vm5141, %v5115, %v4867
        %v5149 = vsel %vm5141, %v5116, %v4869
        %v5150 = vsel %vm5141, %v5117, %v4871
        %v5151 = vsel %vm5141, %v5118, %v4873
        %v5152 = vsel %vm5141, %v5119, %v4875
        %v5153 = vsel %vm5141, %v5120, %v4877
        %v5154 = vsel %vm5141, %v5121, %v4879
        %v5155 = vsel %vm5141, %v5122, %v4881
        %v5156 = vsel %vm5141, %v5123, %v4883
        %v5157 = vsel %vm5141, %v5124, %v4885
        %v5158 = vsel %vm5141, %v5125, %v4887
        %v5159 = vsel %vm5141, %v5126, %v4889
        %v5160 = vsel %vm5141, %v5127, %v4891
        %v5161 = vsel %vm5141, %v5128, %v4893
        %v5162 = vsel %vm5141, %v5129, %v4895
        %v5163 = vsel %vm5141, %v5130, %v4897
        %v5164 = vsel %vm5141, %v5131, %v4899
        %v5165 = vsel %vm5141, %v5132, %v4901
        %v5166 = vsel %vm5141, %v5133, %v4903
        %v5167 = vsel %vm5141, %v5134, %v4905
        %v5168 = vsel %vm5141, %v5135, %v4907
        %v5169 = vsel %vm5141, %v5136, %v4909
        %v5170 = vsel %vm5141, %v5137, %v4911
        %v5171 = vsel %vm5141, %v5138, %v4913
        %v5172 = vsel %vm5141, %v5139, %v4915
        %v5173 = vsel %vm5141, %v5140, %v4915
        %v5174 = vld [vmem:[%s9] sm:$0xff]
        %v5175 = vld [vmem:[%s9 + $0x8] sm:$0xff]
        %v5176 = vld [vmem:[%s9 + $0x10] sm:$0xff]
        %v5177 = vld [vmem:[%s9 + $0x18] sm:$0xff]
        %v5178 = vld [vmem:[%s9 + $0x20] sm:$0xff]
        %v5179 = vld [vmem:[%s9 + $0x28] sm:$0xff]
        %v5180 = vld [vmem:[%s9 + $0x30] sm:$0xff]
        %v5181 = vld [vmem:[%s9 + $0x38] sm:$0xff]
        %v5182 = vld [vmem:[%s9 + $0x40] sm:$0xff]
        %v5183 = vld [vmem:[%s9 + $0x48] sm:$0xff]
        %v5184 = vld [vmem:[%s9 + $0x50] sm:$0xff]
        %v5185 = vld [vmem:[%s9 + $0x58] sm:$0xff]
        %v5186 = vld [vmem:[%s9 + $0x60] sm:$0xff]
        %v5187 = vld [vmem:[%s9 + $0x68] sm:$0xff]
        %v5188 = vld [vmem:[%s9 + $0x70] sm:$0xff]
        %v5189 = vld [vmem:[%s9 + $0x78] sm:$0xff]
        %v5190 = vld [vmem:[%s9 + $0x80] sm:$0xff]
        %v5191 = vld [vmem:[%s9 + $0x88] sm:$0xff]
        %v5192 = vld [vmem:[%s10] sm:$0x1]
        %v5194 = vperm.slane %v5192, 0
        %v5196 = vsel %vm2580, %v4167, 0
        %v5198 = vsel %vm2580, %v4223, 0
        %v5200 = vsel %vm2580, %v4170, 0
        %v5202 = vsel %vm2580, %v4224, 0
        %v5204 = vsel %vm2580, %v4173, 0
        %v5206 = vsel %vm2580, %v4225, 0
        %v5208 = vsel %vm2580, %v4176, 0
        %v5210 = vsel %vm2580, %v4226, 0
        %v5212 = vsel %vm2580, %v4179, 0
        %v5214 = vsel %vm2580, %v4227, 0
        %v5216 = vsel %vm2580, %v4182, 0
        %v5218 = vsel %vm2580, %v4228, 0
        %v5220 = vsel %vm2580, %v4185, 0
        %v5222 = vsel %vm2580, %v4229, 0
        %v5224 = vsel %vm2580, %v4188, 0
        %v5226 = vsel %vm2580, %v4230, 0
        %v5228 = vsel %vm2580, %v4191, 0
        %v5230 = vsel %vm2580, %v4231, 0
        %v5232 = vsel %vm2580, %v4194, 0
        %v5234 = vsel %vm2580, %v4232, 0
        %v5236 = vsel %vm2580, %v4197, 0
        %v5238 = vsel %vm2580, %v4233, 0
        %v5240 = vsel %vm2580, %v4200, 0
        %v5242 = vsel %vm2580, %v4234, 0
        %v5244 = vsel %vm2580, %v4203, 0
        %v5246 = vsel %vm2580, %v4235, 0
        %v5248 = vsel %vm2580, %v4206, 0
        %v5250 = vsel %vm2580, %v4236, 0
        %v5252 = vsel %vm2580, %v4246, 0
        %v5254 = vsel %vm2580, %v4248, 0
        %v5256 = vsel %vm2580, %v1662, 0
        %v5258 = vsel %vm2580, %v1724, 0
        %5260 = vmatpush.msra.mxu0 %v5189
        %5261 = vmatpush.msra.mxu0 %v5188
        %5262 = vmatpush.msra.mxu0 %v5187
        %5263 = vmatpush.msra.mxu0 %v5186
        %5264 = vmatpush.msra.mxu0 %v5185
        %5265 = vmatpush.msra.mxu0 %v5184
        %5266 = vmatpush.msra.mxu0 %v5183
        %5267 = vmatpush.msra.mxu0 %v5182
        %5268 = vmatpush.msra.mxu0 %v5181
        %5269 = vmatpush.msra.mxu0 %v5180
        %5270 = vmatpush.msra.mxu0 %v5179
        %5271 = vmatpush.msra.mxu0 %v5178
        %5272 = vmatpush.msra.mxu0 %v5177
        %5273 = vmatpush.msra.mxu0 %v5176
        %5274 = vmatpush.msra.mxu0 %v5175
        %5275 = vmatpush.msra.mxu0 %v5174
        %5276 = vmatmul.f32.gmra.mxu0 %v5142
        %v5277 = vpop.f32.mrf.mxu0
        %v5278 = vadd.f32 %v5194, %v5277
        %5279 = vmatmul.f32.gmra.mxu0 %v5143
        %v5280 = vpop.f32.mrf.mxu0
        %v5281 = vadd.f32 %v5194, %v5280
        %5282 = vmatmul.f32.gmra.mxu0 %v5144
        %v5283 = vpop.f32.mrf.mxu0
        %v5284 = vadd.f32 %v5194, %v5283
        %5285 = vmatmul.f32.gmra.mxu0 %v5145
        %v5286 = vpop.f32.mrf.mxu0
        %v5287 = vadd.f32 %v5194, %v5286
        %5288 = vmatmul.f32.gmra.mxu0 %v5146
        %v5289 = vpop.f32.mrf.mxu0
        %v5290 = vadd.f32 %v5194, %v5289
        %5291 = vmatmul.f32.gmra.mxu0 %v5147
        %v5292 = vpop.f32.mrf.mxu0
        %v5293 = vadd.f32 %v5194, %v5292
        %5294 = vmatmul.f32.gmra.mxu0 %v5148
        %v5295 = vpop.f32.mrf.mxu0
        %v5296 = vadd.f32 %v5194, %v5295
        %5297 = vmatmul.f32.gmra.mxu0 %v5149
        %v5298 = vpop.f32.mrf.mxu0
        %v5299 = vadd.f32 %v5194, %v5298
        %5300 = vmatmul.f32.gmra.mxu0 %v5150
        %v5301 = vpop.f32.mrf.mxu0
        %v5302 = vadd.f32 %v5194, %v5301
        %5303 = vmatmul.f32.gmra.mxu0 %v5151
        %v5304 = vpop.f32.mrf.mxu0
        %v5305 = vadd.f32 %v5194, %v5304
        %5306 = vmatmul.f32.gmra.mxu0 %v5152
        %v5307 = vpop.f32.mrf.mxu0
        %v5308 = vadd.f32 %v5194, %v5307
        %5309 = vmatmul.f32.gmra.mxu0 %v5153
        %v5310 = vpop.f32.mrf.mxu0
        %v5311 = vadd.f32 %v5194, %v5310
        %5312 = vmatmul.f32.gmra.mxu0 %v5154
        %v5313 = vpop.f32.mrf.mxu0
        %v5314 = vadd.f32 %v5194, %v5313
        %5315 = vmatmul.f32.gmra.mxu0 %v5155
        %v5316 = vpop.f32.mrf.mxu0
        %v5317 = vadd.f32 %v5194, %v5316
        %5318 = vmatmul.f32.gmra.mxu0 %v5156
        %v5319 = vpop.f32.mrf.mxu0
        %v5320 = vadd.f32 %v5194, %v5319
        %5321 = vmatmul.f32.gmra.mxu0 %v5157
        %v5322 = vpop.f32.mrf.mxu0
        %v5323 = vadd.f32 %v5194, %v5322
        %5324 = vmatmul.f32.gmra.mxu0 %v5158
        %v5325 = vpop.f32.mrf.mxu0
        %v5326 = vadd.f32 %v5194, %v5325
        %5327 = vmatmul.f32.gmra.mxu0 %v5159
        %v5328 = vpop.f32.mrf.mxu0
        %v5329 = vadd.f32 %v5194, %v5328
        %5330 = vmatmul.f32.gmra.mxu0 %v5160
        %v5331 = vpop.f32.mrf.mxu0
        %v5332 = vadd.f32 %v5194, %v5331
        %5333 = vmatmul.f32.gmra.mxu0 %v5161
        %v5334 = vpop.f32.mrf.mxu0
        %v5335 = vadd.f32 %v5194, %v5334
        %5336 = vmatmul.f32.gmra.mxu0 %v5162
        %v5337 = vpop.f32.mrf.mxu0
        %v5338 = vadd.f32 %v5194, %v5337
        %5339 = vmatmul.f32.gmra.mxu0 %v5163
        %v5340 = vpop.f32.mrf.mxu0
        %v5341 = vadd.f32 %v5194, %v5340
        %5342 = vmatmul.f32.gmra.mxu0 %v5164
        %v5343 = vpop.f32.mrf.mxu0
        %v5344 = vadd.f32 %v5194, %v5343
        %5345 = vmatmul.f32.gmra.mxu0 %v5165
        %v5346 = vpop.f32.mrf.mxu0
        %v5347 = vadd.f32 %v5194, %v5346
        %5348 = vmatmul.f32.gmra.mxu0 %v5166
        %v5349 = vpop.f32.mrf.mxu0
        %v5350 = vadd.f32 %v5194, %v5349
        %5351 = vmatmul.f32.gmra.mxu0 %v5167
        %v5352 = vpop.f32.mrf.mxu0
        %v5353 = vadd.f32 %v5194, %v5352
        %5354 = vmatmul.f32.gmra.mxu0 %v5168
        %v5355 = vpop.f32.mrf.mxu0
        %v5356 = vadd.f32 %v5194, %v5355
        %5357 = vmatmul.f32.gmra.mxu0 %v5169
        %v5358 = vpop.f32.mrf.mxu0
        %v5359 = vadd.f32 %v5194, %v5358
        %5360 = vmatmul.f32.gmra.mxu0 %v5170
        %v5361 = vpop.f32.mrf.mxu0
        %v5362 = vadd.f32 %v5194, %v5361
        %5363 = vmatmul.f32.gmra.mxu0 %v5171
        %v5364 = vpop.f32.mrf.mxu0
        %v5365 = vadd.f32 %v5194, %v5364
        %5366 = vmatmul.f32.gmra.mxu0 %v5172
        %v5367 = vpop.f32.mrf.mxu0
        %v5368 = vadd.f32 %v5194, %v5367
        %5369 = vmatmul.f32.gmra.mxu0 %v5173
        %v5370 = vpop.f32.mrf.mxu0
        %v5371 = vadd.f32 %v5194, %v5370
        %5372 = vdwg.mxu0
        %5373 = vmatpush.msra.mxu0 0.0
        %5374 = vmatpush.msra.mxu0 0.0
        %5375 = vmatpush.msra.mxu0 0.0
        %5376 = vmatpush.msra.mxu0 0.0
        %5377 = vmatpush.msra.mxu0 0.0
        %5378 = vmatpush.msra.mxu0 0.0
        %5379 = vmatpush.msra.mxu0 0.0
        %5380 = vmatpush.msra.mxu0 0.0
        %5381 = vmatpush.msra.mxu0 0.0
        %5382 = vmatpush.msra.mxu0 0.0
        %5383 = vmatpush.msra.mxu0 0.0
        %5384 = vmatpush.msra.mxu0 0.0
        %5385 = vmatpush.msra.mxu0 0.0
        %5386 = vmatpush.msra.mxu0 0.0
        %5387 = vmatpush.msra.mxu0 %v5191
        %5388 = vmatpush.msra.mxu0 %v5190
        %5389 = vmatmul.f32.gmra.mxu0 %v5196
        %v5390 = vpop.f32.mrf.mxu0
        %v5391 = vadd.f32 %v5278, %v5390
        %5392 = vmatmul.f32.gmra.mxu0 %v5198
        %v5393 = vpop.f32.mrf.mxu0
        %v5394 = vadd.f32 %v5281, %v5393
        %5395 = vmatmul.f32.gmra.mxu0 %v5200
        %v5396 = vpop.f32.mrf.mxu0
        %v5397 = vadd.f32 %v5284, %v5396
        %5398 = vmatmul.f32.gmra.mxu0 %v5202
        %v5399 = vpop.f32.mrf.mxu0
        %v5400 = vadd.f32 %v5287, %v5399
        %5401 = vmatmul.f32.gmra.mxu0 %v5204
        %v5402 = vpop.f32.mrf.mxu0
        %v5403 = vadd.f32 %v5290, %v5402
        %5404 = vmatmul.f32.gmra.mxu0 %v5206
        %v5405 = vpop.f32.mrf.mxu0
        %v5406 = vadd.f32 %v5293, %v5405
        %5407 = vmatmul.f32.gmra.mxu0 %v5208
        %v5408 = vpop.f32.mrf.mxu0
        %v5409 = vadd.f32 %v5296, %v5408
        %5410 = vmatmul.f32.gmra.mxu0 %v5210
        %v5411 = vpop.f32.mrf.mxu0
        %v5412 = vadd.f32 %v5299, %v5411
        %5413 = vmatmul.f32.gmra.mxu0 %v5212
        %v5414 = vpop.f32.mrf.mxu0
        %v5415 = vadd.f32 %v5302, %v5414
        %5416 = vmatmul.f32.gmra.mxu0 %v5214
        %v5417 = vpop.f32.mrf.mxu0
        %v5418 = vadd.f32 %v5305, %v5417
        %5419 = vmatmul.f32.gmra.mxu0 %v5216
        %v5420 = vpop.f32.mrf.mxu0
        %v5421 = vadd.f32 %v5308, %v5420
        %5422 = vmatmul.f32.gmra.mxu0 %v5218
        %v5423 = vpop.f32.mrf.mxu0
        %v5424 = vadd.f32 %v5311, %v5423
        %5425 = vmatmul.f32.gmra.mxu0 %v5220
        %v5426 = vpop.f32.mrf.mxu0
        %v5427 = vadd.f32 %v5314, %v5426
        %5428 = vmatmul.f32.gmra.mxu0 %v5222
        %v5429 = vpop.f32.mrf.mxu0
        %v5430 = vadd.f32 %v5317, %v5429
        %5431 = vmatmul.f32.gmra.mxu0 %v5224
        %v5432 = vpop.f32.mrf.mxu0
        %v5433 = vadd.f32 %v5320, %v5432
        %5434 = vmatmul.f32.gmra.mxu0 %v5226
        %v5435 = vpop.f32.mrf.mxu0
        %v5436 = vadd.f32 %v5323, %v5435
        %5437 = vmatmul.f32.gmra.mxu0 %v5228
        %v5438 = vpop.f32.mrf.mxu0
        %v5439 = vadd.f32 %v5326, %v5438
        %5440 = vmatmul.f32.gmra.mxu0 %v5230
        %v5441 = vpop.f32.mrf.mxu0
        %v5442 = vadd.f32 %v5329, %v5441
        %5443 = vmatmul.f32.gmra.mxu0 %v5232
        %v5444 = vpop.f32.mrf.mxu0
        %v5445 = vadd.f32 %v5332, %v5444
        %5446 = vmatmul.f32.gmra.mxu0 %v5234
        %v5447 = vpop.f32.mrf.mxu0
        %v5448 = vadd.f32 %v5335, %v5447
        %5449 = vmatmul.f32.gmra.mxu0 %v5236
        %v5450 = vpop.f32.mrf.mxu0
        %v5451 = vadd.f32 %v5338, %v5450
        %5452 = vmatmul.f32.gmra.mxu0 %v5238
        %v5453 = vpop.f32.mrf.mxu0
        %v5454 = vadd.f32 %v5341, %v5453
        %5455 = vmatmul.f32.gmra.mxu0 %v5240
        %v5456 = vpop.f32.mrf.mxu0
        %v5457 = vadd.f32 %v5344, %v5456
        %5458 = vmatmul.f32.gmra.mxu0 %v5242
        %v5459 = vpop.f32.mrf.mxu0
        %v5460 = vadd.f32 %v5347, %v5459
        %5461 = vmatmul.f32.gmra.mxu0 %v5244
        %v5462 = vpop.f32.mrf.mxu0
        %v5463 = vadd.f32 %v5350, %v5462
        %5464 = vmatmul.f32.gmra.mxu0 %v5246
        %v5465 = vpop.f32.mrf.mxu0
        %v5466 = vadd.f32 %v5353, %v5465
        %5467 = vmatmul.f32.gmra.mxu0 %v5248
        %v5468 = vpop.f32.mrf.mxu0
        %v5469 = vadd.f32 %v5356, %v5468
        %5470 = vmatmul.f32.gmra.mxu0 %v5250
        %v5471 = vpop.f32.mrf.mxu0
        %v5472 = vadd.f32 %v5359, %v5471
        %5473 = vmatmul.f32.gmra.mxu0 %v5252
        %v5474 = vpop.f32.mrf.mxu0
        %v5475 = vadd.f32 %v5362, %v5474
        %5476 = vmatmul.f32.gmra.mxu0 %v5254
        %v5477 = vpop.f32.mrf.mxu0
        %v5478 = vadd.f32 %v5365, %v5477
        %5479 = vmatmul.f32.gmra.mxu0 %v5256
        %v5480 = vpop.f32.mrf.mxu0
        %v5481 = vadd.f32 %v5368, %v5480
        %5482 = vmatmul.f32.gmra.mxu0 %v5258
        %v5483 = vpop.f32.mrf.mxu0
        %v5484 = vadd.f32 %v5371, %v5483
        %5485 = vdwg.mxu0
        %v5486 = vld [vmem:[%s11] sm:$0xff]
        %v5487 = vld [vmem:[%s12] sm:$0x1]
        %v5489 = vperm.slane %v5487, 0
        %v5492 = vsel %vm528, %v493, 0
        %v5495 = vsel %vm528, %v494, 0
        %v5498 = vsel %vm528, %v495, 0
        %v5501 = vsel %vm528, %v496, 0
        %v5504 = vsel %vm528, %v497, 0
        %v5507 = vsel %vm528, %v498, 0
        %v5510 = vsel %vm528, %v499, 0
        %v5513 = vsel %vm528, %v500, 0
        %v5516 = vsel %vm528, %v501, 0
        %v5519 = vsel %vm528, %v502, 0
        %v5522 = vsel %vm528, %v503, 0
        %v5525 = vsel %vm528, %v504, 0
        %v5528 = vsel %vm528, %v505, 0
        %v5531 = vsel %vm528, %v506, 0
        %v5534 = vsel %vm528, %v507, 0
        %v5537 = vsel %vm528, %v508, 0
        %v5540 = vsel %vm528, %v509, 0
        %v5543 = vsel %vm528, %v510, 0
        %v5546 = vsel %vm528, %v511, 0
        %v5549 = vsel %vm528, %v512, 0
        %v5552 = vsel %vm528, %v513, 0
        %v5555 = vsel %vm528, %v514, 0
        %v5558 = vsel %vm528, %v515, 0
        %v5561 = vsel %vm528, %v516, 0
        %v5564 = vsel %vm528, %v517, 0
        %v5567 = vsel %vm528, %v518, 0
        %v5570 = vsel %vm528, %v519, 0
        %v5573 = vsel %vm528, %v520, 0
        %v5576 = vsel %vm528, %v521, 0
        %v5579 = vsel %vm528, %v522, 0
        %v5582 = vsel %vm528, %v523, 0
        %v5585 = vsel %vm528, %v524, 0
        %5587 = vmatpush.msra.mxu0 0.0
        %5588 = vmatpush.msra.mxu0 0.0
        %5589 = vmatpush.msra.mxu0 0.0
        %5590 = vmatpush.msra.mxu0 0.0
        %5591 = vmatpush.msra.mxu0 0.0
        %5592 = vmatpush.msra.mxu0 0.0
        %5593 = vmatpush.msra.mxu0 0.0
        %5594 = vmatpush.msra.mxu0 0.0
        %5595 = vmatpush.msra.mxu0 0.0
        %5596 = vmatpush.msra.mxu0 0.0
        %5597 = vmatpush.msra.mxu0 0.0
        %5598 = vmatpush.msra.mxu0 0.0
        %5599 = vmatpush.msra.mxu0 0.0
        %5600 = vmatpush.msra.mxu0 0.0
        %5601 = vmatpush.msra.mxu0 0.0
        %5602 = vmatpush.msra.mxu0 %v5486
        %5603 = vmatmul.f32.gmra.mxu0 %v5492
        %v5604 = vpop.f32.mrf.mxu0
        %v5605 = vadd.f32 %v5489, %v5604
        %5606 = vmatmul.f32.gmra.mxu0 %v5495
        %v5607 = vpop.f32.mrf.mxu0
        %v5608 = vadd.f32 %v5489, %v5607
        %5609 = vmatmul.f32.gmra.mxu0 %v5498
        %v5610 = vpop.f32.mrf.mxu0
        %v5611 = vadd.f32 %v5489, %v5610
        %5612 = vmatmul.f32.gmra.mxu0 %v5501
        %v5613 = vpop.f32.mrf.mxu0
        %v5614 = vadd.f32 %v5489, %v5613
        %5615 = vmatmul.f32.gmra.mxu0 %v5504
        %v5616 = vpop.f32.mrf.mxu0
        %v5617 = vadd.f32 %v5489, %v5616
        %5618 = vmatmul.f32.gmra.mxu0 %v5507
        %v5619 = vpop.f32.mrf.mxu0
        %v5620 = vadd.f32 %v5489, %v5619
        %5621 = vmatmul.f32.gmra.mxu0 %v5510
        %v5622 = vpop.f32.mrf.mxu0
        %v5623 = vadd.f32 %v5489, %v5622
        %5624 = vmatmul.f32.gmra.mxu0 %v5513
        %v5625 = vpop.f32.mrf.mxu0
        %v5626 = vadd.f32 %v5489, %v5625
        %5627 = vmatmul.f32.gmra.mxu0 %v5516
        %v5628 = vpop.f32.mrf.mxu0
        %v5629 = vadd.f32 %v5489, %v5628
        %5630 = vmatmul.f32.gmra.mxu0 %v5519
        %v5631 = vpop.f32.mrf.mxu0
        %v5632 = vadd.f32 %v5489, %v5631
        %5633 = vmatmul.f32.gmra.mxu0 %v5522
        %v5634 = vpop.f32.mrf.mxu0
        %v5635 = vadd.f32 %v5489, %v5634
        %5636 = vmatmul.f32.gmra.mxu0 %v5525
        %v5637 = vpop.f32.mrf.mxu0
        %v5638 = vadd.f32 %v5489, %v5637
        %5639 = vmatmul.f32.gmra.mxu0 %v5528
        %v5640 = vpop.f32.mrf.mxu0
        %v5641 = vadd.f32 %v5489, %v5640
        %5642 = vmatmul.f32.gmra.mxu0 %v5531
        %v5643 = vpop.f32.mrf.mxu0
        %v5644 = vadd.f32 %v5489, %v5643
        %5645 = vmatmul.f32.gmra.mxu0 %v5534
        %v5646 = vpop.f32.mrf.mxu0
        %v5647 = vadd.f32 %v5489, %v5646
        %5648 = vmatmul.f32.gmra.mxu0 %v5537
        %v5649 = vpop.f32.mrf.mxu0
        %v5650 = vadd.f32 %v5489, %v5649
        %5651 = vmatmul.f32.gmra.mxu0 %v5540
        %v5652 = vpop.f32.mrf.mxu0
        %v5653 = vadd.f32 %v5489, %v5652
        %5654 = vmatmul.f32.gmra.mxu0 %v5543
        %v5655 = vpop.f32.mrf.mxu0
        %v5656 = vadd.f32 %v5489, %v5655
        %5657 = vmatmul.f32.gmra.mxu0 %v5546
        %v5658 = vpop.f32.mrf.mxu0
        %v5659 = vadd.f32 %v5489, %v5658
        %5660 = vmatmul.f32.gmra.mxu0 %v5549
        %v5661 = vpop.f32.mrf.mxu0
        %v5662 = vadd.f32 %v5489, %v5661
        %5663 = vmatmul.f32.gmra.mxu0 %v5552
        %v5664 = vpop.f32.mrf.mxu0
        %v5665 = vadd.f32 %v5489, %v5664
        %5666 = vmatmul.f32.gmra.mxu0 %v5555
        %v5667 = vpop.f32.mrf.mxu0
        %v5668 = vadd.f32 %v5489, %v5667
        %5669 = vmatmul.f32.gmra.mxu0 %v5558
        %v5670 = vpop.f32.mrf.mxu0
        %v5671 = vadd.f32 %v5489, %v5670
        %5672 = vmatmul.f32.gmra.mxu0 %v5561
        %v5673 = vpop.f32.mrf.mxu0
        %v5674 = vadd.f32 %v5489, %v5673
        %5675 = vmatmul.f32.gmra.mxu0 %v5564
        %v5676 = vpop.f32.mrf.mxu0
        %v5677 = vadd.f32 %v5489, %v5676
        %5678 = vmatmul.f32.gmra.mxu0 %v5567
        %v5679 = vpop.f32.mrf.mxu0
        %v5680 = vadd.f32 %v5489, %v5679
        %5681 = vmatmul.f32.gmra.mxu0 %v5570
        %v5682 = vpop.f32.mrf.mxu0
        %v5683 = vadd.f32 %v5489, %v5682
        %5684 = vmatmul.f32.gmra.mxu0 %v5573
        %v5685 = vpop.f32.mrf.mxu0
        %v5686 = vadd.f32 %v5489, %v5685
        %5687 = vmatmul.f32.gmra.mxu0 %v5576
        %v5688 = vpop.f32.mrf.mxu0
        %v5689 = vadd.f32 %v5489, %v5688
        %5690 = vmatmul.f32.gmra.mxu0 %v5579
        %v5691 = vpop.f32.mrf.mxu0
        %v5692 = vadd.f32 %v5489, %v5691
        %5693 = vmatmul.f32.gmra.mxu0 %v5582
        %v5694 = vpop.f32.mrf.mxu0
        %v5695 = vadd.f32 %v5489, %v5694
        %5696 = vmatmul.f32.gmra.mxu0 %v5585
        %v5697 = vpop.f32.mrf.mxu0
        %v5698 = vadd.f32 %v5489, %v5697
        %5699 = vdwg.mxu0
        %v5700 = vadd.f32 %v5605, %v5391
        %v5701 = vadd.f32 %v5608, %v5394
        %v5702 = vadd.f32 %v5611, %v5397
        %v5703 = vadd.f32 %v5614, %v5400
        %v5704 = vadd.f32 %v5617, %v5403
        %v5705 = vadd.f32 %v5620, %v5406
        %v5706 = vadd.f32 %v5623, %v5409
        %v5707 = vadd.f32 %v5626, %v5412
        %v5708 = vadd.f32 %v5629, %v5415
        %v5709 = vadd.f32 %v5632, %v5418
        %v5710 = vadd.f32 %v5635, %v5421
        %v5711 = vadd.f32 %v5638, %v5424
        %v5712 = vadd.f32 %v5641, %v5427
        %v5713 = vadd.f32 %v5644, %v5430
        %v5714 = vadd.f32 %v5647, %v5433
        %v5715 = vadd.f32 %v5650, %v5436
        %v5716 = vadd.f32 %v5653, %v5439
        %v5717 = vadd.f32 %v5656, %v5442
        %v5718 = vadd.f32 %v5659, %v5445
        %v5719 = vadd.f32 %v5662, %v5448
        %v5720 = vadd.f32 %v5665, %v5451
        %v5721 = vadd.f32 %v5668, %v5454
        %v5722 = vadd.f32 %v5671, %v5457
        %v5723 = vadd.f32 %v5674, %v5460
        %v5724 = vadd.f32 %v5677, %v5463
        %v5725 = vadd.f32 %v5680, %v5466
        %v5726 = vadd.f32 %v5683, %v5469
        %v5727 = vadd.f32 %v5686, %v5472
        %v5728 = vadd.f32 %v5689, %v5475
        %v5729 = vadd.f32 %v5692, %v5478
        %v5730 = vadd.f32 %v5695, %v5481
        %v5731 = vadd.f32 %v5698, %v5484
        %v5746 = vrot.slane 0.0, 2
        %v5747 = vrot.slane 0.0, 4
        %v5748 = vrot.slane 0.0, 6
        %v5749 = vrot.slane %v5702, 2
        %v5750 = vrot.slane %v5702, 4
        %v5751 = vrot.slane %v5702, 6
        %v5752 = vrot.slane %v5703, 2
        %v5753 = vrot.slane %v5703, 4
        %v5754 = vrot.slane %v5703, 6
        %v5755 = vrot.slane %v5706, 2
        %v5756 = vrot.slane %v5706, 4
        %v5757 = vrot.slane %v5706, 6
        %v5758 = vrot.slane %v5707, 2
        %v5759 = vrot.slane %v5707, 4
        %v5760 = vrot.slane %v5707, 6
        %v5761 = vrot.slane %v5710, 2
        %v5762 = vrot.slane %v5710, 4
        %v5763 = vrot.slane %v5710, 6
        %v5764 = vrot.slane %v5711, 2
        %v5765 = vrot.slane %v5711, 4
        %v5766 = vrot.slane %v5711, 6
        %v5767 = vrot.slane %v5714, 2
        %v5768 = vrot.slane %v5714, 4
        %v5769 = vrot.slane %v5714, 6
        %v5770 = vrot.slane %v5715, 2
        %v5771 = vrot.slane %v5715, 4
        %v5772 = vrot.slane %v5715, 6
        %v5773 = vrot.slane %v5718, 2
        %v5774 = vrot.slane %v5718, 4
        %v5775 = vrot.slane %v5718, 6
        %v5776 = vrot.slane %v5719, 2
        %v5777 = vrot.slane %v5719, 4
        %v5778 = vrot.slane %v5719, 6
        %v5779 = vrot.slane %v5722, 2
        %v5780 = vrot.slane %v5722, 4
        %v5781 = vrot.slane %v5722, 6
        %v5782 = vrot.slane %v5723, 2
        %v5783 = vrot.slane %v5723, 4
        %v5784 = vrot.slane %v5723, 6
        %v5785 = vrot.slane %v5726, 2
        %v5786 = vrot.slane %v5726, 4
        %v5787 = vrot.slane %v5726, 6
        %v5788 = vrot.slane %v5727, 2
        %v5789 = vrot.slane %v5727, 4
        %v5790 = vrot.slane %v5727, 6
        %v5791 = vperm.slane 0.0, 1
        %v5792 = vperm.slane %v5746, 1
        %v5793 = vperm.slane %v5747, 1
        %v5794 = vperm.slane %v5748, 1
        %v5795 = vperm.slane %v5702, 1
        %v5796 = vperm.slane %v5749, 1
        %v5797 = vperm.slane %v5750, 1
        %v5798 = vperm.slane %v5751, 1
        %v5799 = vperm.slane %v5703, 1
        %v5800 = vperm.slane %v5752, 1
        %v5801 = vperm.slane %v5753, 1
        %v5802 = vperm.slane %v5706, 1
        %v5803 = vperm.slane %v5755, 1
        %v5804 = vperm.slane %v5756, 1
        %v5805 = vperm.slane %v5757, 1
        %v5806 = vperm.slane %v5707, 1
        %v5807 = vperm.slane %v5758, 1
        %v5808 = vperm.slane %v5759, 1
        %v5809 = vperm.slane %v5710, 1
        %v5810 = vperm.slane %v5761, 1
        %v5811 = vperm.slane %v5762, 1
        %v5812 = vperm.slane %v5763, 1
        %v5813 = vperm.slane %v5711, 1
        %v5814 = vperm.slane %v5764, 1
        %v5815 = vperm.slane %v5765, 1
        %v5816 = vperm.slane %v5714, 1
        %v5817 = vperm.slane %v5767, 1
        %v5818 = vperm.slane %v5768, 1
        %v5819 = vperm.slane %v5769, 1
        %v5820 = vperm.slane %v5715, 1
        %v5821 = vperm.slane %v5770, 1
        %v5822 = vperm.slane %v5771, 1
        %v5823 = vperm.slane %v5718, 1
        %v5824 = vperm.slane %v5773, 1
        %v5825 = vperm.slane %v5774, 1
        %v5826 = vperm.slane %v5775, 1
        %v5827 = vperm.slane %v5719, 1
        %v5828 = vperm.slane %v5776, 1
        %v5829 = vperm.slane %v5777, 1
        %v5830 = vperm.slane %v5722, 1
        %v5831 = vperm.slane %v5779, 1
        %v5832 = vperm.slane %v5780, 1
        %v5833 = vperm.slane %v5781, 1
        %v5834 = vperm.slane %v5723, 1
        %v5835 = vperm.slane %v5782, 1
        %v5836 = vperm.slane %v5783, 1
        %v5837 = vperm.slane %v5726, 1
        %v5838 = vperm.slane %v5785, 1
        %v5839 = vperm.slane %v5786, 1
        %v5840 = vperm.slane %v5787, 1
        %v5841 = vperm.slane %v5727, 1
        %v5842 = vperm.slane %v5788, 1
        %v5843 = vperm.slane %v5789, 1
        %vm5844 = vcmask 1042434
        %v5845 = vsel %vm5844, %v5792, %v5791
        %vm5846 = vcmask 1043459
        %v5847 = vsel %vm5846, %v5793, %v5845
        %vm5848 = vcmask 1044484
        %v5849 = vsel %vm5848, %v5794, %v5847
        %vm5850 = vcmask 1045509
        %v5851 = vsel %vm5850, %v5791, %v5849
        %vm5852 = vcmask 1046534
        %v5853 = vsel %vm5852, %v5792, %v5851
        %vm5854 = vcmask 1047559
        %v5855 = vsel %vm5854, %v5793, %v5853
        %v5856 = vsel %vm5844, %v5796, %v5795
        %v5857 = vsel %vm5846, %v5797, %v5856
        %v5858 = vsel %vm5848, %v5798, %v5857
        %v5859 = vsel %vm5850, %v5799, %v5858
        %v5860 = vsel %vm5852, %v5800, %v5859
        %v5861 = vsel %vm5854, %v5801, %v5860
        %v5862 = vsel %vm5844, %v5803, %v5802
        %v5863 = vsel %vm5846, %v5804, %v5862
        %v5864 = vsel %vm5848, %v5805, %v5863
        %v5865 = vsel %vm5850, %v5806, %v5864
        %v5866 = vsel %vm5852, %v5807, %v5865
        %v5867 = vsel %vm5854, %v5808, %v5866
        %v5868 = vsel %vm5844, %v5810, %v5809
        %v5869 = vsel %vm5846, %v5811, %v5868
        %v5870 = vsel %vm5848, %v5812, %v5869
        %v5871 = vsel %vm5850, %v5813, %v5870
        %v5872 = vsel %vm5852, %v5814, %v5871
        %v5873 = vsel %vm5854, %v5815, %v5872
        %v5874 = vsel %vm5844, %v5817, %v5816
        %v5875 = vsel %vm5846, %v5818, %v5874
        %v5876 = vsel %vm5848, %v5819, %v5875
        %v5877 = vsel %vm5850, %v5820, %v5876
        %v5878 = vsel %vm5852, %v5821, %v5877
        %v5879 = vsel %vm5854, %v5822, %v5878
        %v5880 = vsel %vm5844, %v5824, %v5823
        %v5881 = vsel %vm5846, %v5825, %v5880
        %v5882 = vsel %vm5848, %v5826, %v5881
        %v5883 = vsel %vm5850, %v5827, %v5882
        %v5884 = vsel %vm5852, %v5828, %v5883
        %v5885 = vsel %vm5854, %v5829, %v5884
        %v5886 = vsel %vm5844, %v5831, %v5830
        %v5887 = vsel %vm5846, %v5832, %v5886
        %v5888 = vsel %vm5848, %v5833, %v5887
        %v5889 = vsel %vm5850, %v5834, %v5888
        %v5890 = vsel %vm5852, %v5835, %v5889
        %v5891 = vsel %vm5854, %v5836, %v5890
        %v5892 = vsel %vm5844, %v5838, %v5837
        %v5893 = vsel %vm5846, %v5839, %v5892
        %v5894 = vsel %vm5848, %v5840, %v5893
        %v5895 = vsel %vm5850, %v5841, %v5894
        %v5896 = vsel %vm5852, %v5842, %v5895
        %v5897 = vsel %vm5854, %v5843, %v5896
        %v5906 = vsel %vm1564, 0.0, %v5855
        %v5907 = vsel %vm1564, 0.0, %v5861
        %v5908 = vsel %vm1564, 0.0, %v5867
        %v5909 = vsel %vm1564, 0.0, %v5873
        %v5910 = vsel %vm1564, 0.0, %v5879
        %v5911 = vsel %vm1564, 0.0, %v5885
        %v5912 = vsel %vm1564, 0.0, %v5891
        %v5913 = vsel %vm1564, 0.0, %v5897
        %v5930 = vrot.slane %v5700, 2
        %v5931 = vrot.slane %v5700, 4
        %v5932 = vrot.slane %v5700, 6
        %v5933 = vrot.slane %v5701, 2
        %v5934 = vrot.slane %v5701, 4
        %v5935 = vrot.slane %v5701, 6
        %v5936 = vrot.slane %v5704, 2
        %v5937 = vrot.slane %v5704, 4
        %v5938 = vrot.slane %v5704, 6
        %v5939 = vrot.slane %v5705, 2
        %v5940 = vrot.slane %v5705, 4
        %v5941 = vrot.slane %v5705, 6
        %v5942 = vrot.slane %v5708, 2
        %v5943 = vrot.slane %v5708, 4
        %v5944 = vrot.slane %v5708, 6
        %v5945 = vrot.slane %v5709, 2
        %v5946 = vrot.slane %v5709, 4
        %v5947 = vrot.slane %v5709, 6
        %v5948 = vrot.slane %v5712, 2
        %v5949 = vrot.slane %v5712, 4
        %v5950 = vrot.slane %v5712, 6
        %v5951 = vrot.slane %v5713, 2
        %v5952 = vrot.slane %v5713, 4
        %v5953 = vrot.slane %v5713, 6
        %v5954 = vrot.slane %v5716, 2
        %v5955 = vrot.slane %v5716, 4
        %v5956 = vrot.slane %v5716, 6
        %v5957 = vrot.slane %v5717, 2
        %v5958 = vrot.slane %v5717, 4
        %v5959 = vrot.slane %v5717, 6
        %v5960 = vrot.slane %v5720, 2
        %v5961 = vrot.slane %v5720, 4
        %v5962 = vrot.slane %v5720, 6
        %v5963 = vrot.slane %v5721, 2
        %v5964 = vrot.slane %v5721, 4
        %v5965 = vrot.slane %v5721, 6
        %v5966 = vrot.slane %v5724, 2
        %v5967 = vrot.slane %v5724, 4
        %v5968 = vrot.slane %v5724, 6
        %v5969 = vrot.slane %v5725, 2
        %v5970 = vrot.slane %v5725, 4
        %v5971 = vrot.slane %v5725, 6
        %v5972 = vrot.slane %v5728, 2
        %v5973 = vrot.slane %v5728, 4
        %v5974 = vrot.slane %v5728, 6
        %v5975 = vrot.slane %v5729, 2
        %v5976 = vrot.slane %v5729, 4
        %v5977 = vrot.slane %v5729, 6
        %v5978 = vperm.slane %v5700, 1
        %v5979 = vperm.slane %v5930, 1
        %v5980 = vperm.slane %v5931, 1
        %v5981 = vperm.slane %v5932, 1
        %v5982 = vperm.slane %v5701, 1
        %v5983 = vperm.slane %v5933, 1
        %v5984 = vperm.slane %v5934, 1
        %v5985 = vperm.slane %v5704, 1
        %v5986 = vperm.slane %v5936, 1
        %v5987 = vperm.slane %v5937, 1
        %v5988 = vperm.slane %v5938, 1
        %v5989 = vperm.slane %v5705, 1
        %v5990 = vperm.slane %v5939, 1
        %v5991 = vperm.slane %v5940, 1
        %v5992 = vperm.slane %v5708, 1
        %v5993 = vperm.slane %v5942, 1
        %v5994 = vperm.slane %v5943, 1
        %v5995 = vperm.slane %v5944, 1
        %v5996 = vperm.slane %v5709, 1
        %v5997 = vperm.slane %v5945, 1
        %v5998 = vperm.slane %v5946, 1
        %v5999 = vperm.slane %v5712, 1
        %v6000 = vperm.slane %v5948, 1
        %v6001 = vperm.slane %v5949, 1
        %v6002 = vperm.slane %v5950, 1
        %v6003 = vperm.slane %v5713, 1
        %v6004 = vperm.slane %v5951, 1
        %v6005 = vperm.slane %v5952, 1
        %v6006 = vperm.slane %v5716, 1
        %v6007 = vperm.slane %v5954, 1
        %v6008 = vperm.slane %v5955, 1
        %v6009 = vperm.slane %v5956, 1
        %v6010 = vperm.slane %v5717, 1
        %v6011 = vperm.slane %v5957, 1
        %v6012 = vperm.slane %v5958, 1
        %v6013 = vperm.slane %v5720, 1
        %v6014 = vperm.slane %v5960, 1
        %v6015 = vperm.slane %v5961, 1
        %v6016 = vperm.slane %v5962, 1
        %v6017 = vperm.slane %v5721, 1
        %v6018 = vperm.slane %v5963, 1
        %v6019 = vperm.slane %v5964, 1
        %v6020 = vperm.slane %v5724, 1
        %v6021 = vperm.slane %v5966, 1
        %v6022 = vperm.slane %v5967, 1
        %v6023 = vperm.slane %v5968, 1
        %v6024 = vperm.slane %v5725, 1
        %v6025 = vperm.slane %v5969, 1
        %v6026 = vperm.slane %v5970, 1
        %v6027 = vperm.slane %v5728, 1
        %v6028 = vperm.slane %v5972, 1
        %v6029 = vperm.slane %v5973, 1
        %v6030 = vperm.slane %v5974, 1
        %v6031 = vperm.slane %v5729, 1
        %v6032 = vperm.slane %v5975, 1
        %v6033 = vperm.slane %v5976, 1
        %v6034 = vsel %vm5844, %v5979, %v5978
        %v6035 = vsel %vm5846, %v5980, %v6034
        %v6036 = vsel %vm5848, %v5981, %v6035
        %v6037 = vsel %vm5850, %v5982, %v6036
        %v6038 = vsel %vm5852, %v5983, %v6037
        %v6039 = vsel %vm5854, %v5984, %v6038
        %v6040 = vsel %vm5844, %v5986, %v5985
        %v6041 = vsel %vm5846, %v5987, %v6040
        %v6042 = vsel %vm5848, %v5988, %v6041
        %v6043 = vsel %vm5850, %v5989, %v6042
        %v6044 = vsel %vm5852, %v5990, %v6043
        %v6045 = vsel %vm5854, %v5991, %v6044
        %v6046 = vsel %vm5844, %v5993, %v5992
        %v6047 = vsel %vm5846, %v5994, %v6046
        %v6048 = vsel %vm5848, %v5995, %v6047
        %v6049 = vsel %vm5850, %v5996, %v6048
        %v6050 = vsel %vm5852, %v5997, %v6049
        %v6051 = vsel %vm5854, %v5998, %v6050
        %v6052 = vsel %vm5844, %v6000, %v5999
        %v6053 = vsel %vm5846, %v6001, %v6052
        %v6054 = vsel %vm5848, %v6002, %v6053
        %v6055 = vsel %vm5850, %v6003, %v6054
        %v6056 = vsel %vm5852, %v6004, %v6055
        %v6057 = vsel %vm5854, %v6005, %v6056
        %v6058 = vsel %vm5844, %v6007, %v6006
        %v6059 = vsel %vm5846, %v6008, %v6058
        %v6060 = vsel %vm5848, %v6009, %v6059
        %v6061 = vsel %vm5850, %v6010, %v6060
        %v6062 = vsel %vm5852, %v6011, %v6061
        %v6063 = vsel %vm5854, %v6012, %v6062
        %v6064 = vsel %vm5844, %v6014, %v6013
        %v6065 = vsel %vm5846, %v6015, %v6064
        %v6066 = vsel %vm5848, %v6016, %v6065
        %v6067 = vsel %vm5850, %v6017, %v6066
        %v6068 = vsel %vm5852, %v6018, %v6067
        %v6069 = vsel %vm5854, %v6019, %v6068
        %v6070 = vsel %vm5844, %v6021, %v6020
        %v6071 = vsel %vm5846, %v6022, %v6070
        %v6072 = vsel %vm5848, %v6023, %v6071
        %v6073 = vsel %vm5850, %v6024, %v6072
        %v6074 = vsel %vm5852, %v6025, %v6073
        %v6075 = vsel %vm5854, %v6026, %v6074
        %v6076 = vsel %vm5844, %v6028, %v6027
        %v6077 = vsel %vm5846, %v6029, %v6076
        %v6078 = vsel %vm5848, %v6030, %v6077
        %v6079 = vsel %vm5850, %v6031, %v6078
        %v6080 = vsel %vm5852, %v6032, %v6079
        %v6081 = vsel %vm5854, %v6033, %v6080
        %v6090 = vsel %vm1564, 0.0, %v6039
        %v6091 = vsel %vm1564, 0.0, %v6045
        %v6092 = vsel %vm1564, 0.0, %v6051
        %v6093 = vsel %vm1564, 0.0, %v6057
        %v6094 = vsel %vm1564, 0.0, %v6063
        %v6095 = vsel %vm1564, 0.0, %v6069
        %v6096 = vsel %vm1564, 0.0, %v6075
        %v6097 = vsel %vm1564, 0.0, %v6081
        %v6100 = vrot.slane %v5730, 2
        %v6101 = vrot.slane %v5730, 4
        %v6102 = vrot.slane %v5730, 6
        %v6103 = vrot.slane %v5731, 2
        %v6104 = vrot.slane %v5731, 4
        %v6105 = vrot.slane %v5731, 6
        %v6106 = vperm.slane %v5730, 1
        %v6107 = vperm.slane %v6100, 1
        %v6108 = vperm.slane %v6101, 1
        %v6109 = vperm.slane %v6102, 1
        %v6110 = vperm.slane %v5731, 1
        %v6111 = vperm.slane %v6103, 1
        %v6112 = vperm.slane %v6104, 1
        %v6113 = vsel %vm5844, %v6107, %v6106
        %v6114 = vsel %vm5846, %v6108, %v6113
        %v6115 = vsel %vm5848, %v6109, %v6114
        %v6116 = vsel %vm5850, %v6110, %v6115
        %v6117 = vsel %vm5852, %v6111, %v6116
        %v6118 = vsel %vm5854, %v6112, %v6117
        %v6120 = vsel %vm1564, 0.0, %v6118
        %v6121 = vperm.slane 0.0, 0
        %v6122 = vperm.slane %v5746, 0
        %v6123 = vperm.slane %v5747, 0
        %v6124 = vperm.slane %v5748, 0
        %v6125 = vperm.slane %v5702, 0
        %v6126 = vperm.slane %v5749, 0
        %v6127 = vperm.slane %v5750, 0
        %v6128 = vperm.slane %v5751, 0
        %v6129 = vperm.slane %v5703, 0
        %v6130 = vperm.slane %v5752, 0
        %v6131 = vperm.slane %v5753, 0
        %v6132 = vperm.slane %v5754, 0
        %v6133 = vperm.slane %v5706, 0
        %v6134 = vperm.slane %v5755, 0
        %v6135 = vperm.slane %v5756, 0
        %v6136 = vperm.slane %v5757, 0
        %v6137 = vperm.slane %v5707, 0
        %v6138 = vperm.slane %v5758, 0
        %v6139 = vperm.slane %v5759, 0
        %v6140 = vperm.slane %v5760, 0
        %v6141 = vperm.slane %v5710, 0
        %v6142 = vperm.slane %v5761, 0
        %v6143 = vperm.slane %v5762, 0
        %v6144 = vperm.slane %v5763, 0
        %v6145 = vperm.slane %v5711, 0
        %v6146 = vperm.slane %v5764, 0
        %v6147 = vperm.slane %v5765, 0
        %v6148 = vperm.slane %v5766, 0
        %v6149 = vperm.slane %v5714, 0
        %v6150 = vperm.slane %v5767, 0
        %v6151 = vperm.slane %v5768, 0
        %v6152 = vperm.slane %v5769, 0
        %v6153 = vperm.slane %v5715, 0
        %v6154 = vperm.slane %v5770, 0
        %v6155 = vperm.slane %v5771, 0
        %v6156 = vperm.slane %v5772, 0
        %v6157 = vperm.slane %v5718, 0
        %v6158 = vperm.slane %v5773, 0
        %v6159 = vperm.slane %v5774, 0
        %v6160 = vperm.slane %v5775, 0
        %v6161 = vperm.slane %v5719, 0
        %v6162 = vperm.slane %v5776, 0
        %v6163 = vperm.slane %v5777, 0
        %v6164 = vperm.slane %v5778, 0
        %v6165 = vperm.slane %v5722, 0
        %v6166 = vperm.slane %v5779, 0
        %v6167 = vperm.slane %v5780, 0
        %v6168 = vperm.slane %v5781, 0
        %v6169 = vperm.slane %v5723, 0
        %v6170 = vperm.slane %v5782, 0
        %v6171 = vperm.slane %v5783, 0
        %v6172 = vperm.slane %v5784, 0
        %v6173 = vperm.slane %v5726, 0
        %v6174 = vperm.slane %v5785, 0
        %v6175 = vperm.slane %v5786, 0
        %v6176 = vperm.slane %v5787, 0
        %v6177 = vperm.slane %v5727, 0
        %v6178 = vperm.slane %v5788, 0
        %v6179 = vperm.slane %v5789, 0
        %v6180 = vperm.slane %v5790, 0
        %vm6181 = vcmask 1041409
        %v6182 = vsel %vm6181, %v6122, %v6121
        %v6183 = vsel %vm5844, %v6123, %v6182
        %v6184 = vsel %vm5846, %v6124, %v6183
        %v6185 = vsel %vm5848, %v6121, %v6184
        %v6186 = vsel %vm5850, %v6122, %v6185
        %v6187 = vsel %vm5852, %v6123, %v6186
        %v6188 = vsel %vm5854, %v6124, %v6187
        %v6189 = vsel %vm6181, %v6126, %v6125
        %v6190 = vsel %vm5844, %v6127, %v6189
        %v6191 = vsel %vm5846, %v6128, %v6190
        %v6192 = vsel %vm5848, %v6129, %v6191
        %v6193 = vsel %vm5850, %v6130, %v6192
        %v6194 = vsel %vm5852, %v6131, %v6193
        %v6195 = vsel %vm5854, %v6132, %v6194
        %v6196 = vsel %vm6181, %v6134, %v6133
        %v6197 = vsel %vm5844, %v6135, %v6196
        %v6198 = vsel %vm5846, %v6136, %v6197
        %v6199 = vsel %vm5848, %v6137, %v6198
        %v6200 = vsel %vm5850, %v6138, %v6199
        %v6201 = vsel %vm5852, %v6139, %v6200
        %v6202 = vsel %vm5854, %v6140, %v6201
        %v6203 = vsel %vm6181, %v6142, %v6141
        %v6204 = vsel %vm5844, %v6143, %v6203
        %v6205 = vsel %vm5846, %v6144, %v6204
        %v6206 = vsel %vm5848, %v6145, %v6205
        %v6207 = vsel %vm5850, %v6146, %v6206
        %v6208 = vsel %vm5852, %v6147, %v6207
        %v6209 = vsel %vm5854, %v6148, %v6208
        %v6210 = vsel %vm6181, %v6150, %v6149
        %v6211 = vsel %vm5844, %v6151, %v6210
        %v6212 = vsel %vm5846, %v6152, %v6211
        %v6213 = vsel %vm5848, %v6153, %v6212
        %v6214 = vsel %vm5850, %v6154, %v6213
        %v6215 = vsel %vm5852, %v6155, %v6214
        %v6216 = vsel %vm5854, %v6156, %v6215
        %v6217 = vsel %vm6181, %v6158, %v6157
        %v6218 = vsel %vm5844, %v6159, %v6217
        %v6219 = vsel %vm5846, %v6160, %v6218
        %v6220 = vsel %vm5848, %v6161, %v6219
        %v6221 = vsel %vm5850, %v6162, %v6220
        %v6222 = vsel %vm5852, %v6163, %v6221
        %v6223 = vsel %vm5854, %v6164, %v6222
        %v6224 = vsel %vm6181, %v6166, %v6165
        %v6225 = vsel %vm5844, %v6167, %v6224
        %v6226 = vsel %vm5846, %v6168, %v6225
        %v6227 = vsel %vm5848, %v6169, %v6226
        %v6228 = vsel %vm5850, %v6170, %v6227
        %v6229 = vsel %vm5852, %v6171, %v6228
        %v6230 = vsel %vm5854, %v6172, %v6229
        %v6231 = vsel %vm6181, %v6174, %v6173
        %v6232 = vsel %vm5844, %v6175, %v6231
        %v6233 = vsel %vm5846, %v6176, %v6232
        %v6234 = vsel %vm5848, %v6177, %v6233
        %v6235 = vsel %vm5850, %v6178, %v6234
        %v6236 = vsel %vm5852, %v6179, %v6235
        %v6237 = vsel %vm5854, %v6180, %v6236
        %6238 = vrot.lane.b32.xlu0 %v6188, 16
        %v6239 = vpop.permute.xlu0 %6238
        %6240 = vrot.lane.b32.xlu0 %v6195, 16
        %v6241 = vpop.permute.xlu0 %6240
        %6242 = vrot.lane.b32.xlu0 %v6202, 16
        %v6243 = vpop.permute.xlu0 %6242
        %6244 = vrot.lane.b32.xlu0 %v6209, 16
        %v6245 = vpop.permute.xlu0 %6244
        %6246 = vrot.lane.b32.xlu0 %v6216, 16
        %v6247 = vpop.permute.xlu0 %6246
        %6248 = vrot.lane.b32.xlu0 %v6223, 16
        %v6249 = vpop.permute.xlu0 %6248
        %6250 = vrot.lane.b32.xlu0 %v6230, 16
        %v6251 = vpop.permute.xlu0 %6250
        %6252 = vrot.lane.b32.xlu0 %v6237, 16
        %v6253 = vpop.permute.xlu0 %6252
        %v6262 = vperm.slane %v5754, 1
        %v6263 = vperm.slane %v5760, 1
        %v6264 = vperm.slane %v5766, 1
        %v6265 = vperm.slane %v5772, 1
        %v6266 = vperm.slane %v5778, 1
        %v6267 = vperm.slane %v5784, 1
        %v6268 = vperm.slane %v5790, 1
        %v6269 = vsel %vm6181, %v5792, %v5791
        %v6270 = vsel %vm5844, %v5793, %v6269
        %v6271 = vsel %vm5846, %v5794, %v6270
        %v6272 = vsel %vm5848, %v5791, %v6271
        %v6273 = vsel %vm5850, %v5792, %v6272
        %v6274 = vsel %vm5852, %v5793, %v6273
        %v6275 = vsel %vm5854, %v5794, %v6274
        %v6276 = vsel %vm6181, %v5796, %v5795
        %v6277 = vsel %vm5844, %v5797, %v6276
        %v6278 = vsel %vm5846, %v5798, %v6277
        %v6279 = vsel %vm5848, %v5799, %v6278
        %v6280 = vsel %vm5850, %v5800, %v6279
        %v6281 = vsel %vm5852, %v5801, %v6280
        %v6282 = vsel %vm5854, %v6262, %v6281
        %v6283 = vsel %vm6181, %v5803, %v5802
        %v6284 = vsel %vm5844, %v5804, %v6283
        %v6285 = vsel %vm5846, %v5805, %v6284
        %v6286 = vsel %vm5848, %v5806, %v6285
        %v6287 = vsel %vm5850, %v5807, %v6286
        %v6288 = vsel %vm5852, %v5808, %v6287
        %v6289 = vsel %vm5854, %v6263, %v6288
        %v6290 = vsel %vm6181, %v5810, %v5809
        %v6291 = vsel %vm5844, %v5811, %v6290
        %v6292 = vsel %vm5846, %v5812, %v6291
        %v6293 = vsel %vm5848, %v5813, %v6292
        %v6294 = vsel %vm5850, %v5814, %v6293
        %v6295 = vsel %vm5852, %v5815, %v6294
        %v6296 = vsel %vm5854, %v6264, %v6295
        %v6297 = vsel %vm6181, %v5817, %v5816
        %v6298 = vsel %vm5844, %v5818, %v6297
        %v6299 = vsel %vm5846, %v5819, %v6298
        %v6300 = vsel %vm5848, %v5820, %v6299
        %v6301 = vsel %vm5850, %v5821, %v6300
        %v6302 = vsel %vm5852, %v5822, %v6301
        %v6303 = vsel %vm5854, %v6265, %v6302
        %v6304 = vsel %vm6181, %v5824, %v5823
        %v6305 = vsel %vm5844, %v5825, %v6304
        %v6306 = vsel %vm5846, %v5826, %v6305
        %v6307 = vsel %vm5848, %v5827, %v6306
        %v6308 = vsel %vm5850, %v5828, %v6307
        %v6309 = vsel %vm5852, %v5829, %v6308
        %v6310 = vsel %vm5854, %v6266, %v6309
        %v6311 = vsel %vm6181, %v5831, %v5830
        %v6312 = vsel %vm5844, %v5832, %v6311
        %v6313 = vsel %vm5846, %v5833, %v6312
        %v6314 = vsel %vm5848, %v5834, %v6313
        %v6315 = vsel %vm5850, %v5835, %v6314
        %v6316 = vsel %vm5852, %v5836, %v6315
        %v6317 = vsel %vm5854, %v6267, %v6316
        %v6318 = vsel %vm6181, %v5838, %v5837
        %v6319 = vsel %vm5844, %v5839, %v6318
        %v6320 = vsel %vm5846, %v5840, %v6319
        %v6321 = vsel %vm5848, %v5841, %v6320
        %v6322 = vsel %vm5850, %v5842, %v6321
        %v6323 = vsel %vm5852, %v5843, %v6322
        %v6324 = vsel %vm5854, %v6268, %v6323
        %6325 = vrot.lane.b32.xlu0 %v6275, 32
        %v6326 = vpop.permute.xlu0 %6325
        %6327 = vrot.lane.b32.xlu0 %v6282, 32
        %v6328 = vpop.permute.xlu0 %6327
        %6329 = vrot.lane.b32.xlu0 %v6289, 32
        %v6330 = vpop.permute.xlu0 %6329
        %6331 = vrot.lane.b32.xlu0 %v6296, 32
        %v6332 = vpop.permute.xlu0 %6331
        %6333 = vrot.lane.b32.xlu0 %v6303, 32
        %v6334 = vpop.permute.xlu0 %6333
        %6335 = vrot.lane.b32.xlu0 %v6310, 32
        %v6336 = vpop.permute.xlu0 %6335
        %6337 = vrot.lane.b32.xlu0 %v6317, 32
        %v6338 = vpop.permute.xlu0 %6337
        %6339 = vrot.lane.b32.xlu0 %v6324, 32
        %v6340 = vpop.permute.xlu0 %6339
        %6357 = vrot.lane.b32.xlu0 %v6090, 48
        %v6358 = vpop.permute.xlu0 %6357
        %6359 = vrot.lane.b32.xlu0 %v6091, 48
        %v6360 = vpop.permute.xlu0 %6359
        %6361 = vrot.lane.b32.xlu0 %v6092, 48
        %v6362 = vpop.permute.xlu0 %6361
        %6363 = vrot.lane.b32.xlu0 %v6093, 48
        %v6364 = vpop.permute.xlu0 %6363
        %6365 = vrot.lane.b32.xlu0 %v6094, 48
        %v6366 = vpop.permute.xlu0 %6365
        %6367 = vrot.lane.b32.xlu0 %v6095, 48
        %v6368 = vpop.permute.xlu0 %6367
        %6369 = vrot.lane.b32.xlu0 %v6096, 48
        %v6370 = vpop.permute.xlu0 %6369
        %6371 = vrot.lane.b32.xlu0 %v6097, 48
        %v6372 = vpop.permute.xlu0 %6371
        %v6381 = vperm.slane %v5700, 0
        %v6382 = vperm.slane %v5930, 0
        %v6383 = vperm.slane %v5931, 0
        %v6384 = vperm.slane %v5932, 0
        %v6385 = vperm.slane %v5701, 0
        %v6386 = vperm.slane %v5933, 0
        %v6387 = vperm.slane %v5934, 0
        %v6388 = vperm.slane %v5935, 0
        %v6389 = vperm.slane %v5704, 0
        %v6390 = vperm.slane %v5936, 0
        %v6391 = vperm.slane %v5937, 0
        %v6392 = vperm.slane %v5938, 0
        %v6393 = vperm.slane %v5705, 0
        %v6394 = vperm.slane %v5939, 0
        %v6395 = vperm.slane %v5940, 0
        %v6396 = vperm.slane %v5941, 0
        %v6397 = vperm.slane %v5708, 0
        %v6398 = vperm.slane %v5942, 0
        %v6399 = vperm.slane %v5943, 0
        %v6400 = vperm.slane %v5944, 0
        %v6401 = vperm.slane %v5709, 0
        %v6402 = vperm.slane %v5945, 0
        %v6403 = vperm.slane %v5946, 0
        %v6404 = vperm.slane %v5947, 0
        %v6405 = vperm.slane %v5712, 0
        %v6406 = vperm.slane %v5948, 0
        %v6407 = vperm.slane %v5949, 0
        %v6408 = vperm.slane %v5950, 0
        %v6409 = vperm.slane %v5713, 0
        %v6410 = vperm.slane %v5951, 0
        %v6411 = vperm.slane %v5952, 0
        %v6412 = vperm.slane %v5953, 0
        %v6413 = vperm.slane %v5716, 0
        %v6414 = vperm.slane %v5954, 0
        %v6415 = vperm.slane %v5955, 0
        %v6416 = vperm.slane %v5956, 0
        %v6417 = vperm.slane %v5717, 0
        %v6418 = vperm.slane %v5957, 0
        %v6419 = vperm.slane %v5958, 0
        %v6420 = vperm.slane %v5959, 0
        %v6421 = vperm.slane %v5720, 0
        %v6422 = vperm.slane %v5960, 0
        %v6423 = vperm.slane %v5961, 0
        %v6424 = vperm.slane %v5962, 0
        %v6425 = vperm.slane %v5721, 0
        %v6426 = vperm.slane %v5963, 0
        %v6427 = vperm.slane %v5964, 0
        %v6428 = vperm.slane %v5965, 0
        %v6429 = vperm.slane %v5724, 0
        %v6430 = vperm.slane %v5966, 0
        %v6431 = vperm.slane %v5967, 0
        %v6432 = vperm.slane %v5968, 0
        %v6433 = vperm.slane %v5725, 0
        %v6434 = vperm.slane %v5969, 0
        %v6435 = vperm.slane %v5970, 0
        %v6436 = vperm.slane %v5971, 0
        %v6437 = vperm.slane %v5728, 0
        %v6438 = vperm.slane %v5972, 0
        %v6439 = vperm.slane %v5973, 0
        %v6440 = vperm.slane %v5974, 0
        %v6441 = vperm.slane %v5729, 0
        %v6442 = vperm.slane %v5975, 0
        %v6443 = vperm.slane %v5976, 0
        %v6444 = vperm.slane %v5977, 0
        %v6445 = vsel %vm6181, %v6382, %v6381
        %v6446 = vsel %vm5844, %v6383, %v6445
        %v6447 = vsel %vm5846, %v6384, %v6446
        %v6448 = vsel %vm5848, %v6385, %v6447
        %v6449 = vsel %vm5850, %v6386, %v6448
        %v6450 = vsel %vm5852, %v6387, %v6449
        %v6451 = vsel %vm5854, %v6388, %v6450
        %v6452 = vsel %vm6181, %v6390, %v6389
        %v6453 = vsel %vm5844, %v6391, %v6452
        %v6454 = vsel %vm5846, %v6392, %v6453
        %v6455 = vsel %vm5848, %v6393, %v6454
        %v6456 = vsel %vm5850, %v6394, %v6455
        %v6457 = vsel %vm5852, %v6395, %v6456
        %v6458 = vsel %vm5854, %v6396, %v6457
        %v6459 = vsel %vm6181, %v6398, %v6397
        %v6460 = vsel %vm5844, %v6399, %v6459
        %v6461 = vsel %vm5846, %v6400, %v6460
        %v6462 = vsel %vm5848, %v6401, %v6461
        %v6463 = vsel %vm5850, %v6402, %v6462
        %v6464 = vsel %vm5852, %v6403, %v6463
        %v6465 = vsel %vm5854, %v6404, %v6464
        %v6466 = vsel %vm6181, %v6406, %v6405
        %v6467 = vsel %vm5844, %v6407, %v6466
        %v6468 = vsel %vm5846, %v6408, %v6467
        %v6469 = vsel %vm5848, %v6409, %v6468
        %v6470 = vsel %vm5850, %v6410, %v6469
        %v6471 = vsel %vm5852, %v6411, %v6470
        %v6472 = vsel %vm5854, %v6412, %v6471
        %v6473 = vsel %vm6181, %v6414, %v6413
        %v6474 = vsel %vm5844, %v6415, %v6473
        %v6475 = vsel %vm5846, %v6416, %v6474
        %v6476 = vsel %vm5848, %v6417, %v6475
        %v6477 = vsel %vm5850, %v6418, %v6476
        %v6478 = vsel %vm5852, %v6419, %v6477
        %v6479 = vsel %vm5854, %v6420, %v6478
        %v6480 = vsel %vm6181, %v6422, %v6421
        %v6481 = vsel %vm5844, %v6423, %v6480
        %v6482 = vsel %vm5846, %v6424, %v6481
        %v6483 = vsel %vm5848, %v6425, %v6482
        %v6484 = vsel %vm5850, %v6426, %v6483
        %v6485 = vsel %vm5852, %v6427, %v6484
        %v6486 = vsel %vm5854, %v6428, %v6485
        %v6487 = vsel %vm6181, %v6430, %v6429
        %v6488 = vsel %vm5844, %v6431, %v6487
        %v6489 = vsel %vm5846, %v6432, %v6488
        %v6490 = vsel %vm5848, %v6433, %v6489
        %v6491 = vsel %vm5850, %v6434, %v6490
        %v6492 = vsel %vm5852, %v6435, %v6491
        %v6493 = vsel %vm5854, %v6436, %v6492
        %v6494 = vsel %vm6181, %v6438, %v6437
        %v6495 = vsel %vm5844, %v6439, %v6494
        %v6496 = vsel %vm5846, %v6440, %v6495
        %v6497 = vsel %vm5848, %v6441, %v6496
        %v6498 = vsel %vm5850, %v6442, %v6497
        %v6499 = vsel %vm5852, %v6443, %v6498
        %v6500 = vsel %vm5854, %v6444, %v6499
        %6501 = vrot.lane.b32.xlu0 %v6451, 64
        %v6502 = vpop.permute.xlu0 %6501
        %6503 = vrot.lane.b32.xlu0 %v6458, 64
        %v6504 = vpop.permute.xlu0 %6503
        %6505 = vrot.lane.b32.xlu0 %v6465, 64
        %v6506 = vpop.permute.xlu0 %6505
        %6507 = vrot.lane.b32.xlu0 %v6472, 64
        %v6508 = vpop.permute.xlu0 %6507
        %6509 = vrot.lane.b32.xlu0 %v6479, 64
        %v6510 = vpop.permute.xlu0 %6509
        %6511 = vrot.lane.b32.xlu0 %v6486, 64
        %v6512 = vpop.permute.xlu0 %6511
        %6513 = vrot.lane.b32.xlu0 %v6493, 64
        %v6514 = vpop.permute.xlu0 %6513
        %6515 = vrot.lane.b32.xlu0 %v6500, 64
        %v6516 = vpop.permute.xlu0 %6515
        %v6525 = vperm.slane %v5935, 1
        %v6526 = vperm.slane %v5941, 1
        %v6527 = vperm.slane %v5947, 1
        %v6528 = vperm.slane %v5953, 1
        %v6529 = vperm.slane %v5959, 1
        %v6530 = vperm.slane %v5965, 1
        %v6531 = vperm.slane %v5971, 1
        %v6532 = vperm.slane %v5977, 1
        %v6533 = vsel %vm6181, %v5979, %v5978
        %v6534 = vsel %vm5844, %v5980, %v6533
        %v6535 = vsel %vm5846, %v5981, %v6534
        %v6536 = vsel %vm5848, %v5982, %v6535
        %v6537 = vsel %vm5850, %v5983, %v6536
        %v6538 = vsel %vm5852, %v5984, %v6537
        %v6539 = vsel %vm5854, %v6525, %v6538
        %v6540 = vsel %vm6181, %v5986, %v5985
        %v6541 = vsel %vm5844, %v5987, %v6540
        %v6542 = vsel %vm5846, %v5988, %v6541
        %v6543 = vsel %vm5848, %v5989, %v6542
        %v6544 = vsel %vm5850, %v5990, %v6543
        %v6545 = vsel %vm5852, %v5991, %v6544
        %v6546 = vsel %vm5854, %v6526, %v6545
        %v6547 = vsel %vm6181, %v5993, %v5992
        %v6548 = vsel %vm5844, %v5994, %v6547
        %v6549 = vsel %vm5846, %v5995, %v6548
        %v6550 = vsel %vm5848, %v5996, %v6549
        %v6551 = vsel %vm5850, %v5997, %v6550
        %v6552 = vsel %vm5852, %v5998, %v6551
        %v6553 = vsel %vm5854, %v6527, %v6552
        %v6554 = vsel %vm6181, %v6000, %v5999
        %v6555 = vsel %vm5844, %v6001, %v6554
        %v6556 = vsel %vm5846, %v6002, %v6555
        %v6557 = vsel %vm5848, %v6003, %v6556
        %v6558 = vsel %vm5850, %v6004, %v6557
        %v6559 = vsel %vm5852, %v6005, %v6558
        %v6560 = vsel %vm5854, %v6528, %v6559
        %v6561 = vsel %vm6181, %v6007, %v6006
        %v6562 = vsel %vm5844, %v6008, %v6561
        %v6563 = vsel %vm5846, %v6009, %v6562
        %v6564 = vsel %vm5848, %v6010, %v6563
        %v6565 = vsel %vm5850, %v6011, %v6564
        %v6566 = vsel %vm5852, %v6012, %v6565
        %v6567 = vsel %vm5854, %v6529, %v6566
        %v6568 = vsel %vm6181, %v6014, %v6013
        %v6569 = vsel %vm5844, %v6015, %v6568
        %v6570 = vsel %vm5846, %v6016, %v6569
        %v6571 = vsel %vm5848, %v6017, %v6570
        %v6572 = vsel %vm5850, %v6018, %v6571
        %v6573 = vsel %vm5852, %v6019, %v6572
        %v6574 = vsel %vm5854, %v6530, %v6573
        %v6575 = vsel %vm6181, %v6021, %v6020
        %v6576 = vsel %vm5844, %v6022, %v6575
        %v6577 = vsel %vm5846, %v6023, %v6576
        %v6578 = vsel %vm5848, %v6024, %v6577
        %v6579 = vsel %vm5850, %v6025, %v6578
        %v6580 = vsel %vm5852, %v6026, %v6579
        %v6581 = vsel %vm5854, %v6531, %v6580
        %v6582 = vsel %vm6181, %v6028, %v6027
        %v6583 = vsel %vm5844, %v6029, %v6582
        %v6584 = vsel %vm5846, %v6030, %v6583
        %v6585 = vsel %vm5848, %v6031, %v6584
        %v6586 = vsel %vm5850, %v6032, %v6585
        %v6587 = vsel %vm5852, %v6033, %v6586
        %v6588 = vsel %vm5854, %v6532, %v6587
        %6589 = vrot.lane.b32.xlu0 %v6539, 80
        %v6590 = vpop.permute.xlu0 %6589
        %6591 = vrot.lane.b32.xlu0 %v6546, 80
        %v6592 = vpop.permute.xlu0 %6591
        %6593 = vrot.lane.b32.xlu0 %v6553, 80
        %v6594 = vpop.permute.xlu0 %6593
        %6595 = vrot.lane.b32.xlu0 %v6560, 80
        %v6596 = vpop.permute.xlu0 %6595
        %6597 = vrot.lane.b32.xlu0 %v6567, 80
        %v6598 = vpop.permute.xlu0 %6597
        %6599 = vrot.lane.b32.xlu0 %v6574, 80
        %v6600 = vpop.permute.xlu0 %6599
        %6601 = vrot.lane.b32.xlu0 %v6581, 80
        %v6602 = vpop.permute.xlu0 %6601
        %6603 = vrot.lane.b32.xlu0 %v6588, 80
        %v6604 = vpop.permute.xlu0 %6603
        %6621 = vrot.lane.b32.xlu0 %v5907, 96
        %v6622 = vpop.permute.xlu0 %6621
        %6623 = vrot.lane.b32.xlu0 %v5908, 96
        %v6624 = vpop.permute.xlu0 %6623
        %6625 = vrot.lane.b32.xlu0 %v5909, 96
        %v6626 = vpop.permute.xlu0 %6625
        %6627 = vrot.lane.b32.xlu0 %v5910, 96
        %v6628 = vpop.permute.xlu0 %6627
        %6629 = vrot.lane.b32.xlu0 %v5911, 96
        %v6630 = vpop.permute.xlu0 %6629
        %6631 = vrot.lane.b32.xlu0 %v5912, 96
        %v6632 = vpop.permute.xlu0 %6631
        %6633 = vrot.lane.b32.xlu0 %v5913, 96
        %v6634 = vpop.permute.xlu0 %6633
        %6635 = vrot.lane.b32.xlu0 %v6120, 96
        %v6636 = vpop.permute.xlu0 %6635
        %v6645 = vperm.slane %v5730, 0
        %v6646 = vperm.slane %v6100, 0
        %v6647 = vperm.slane %v6101, 0
        %v6648 = vperm.slane %v6102, 0
        %v6649 = vperm.slane %v5731, 0
        %v6650 = vperm.slane %v6103, 0
        %v6651 = vperm.slane %v6104, 0
        %v6652 = vperm.slane %v6105, 0
        %v6653 = vsel %vm6181, %v6646, %v6645
        %v6654 = vsel %vm5844, %v6647, %v6653
        %v6655 = vsel %vm5846, %v6648, %v6654
        %v6656 = vsel %vm5848, %v6649, %v6655
        %v6657 = vsel %vm5850, %v6650, %v6656
        %v6658 = vsel %vm5852, %v6651, %v6657
        %v6659 = vsel %vm5854, %v6652, %v6658
        %6660 = vrot.lane.b32.xlu0 %v6195, 112
        %v6661 = vpop.permute.xlu0 %6660
        %6662 = vrot.lane.b32.xlu0 %v6202, 112
        %v6663 = vpop.permute.xlu0 %6662
        %6664 = vrot.lane.b32.xlu0 %v6209, 112
        %v6665 = vpop.permute.xlu0 %6664
        %6666 = vrot.lane.b32.xlu0 %v6216, 112
        %v6667 = vpop.permute.xlu0 %6666
        %6668 = vrot.lane.b32.xlu0 %v6223, 112
        %v6669 = vpop.permute.xlu0 %6668
        %6670 = vrot.lane.b32.xlu0 %v6230, 112
        %v6671 = vpop.permute.xlu0 %6670
        %6672 = vrot.lane.b32.xlu0 %v6237, 112
        %v6673 = vpop.permute.xlu0 %6672
        %6674 = vrot.lane.b32.xlu0 %v6659, 112
        %v6675 = vpop.permute.xlu0 %6674
        %v6684 = vperm.slane %v6105, 1
        %v6685 = vsel %vm6181, %v6107, %v6106
        %v6686 = vsel %vm5844, %v6108, %v6685
        %v6687 = vsel %vm5846, %v6109, %v6686
        %v6688 = vsel %vm5848, %v6110, %v6687
        %v6689 = vsel %vm5850, %v6111, %v6688
        %v6690 = vsel %vm5852, %v6112, %v6689
        %v6691 = vsel %vm5854, %v6684, %v6690
        %v6692 = vsel %vm2580, %v5906, %v6239
        %v6693 = vsel %vm2580, %v5907, %v6241
        %v6694 = vsel %vm2580, %v5908, %v6243
        %v6695 = vsel %vm2580, %v5909, %v6245
        %v6696 = vsel %vm2580, %v5910, %v6247
        %v6697 = vsel %vm2580, %v5911, %v6249
        %v6698 = vsel %vm2580, %v5912, %v6251
        %v6699 = vsel %vm2580, %v5913, %v6253
        %v6700 = vsel %vm2646, %v6692, %v6326
        %v6701 = vsel %vm2646, %v6693, %v6328
        %v6702 = vsel %vm2646, %v6694, %v6330
        %v6703 = vsel %vm2646, %v6695, %v6332
        %v6704 = vsel %vm2646, %v6696, %v6334
        %v6705 = vsel %vm2646, %v6697, %v6336
        %v6706 = vsel %vm2646, %v6698, %v6338
        %v6707 = vsel %vm2646, %v6699, %v6340
        %v6708 = vsel %vm2712, %v6700, %v6358
        %v6709 = vsel %vm2712, %v6701, %v6360
        %v6710 = vsel %vm2712, %v6702, %v6362
        %v6711 = vsel %vm2712, %v6703, %v6364
        %v6712 = vsel %vm2712, %v6704, %v6366
        %v6713 = vsel %vm2712, %v6705, %v6368
        %v6714 = vsel %vm2712, %v6706, %v6370
        %v6715 = vsel %vm2712, %v6707, %v6372
        %v6716 = vsel %vm2778, %v6708, %v6502
        %v6717 = vsel %vm2778, %v6709, %v6504
        %v6718 = vsel %vm2778, %v6710, %v6506
        %v6719 = vsel %vm2778, %v6711, %v6508
        %v6720 = vsel %vm2778, %v6712, %v6510
        %v6721 = vsel %vm2778, %v6713, %v6512
        %v6722 = vsel %vm2778, %v6714, %v6514
        %v6723 = vsel %vm2778, %v6715, %v6516
        %v6724 = vsel %vm5075, %v6716, %v6590
        %v6725 = vsel %vm5075, %v6717, %v6592
        %v6726 = vsel %vm5075, %v6718, %v6594
        %v6727 = vsel %vm5075, %v6719, %v6596
        %v6728 = vsel %vm5075, %v6720, %v6598
        %v6729 = vsel %vm5075, %v6721, %v6600
        %v6730 = vsel %vm5075, %v6722, %v6602
        %v6731 = vsel %vm5075, %v6723, %v6604
        %v6732 = vsel %vm5108, %v6724, %v6622
        %v6733 = vsel %vm5108, %v6725, %v6624
        %v6734 = vsel %vm5108, %v6726, %v6626
        %v6735 = vsel %vm5108, %v6727, %v6628
        %v6736 = vsel %vm5108, %v6728, %v6630
        %v6737 = vsel %vm5108, %v6729, %v6632
        %v6738 = vsel %vm5108, %v6730, %v6634
        %v6739 = vsel %vm5108, %v6731, %v6636
        %v6740 = vsel %vm5141, %v6732, %v6661
        %v6741 = vsel %vm5141, %v6733, %v6663
        %v6742 = vsel %vm5141, %v6734, %v6665
        %v6743 = vsel %vm5141, %v6735, %v6667
        %v6744 = vsel %vm5141, %v6736, %v6669
        %v6745 = vsel %vm5141, %v6737, %v6671
        %v6746 = vsel %vm5141, %v6738, %v6673
        %v6747 = vsel %vm5141, %v6739, %v6675
        %v6748 = vld [vmem:[%s13] sm:$0xff]
        %v6749 = vld [vmem:[%s13 + $0x8] sm:$0xff]
        %v6750 = vld [vmem:[%s13 + $0x10] sm:$0xff]
        %v6751 = vld [vmem:[%s13 + $0x18] sm:$0xff]
        %v6752 = vld [vmem:[%s13 + $0x20] sm:$0xff]
        %v6753 = vld [vmem:[%s13 + $0x28] sm:$0xff]
        %v6754 = vld [vmem:[%s13 + $0x30] sm:$0xff]
        %v6755 = vld [vmem:[%s13 + $0x38] sm:$0xff]
        %v6756 = vld [vmem:[%s13 + $0x40] sm:$0xff]
        %v6757 = vld [vmem:[%s13 + $0x48] sm:$0xff]
        %v6758 = vld [vmem:[%s13 + $0x50] sm:$0xff]
        %v6759 = vld [vmem:[%s13 + $0x58] sm:$0xff]
        %v6760 = vld [vmem:[%s13 + $0x60] sm:$0xff]
        %v6761 = vld [vmem:[%s13 + $0x68] sm:$0xff]
        %v6762 = vld [vmem:[%s13 + $0x70] sm:$0xff]
        %v6763 = vld [vmem:[%s13 + $0x78] sm:$0xff]
        %v6764 = vld [vmem:[%s13 + $0x80] sm:$0xff]
        %v6765 = vld [vmem:[%s13 + $0x88] sm:$0xff]
        %v6766 = vld [vmem:[%s14] sm:$0x1]
        %v6768 = vperm.slane %v6766, 0
        %v6770 = vsel %vm2580, %v6282, 0
        %v6772 = vsel %vm2580, %v6289, 0
        %v6774 = vsel %vm2580, %v6296, 0
        %v6776 = vsel %vm2580, %v6303, 0
        %v6778 = vsel %vm2580, %v6310, 0
        %v6780 = vsel %vm2580, %v6317, 0
        %v6782 = vsel %vm2580, %v6324, 0
        %v6784 = vsel %vm2580, %v6691, 0
        %6786 = vmatpush.msra.mxu0 %v6763
        %6787 = vmatpush.msra.mxu0 %v6762
        %6788 = vmatpush.msra.mxu0 %v6761
        %6789 = vmatpush.msra.mxu0 %v6760
        %6790 = vmatpush.msra.mxu0 %v6759
        %6791 = vmatpush.msra.mxu0 %v6758
        %6792 = vmatpush.msra.mxu0 %v6757
        %6793 = vmatpush.msra.mxu0 %v6756
        %6794 = vmatpush.msra.mxu0 %v6755
        %6795 = vmatpush.msra.mxu0 %v6754
        %6796 = vmatpush.msra.mxu0 %v6753
        %6797 = vmatpush.msra.mxu0 %v6752
        %6798 = vmatpush.msra.mxu0 %v6751
        %6799 = vmatpush.msra.mxu0 %v6750
        %6800 = vmatpush.msra.mxu0 %v6749
        %6801 = vmatpush.msra.mxu0 %v6748
        %6802 = vmatmul.f32.gmra.mxu0 %v6740
        %v6803 = vpop.f32.mrf.mxu0
        %v6804 = vadd.f32 %v6768, %v6803
        %6805 = vmatmul.f32.gmra.mxu0 %v6741
        %v6806 = vpop.f32.mrf.mxu0
        %v6807 = vadd.f32 %v6768, %v6806
        %6808 = vmatmul.f32.gmra.mxu0 %v6742
        %v6809 = vpop.f32.mrf.mxu0
        %v6810 = vadd.f32 %v6768, %v6809
        %6811 = vmatmul.f32.gmra.mxu0 %v6743
        %v6812 = vpop.f32.mrf.mxu0
        %v6813 = vadd.f32 %v6768, %v6812
        %6814 = vmatmul.f32.gmra.mxu0 %v6744
        %v6815 = vpop.f32.mrf.mxu0
        %v6816 = vadd.f32 %v6768, %v6815
        %6817 = vmatmul.f32.gmra.mxu0 %v6745
        %v6818 = vpop.f32.mrf.mxu0
        %v6819 = vadd.f32 %v6768, %v6818
        %6820 = vmatmul.f32.gmra.mxu0 %v6746
        %v6821 = vpop.f32.mrf.mxu0
        %v6822 = vadd.f32 %v6768, %v6821
        %6823 = vmatmul.f32.gmra.mxu0 %v6747
        %v6824 = vpop.f32.mrf.mxu0
        %v6825 = vadd.f32 %v6768, %v6824
        %6826 = vdwg.mxu0
        %6827 = vmatpush.msra.mxu0 0.0
        %6828 = vmatpush.msra.mxu0 0.0
        %6829 = vmatpush.msra.mxu0 0.0
        %6830 = vmatpush.msra.mxu0 0.0
        %6831 = vmatpush.msra.mxu0 0.0
        %6832 = vmatpush.msra.mxu0 0.0
        %6833 = vmatpush.msra.mxu0 0.0
        %6834 = vmatpush.msra.mxu0 0.0
        %6835 = vmatpush.msra.mxu0 0.0
        %6836 = vmatpush.msra.mxu0 0.0
        %6837 = vmatpush.msra.mxu0 0.0
        %6838 = vmatpush.msra.mxu0 0.0
        %6839 = vmatpush.msra.mxu0 0.0
        %6840 = vmatpush.msra.mxu0 0.0
        %6841 = vmatpush.msra.mxu0 %v6765
        %6842 = vmatpush.msra.mxu0 %v6764
        %6843 = vmatmul.f32.gmra.mxu0 %v6770
        %v6844 = vpop.f32.mrf.mxu0
        %v6845 = vadd.f32 %v6804, %v6844
        %6846 = vmatmul.f32.gmra.mxu0 %v6772
        %v6847 = vpop.f32.mrf.mxu0
        %v6848 = vadd.f32 %v6807, %v6847
        %6849 = vmatmul.f32.gmra.mxu0 %v6774
        %v6850 = vpop.f32.mrf.mxu0
        %v6851 = vadd.f32 %v6810, %v6850
        %6852 = vmatmul.f32.gmra.mxu0 %v6776
        %v6853 = vpop.f32.mrf.mxu0
        %v6854 = vadd.f32 %v6813, %v6853
        %6855 = vmatmul.f32.gmra.mxu0 %v6778
        %v6856 = vpop.f32.mrf.mxu0
        %v6857 = vadd.f32 %v6816, %v6856
        %6858 = vmatmul.f32.gmra.mxu0 %v6780
        %v6859 = vpop.f32.mrf.mxu0
        %v6860 = vadd.f32 %v6819, %v6859
        %6861 = vmatmul.f32.gmra.mxu0 %v6782
        %v6862 = vpop.f32.mrf.mxu0
        %v6863 = vadd.f32 %v6822, %v6862
        %6864 = vmatmul.f32.gmra.mxu0 %v6784
        %v6865 = vpop.f32.mrf.mxu0
        %v6866 = vadd.f32 %v6825, %v6865
        %6867 = vdwg.mxu0
        %6868 = vst.msk [vmem:[%s487] sm:$0xff] %vm2580, %v6845
        %6869 = vst.msk [vmem:[%s487 + $0x8] sm:$0xff] %vm2580, %v6848
        %6870 = vst.msk [vmem:[%s487 + $0x10] sm:$0xff] %vm2580, %v6851
        %6871 = vst.msk [vmem:[%s487 + $0x18] sm:$0xff] %vm2580, %v6854
        %6872 = vst.msk [vmem:[%s487 + $0x20] sm:$0xff] %vm2580, %v6857
        %6873 = vst.msk [vmem:[%s487 + $0x28] sm:$0xff] %vm2580, %v6860
        %6874 = vst.msk [vmem:[%s487 + $0x30] sm:$0xff] %vm2580, %v6863
        %6875 = vst.msk [vmem:[%s487 + $0x38] sm:$0xff] %vm2580, %v6866
        %s6876 = sand.u32 %s357, 1
        %s6877 = scalar_lea.sflag [#allocation3], %s6876
        %s6878 = sand.u32 %s357, 1
        %s6879 = smul.addr %s6878, 64
        %s6880 = scalar_lea.vmem [#allocation2], %s6879
        // Predicated region
        $region81: #{down_encoder_block2d.1} parent=79 // pred_check
          %p6881 = pneg %p367
        $region82: #{down_encoder_block2d.1} parent=79 // pred_check_branch
          %6883 = sbr.rel (%p6881) target = $region84
        $region83: #{down_encoder_block2d.1} parent=79 // pred_region
          %6885 = vsyncadd %s6877, 0
          %s6886 = smul.addr %s29, 8
          %s6887 = smul.addr %s6886, 8
          %s6888 = scalar_lea.hbm %s15, %s6887
          %s6889 = sshll.u32 %s6880, 4
          %s6890 = int_to_ptr.vmem [resolvable:$true] %s6889
          %s6891 = sshll.u32 %s6888, 4
          %s6892 = int_to_ptr.hbm [resolvable:$true] %s6891
          %6897 = dma.vmem_to_hbm [thread:$0]  %s6890, 1024, %s6892, %s6877, 128, 128, 8
        $region84: #{down_encoder_block2d.1} parent=79 // pred_fallthru
          _
      $region80: #{down_encoder_block2d.1} parent=5 // pred_fallthru
        _
      %p6898 = scmp.le.s32.totalorder 2, %s24
      // Predicated region
      $region85: #{down_encoder_block2d.1} parent=5 // pred_check
        %p6899 = pneg %p6898
      $region86: #{down_encoder_block2d.1} parent=5 // pred_check_branch
        %6901 = sbr.rel (%p6899) target = $region88
      $region87: #{down_encoder_block2d.1} parent=5 // pred_region
        %s6902 = ssub.s32 %s24, 2
        // Predicated region
        $region89: #{down_encoder_block2d.1} parent=87 // pred_check
          %p6903 = pneg %p373
        $region90: #{down_encoder_block2d.1} parent=87 // pred_check_branch
          %6905 = sbr.rel (%p6903) target = $region92
        $region91: #{down_encoder_block2d.1} parent=87 // pred_region
          %s6906 = sand.u32 %s358, 1
          %s6907 = scalar_lea.sflag [#allocation3], %s6906
          %s6908 = sand.u32 %s358, 1
          %s6909 = smul.addr %s6908, 64
          %s6910 = scalar_lea.vmem [#allocation2], %s6909
          %6912 = dma.done %s6907, 1024
        $region92: #{down_encoder_block2d.1} parent=87 // pred_fallthru
          _
      $region88: #{down_encoder_block2d.1} parent=5 // pred_fallthru
        _
    $region6: #{down_encoder_block2d.1} parent=1 // loop_footer
      %s28 = sadd.s32 1, %s24
    $region7: #{down_encoder_block2d.1} parent=1 // loop_footer_branch
      %23 = sbr.rel target = $region3
    $region8: #{down_encoder_block2d.1} parent=1 // loop_exit
      _
    %6913 = vsyncpa [#allocation3], 1
    %s6914 = scalar_lea.sflag [#allocation3], 1
    %6915 = vsyncpa %s6914, 1

</llo_original>
